<compile_context>
chip_gen: v7x
topology: tpu7x:2x2x1
jax: 0.10.0
libtpu: 0.0.40
codegen_flags: <defaults>
</compile_context>

<pallas_src>
import jax
import jax.numpy as jnp
import numpy as np
from jax import lax
from jax.experimental import pallas as pl
from jax.experimental.pallas import tpu as pltpu


def _time_upsample_res2x_kernel(alpha_ref, xmain_ref, xhalo0_ref, xhalo1_ref,
                                w_ref, b_ref, out_ref, col_ref):
    """One grid step == (batch b, time-tile t): Tt input frames -> 2*Tt output frames.

    alpha_ref : SMEM (1, 1) f32                       sigmoid(mix_factor)
    xmain_ref : VMEM (1, Tt, H+2, W+2, C)             padded frames [Tt*t, Tt*t+Tt)
    xhalo0_ref: VMEM (1, 1,  H+2, W+2, C)             padded frame   Tt*(t+1)
    xhalo1_ref: VMEM (1, 1,  H+2, W+2, C)             padded frame   Tt*(t+1)+1
    w_ref     : VMEM (4, 9C, Co)  folded weight banks:
                  [0] W0       (prev frame, even outputs)
                  [1] W1+W2    (cur  frame, even outputs)
                  [2] W0+W1    (cur  frame, odd  outputs)
                  [3] W2       (next frame, odd  outputs)
    b_ref     : VMEM (1, Co) f32                      conv bias
    out_ref   : VMEM (1, 2*Tt, H*W, Co)
    col_ref   : VMEM (Tt+2, H*W, 9C) scratch          im2col per padded frame
    """
    Tt = xmain_ref.shape[1]
    H = xmain_ref.shape[2] - 2
    W = xmain_ref.shape[3] - 2
    C = xmain_ref.shape[4]
    Co = b_ref.shape[1]

    # Hoisted scalars / broadcasts (not re-done per output frame).
    alpha = alpha_ref[0, 0]
    beta = 1.0 - alpha
    bias = jnp.broadcast_to(b_ref[...], (H * W, Co))          # f32

    def im2col(frame):                                        # (H+2, W+2, C) -> (H*W, 9C)
        cols = []
        for dh in range(3):
            for dw in range(3):
                cols.append(frame[dh:dh + H, dw:dw + W, :].reshape(H * W, C))
        return jnp.concatenate(cols, axis=1)

    # Build the im2col block once per padded frame in this tile (+ 2 halo frames);
    # each block is reused up to 3 times (prev/cur/next roles) and by both parities.
    for f in range(Tt + 2):
        if f < Tt:
            frame = xmain_ref[0, f]
        elif f == Tt:
            frame = xhalo0_ref[0, 0]
        else:
            frame = xhalo1_ref[0, 0]
        col_ref[f] = im2col(frame)

    # Hoisted weight-bank loads (kept in native dtype; MXU accumulates in f32).
    w_even_prev = w_ref[0]
    w_even_cur = w_ref[1]
    w_odd_cur = w_ref[2]
    w_odd_next = w_ref[3]

    for u in range(Tt):                                       # frame index within the tile
        a_prev = col_ref[u]                                   # (H*W, 9C)
        a_cur = col_ref[u + 1]
        a_next = col_ref[u + 2]

        conv_even = (jnp.dot(a_prev, w_even_prev, preferred_element_type=jnp.float32)
                     + jnp.dot(a_cur, w_even_cur, preferred_element_type=jnp.float32)
                     + bias)
        conv_odd = (jnp.dot(a_cur, w_odd_cur, preferred_element_type=jnp.float32)
                    + jnp.dot(a_next, w_odd_next, preferred_element_type=jnp.float32)
                    + bias)

        # Residual = centre (dh=1, dw=1) tap of the current frame's im2col block;
        # no separate residual input / DMA needed.
        res_term = alpha * a_cur[:, 4 * C:5 * C].astype(jnp.float32)   # (H*W, C == Co)

        out_ref[0, 2 * u] = (res_term + beta * conv_even).astype(out_ref.dtype)
        out_ref[0, 2 * u + 1] = (res_term + beta * conv_odd).astype(out_ref.dtype)
    # TODO(synk): for Co < 128, present the output as a lane-dense (H, W*Co) slab
    # (needs a sublane->lane reshape in-kernel); with production Co >= 128 the
    # current (H*W, Co) store is already lane-dense.


def _vmem_bytes_per_step(tt, H, W, C, Co, in_sz, out_sz):
    frame_in = (H + 2) * (W + 2) * C * in_sz
    blk_in = 2 * (tt + 2) * frame_in                    # main + 2 halo frames, double-buffered
    blk_out = 2 * (2 * tt) * H * W * Co * out_sz        # output block, double-buffered
    wts = 2 * 4 * 9 * C * Co * in_sz
    col = (tt + 2) * H * W * 9 * C * in_sz              # im2col scratch (single)
    return blk_in + blk_out + wts + col


def _pick_time_tile(T, H, W, C, Co, in_sz, out_sz, budget_bytes):
    # Largest divisor of T that (a) keeps several grid steps for DMA/compute
    # pipelining, (b) keeps the static in-kernel unroll small, and (c) fits the
    # per-step VMEM budget (sized for v7x's 64 MiB, the smallest generation).
    cap = max(1, min(8, T // 2)) if T > 1 else 1
    for tt in range(cap, 0, -1):
        if T % tt == 0 and _vmem_bytes_per_step(tt, H, W, C, Co, in_sz, out_sz) <= budget_bytes:
            return tt
    return 1


_VMEM_BUDGET = 40 * 1024 * 1024   # headroom inside v7x's 64 MiB physical VMEM


@jax.jit
def time_upsample_res2x(x, weight, bias, mix_factor):
    """x: (B, C, T, H, W)  weight: (Co, C, 3, 3, 3)  bias: (Co,)  mix_factor: (1,)"""
    B, C, T, H, W = x.shape
    Co = weight.shape[0]
    assert C == Co, "residual mix (alpha*x + (1-alpha)*conv(x)) requires C_in == C_out"
    To = 2 * T

    # Channels-last; zero-pad H/W by 1 and T by one halo frame on each side.
    # The padded tensor has T+2 frames (NOT 2T+2): the temporal upsample is
    # folded into the weight banks and never materialized.
    xcl = jnp.transpose(x, (0, 2, 3, 4, 1))                           # (B, T, H, W, C)
    xpad = jnp.pad(xcl, ((0, 0), (1, 1), (1, 1), (1, 1), (0, 0)))     # (B, T+2, H+2, W+2, C)
    # TODO(synk): fold the zero padding into the kernel (zero-init VMEM halo) to
    # drop this extra HBM pass.

    # Folded temporal weight banks, flattened to (9C, Co) in (dh, dw, c) order to
    # match the im2col column order. Folding done in f32, fed to the MXU in the
    # input dtype (bf16 in production).
    w_t = jnp.transpose(weight, (2, 3, 4, 1, 0)).astype(jnp.float32)  # (kt, kh, kw, C, Co)
    w0, w1, w2 = w_t[0], w_t[1], w_t[2]
    w_banks = jnp.stack(
        [w0.reshape(9 * C, Co), (w1 + w2).reshape(9 * C, Co),
         (w0 + w1).reshape(9 * C, Co), w2.reshape(9 * C, Co)], axis=0,
    ).astype(x.dtype)                                                 # (4, 9C, Co)

    b_k = bias.reshape(1, Co).astype(jnp.float32)
    alpha = jax.nn.sigmoid(mix_factor.astype(jnp.float32)).reshape(1, 1)

    in_sz = jnp.dtype(x.dtype).itemsize
    Tt = _pick_time_tile(T, H, W, C, Co, in_sz, in_sz, _VMEM_BUDGET)
    est = _vmem_bytes_per_step(Tt, H, W, C, Co, in_sz, in_sz)
    vmem_limit = int(min(60 * 1024 * 1024, max(32 * 1024 * 1024, 2 * est)))

    halo_shape = (1, 1, H + 2, W + 2, C)

    out_flat = pl.pallas_call(
        _time_upsample_res2x_kernel,
        out_shape=jax.ShapeDtypeStruct((B, To, H * W, Co), x.dtype),
        grid_spec=pltpu.PrefetchScalarGridSpec(
            num_scalar_prefetch=0,
            grid=(B, T // Tt),
            in_specs=[
                pl.BlockSpec(memory_space=pltpu.SMEM),                        # alpha (1, 1)
                pl.BlockSpec((1, Tt, H + 2, W + 2, C),
                             lambda b, t: (b, t, 0, 0, 0)),                   # main frames
                pl.BlockSpec(halo_shape,
                             lambda b, t: (b, (t + 1) * Tt, 0, 0, 0)),        # halo frame 0
                pl.BlockSpec(halo_shape,
                             lambda b, t: (b, (t + 1) * Tt + 1, 0, 0, 0)),    # halo frame 1
                pl.BlockSpec((4, 9 * C, Co), lambda b, t: (0, 0, 0)),         # weight banks
                pl.BlockSpec((1, Co), lambda b, t: (0, 0)),                   # bias
            ],
            out_specs=pl.BlockSpec((1, 2 * Tt, H * W, Co),
                                   lambda b, t: (b, t, 0, 0)),
            scratch_shapes=[pltpu.VMEM((Tt + 2, H * W, 9 * C), x.dtype)],
        ),
        compiler_params=pltpu.CompilerParams(
            dimension_semantics=("parallel", "parallel"),
            vmem_limit_bytes=vmem_limit,
        ),
    )(alpha, xpad, xpad, xpad, w_banks, b_k)                          # (B, To, H*W, Co)

    # Back to NCTHW.
    out_cl = out_flat.reshape(B, To, H, W, Co)
    return jnp.transpose(out_cl, (0, 4, 1, 2, 3))                     # (B, Co, 2T, H, W)


def _reference(x, weight, bias, mix_factor):
    """Pure-JAX reference (mirrors the PyTorch forward)."""
    Co = weight.shape[0]
    alpha = jax.nn.sigmoid(mix_factor.astype(jnp.float32))[0]
    xu = jnp.repeat(x.astype(jnp.float32), 2, axis=2).astype(x.dtype)
    conv = lax.conv_general_dilated(
        xu.astype(jnp.float32), weight.astype(jnp.float32),
        window_strides=(1, 1, 1),
        padding=((1, 1), (1, 1), (1, 1)),
        dimension_numbers=("NCDHW", "OIDHW", "NCDHW"),
    ) + bias.reshape(1, Co, 1, 1, 1).astype(jnp.float32)
    return (alpha * xu.astype(jnp.float32) + (1.0 - alpha) * conv).astype(x.dtype)


if __name__ == "__main__":
    # Small shapes consistent with the module (residual requires C_in == C_out).
    B, C, T, H, W = 2, 4, 4, 8, 8
    Cin, Cout = C, C

    key = jax.random.PRNGKey(0)
    kx, kw, kb = jax.random.split(key, 3)

    x = jax.random.normal(kx, (B, Cin, T, H, W), dtype=jnp.float32)

    # Deterministic param init (PyTorch Conv3d default: U(-1/sqrt(fan_in), 1/sqrt(fan_in)))
    fan_in = Cin * 3 * 3 * 3
    bound = 1.0 / np.sqrt(fan_in)
    weight = jax.random.uniform(kw, (Cout, Cin, 3, 3, 3), jnp.float32, -bound, bound)
    bias = jax.random.uniform(kb, (Cout,), jnp.float32, -bound, bound)
    mix_factor = jnp.array([2.0], dtype=jnp.float32)

    out = time_upsample_res2x(x, weight, bias, mix_factor)
    out = jax.block_until_ready(out)

    ref = _reference(x, weight, bias, mix_factor)
    np.testing.assert_allclose(np.asarray(out), np.asarray(ref), rtol=1e-4, atol=1e-4)
    assert out.shape == (B, Cout, 2 * T, H, W)

    print("KERNEL_OK")
</pallas_src>

<mosaic_0001>
module attributes {stable_mosaic.version = 11 : i64} {
  func.func @_time_upsample_res2x_kernel(%arg0: i32, %arg1: i32, %arg2: memref<1x1xf32, #tpu.memory_space<smem>>, %arg3: memref<1x2x10x10x4xf32, #tpu.memory_space<vmem>>, %arg4: memref<1x1x10x10x4xf32, #tpu.memory_space<vmem>>, %arg5: memref<1x1x10x10x4xf32, #tpu.memory_space<vmem>>, %arg6: memref<4x36x4xf32, #tpu.memory_space<vmem>>, %arg7: memref<1x4xf32, #tpu.memory_space<vmem>>, %arg8: memref<1x4x64x4xf32, #tpu.memory_space<vmem>>, %arg9: memref<4x64x36xf32, #tpu.memory_space<vmem>>) attributes {dimension_semantics = [#tpu.dimension_semantics<parallel>, #tpu.dimension_semantics<parallel>], iteration_bounds = array<i64: 2, 2>, scalar_prefetch = 0 : i64, scratch_operands = 1 : i64, tpu.core_type = #tpu.core_type<tc>, window_params = [{transform_indices = @transform_0, window_bounds = array<i64: 1, 1>}, {transform_indices = @transform_1, window_bounds = array<i64: 1, 2, 10, 10, 4>}, {transform_indices = @transform_2, window_bounds = array<i64: 1, 1, 10, 10, 4>}, {transform_indices = @transform_3, window_bounds = array<i64: 1, 1, 10, 10, 4>}, {pipeline_mode = #tpu.pipeline_mode<synchronous>, transform_indices = @transform_4, window_bounds = array<i64: 4, 36, 4>}, {pipeline_mode = #tpu.pipeline_mode<synchronous>, transform_indices = @transform_5, window_bounds = array<i64: 1, 4>}, {transform_indices = @transform_6, window_bounds = array<i64: 1, 4, 64, 4>}]} {
    %c0 = arith.constant 0 : index
    %c0_0 = arith.constant 0 : index
    %0 = memref.load %arg2[%c0, %c0_0] : memref<1x1xf32, #tpu.memory_space<smem>>
    %cst = arith.constant 1.000000e+00 : f32
    %1 = arith.subf %cst, %0 : f32
    %c0_1 = arith.constant 0 : index
    %c0_2 = arith.constant 0 : index
    %2 = vector.load %arg7[%c0_1, %c0_2] : memref<1x4xf32, #tpu.memory_space<vmem>>, vector<1x4xf32>
    %3 = vector.shape_cast %2 : vector<1x4xf32> to vector<1x4xf32>
    %4 = vector.broadcast %3 : vector<1x4xf32> to vector<64x4xf32>
    %c0_3 = arith.constant 0 : index
    %c0_4 = arith.constant 0 : index
    %c0_5 = arith.constant 0 : index
    %c0_6 = arith.constant 0 : index
    %c0_7 = arith.constant 0 : index
    %5 = vector.load %arg3[%c0_3, %c0_4, %c0_5, %c0_6, %c0_7] : memref<1x2x10x10x4xf32, #tpu.memory_space<vmem>>, vector<1x1x10x10x4xf32>
    %6 = vector.shape_cast %5 : vector<1x1x10x10x4xf32> to vector<10x10x4xf32>
    %7 = vector.extract_strided_slice %6 {offsets = [0, 0, 0], sizes = [8, 8, 4], strides = [1, 1, 1]} : vector<10x10x4xf32> to vector<8x8x4xf32>
    %8 = vector.shape_cast %7 : vector<8x8x4xf32> to vector<64x4xf32>
    %9 = vector.extract_strided_slice %6 {offsets = [0, 1, 0], sizes = [8, 8, 4], strides = [1, 1, 1]} : vector<10x10x4xf32> to vector<8x8x4xf32>
    %10 = vector.shape_cast %9 : vector<8x8x4xf32> to vector<64x4xf32>
    %11 = vector.extract_strided_slice %6 {offsets = [0, 2, 0], sizes = [8, 8, 4], strides = [1, 1, 1]} : vector<10x10x4xf32> to vector<8x8x4xf32>
    %12 = vector.shape_cast %11 : vector<8x8x4xf32> to vector<64x4xf32>
    %13 = vector.extract_strided_slice %6 {offsets = [1, 0, 0], sizes = [8, 8, 4], strides = [1, 1, 1]} : vector<10x10x4xf32> to vector<8x8x4xf32>
    %14 = vector.shape_cast %13 : vector<8x8x4xf32> to vector<64x4xf32>
    %15 = vector.extract_strided_slice %6 {offsets = [1, 1, 0], sizes = [8, 8, 4], strides = [1, 1, 1]} : vector<10x10x4xf32> to vector<8x8x4xf32>
    %16 = vector.shape_cast %15 : vector<8x8x4xf32> to vector<64x4xf32>
    %17 = vector.extract_strided_slice %6 {offsets = [1, 2, 0], sizes = [8, 8, 4], strides = [1, 1, 1]} : vector<10x10x4xf32> to vector<8x8x4xf32>
    %18 = vector.shape_cast %17 : vector<8x8x4xf32> to vector<64x4xf32>
    %19 = vector.extract_strided_slice %6 {offsets = [2, 0, 0], sizes = [8, 8, 4], strides = [1, 1, 1]} : vector<10x10x4xf32> to vector<8x8x4xf32>
    %20 = vector.shape_cast %19 : vector<8x8x4xf32> to vector<64x4xf32>
    %21 = vector.extract_strided_slice %6 {offsets = [2, 1, 0], sizes = [8, 8, 4], strides = [1, 1, 1]} : vector<10x10x4xf32> to vector<8x8x4xf32>
    %22 = vector.shape_cast %21 : vector<8x8x4xf32> to vector<64x4xf32>
    %23 = vector.extract_strided_slice %6 {offsets = [2, 2, 0], sizes = [8, 8, 4], strides = [1, 1, 1]} : vector<10x10x4xf32> to vector<8x8x4xf32>
    %24 = vector.shape_cast %23 : vector<8x8x4xf32> to vector<64x4xf32>
    %25 = tpu.concatenate %8, %10, %12, %14, %16, %18, %20, %22, %24 in 1 : vector<64x4xf32>, vector<64x4xf32>, vector<64x4xf32>, vector<64x4xf32>, vector<64x4xf32>, vector<64x4xf32>, vector<64x4xf32>, vector<64x4xf32>, vector<64x4xf32> -> vector<64x36xf32>
    %c0_8 = arith.constant 0 : index
    %c0_9 = arith.constant 0 : index
    %c0_10 = arith.constant 0 : index
    %26 = vector.load %arg9[%c0_8, %c0_9, %c0_10] : memref<4x64x36xf32, #tpu.memory_space<vmem>>, vector<1x64x36xf32>
    %27 = vector.shape_cast %26 : vector<1x64x36xf32> to vector<64x36xf32>
    %28 = vector.shape_cast %25 : vector<64x36xf32> to vector<1x64x36xf32>
    tpu.vector_store %arg9[%c0_8, %c0_9, %c0_10], %28 {strides = array<i32>} : memref<4x64x36xf32, #tpu.memory_space<vmem>>, vector<1x64x36xf32>,
    %c0_11 = arith.constant 0 : index
    %c1 = arith.constant 1 : index
    %c0_12 = arith.constant 0 : index
    %c0_13 = arith.constant 0 : index
    %c0_14 = arith.constant 0 : index
    %29 = vector.load %arg3[%c0_11, %c1, %c0_12, %c0_13, %c0_14] : memref<1x2x10x10x4xf32, #tpu.memory_space<vmem>>, vector<1x1x10x10x4xf32>
    %30 = vector.shape_cast %29 : vector<1x1x10x10x4xf32> to vector<10x10x4xf32>
    %31 = vector.extract_strided_slice %30 {offsets = [0, 0, 0], sizes = [8, 8, 4], strides = [1, 1, 1]} : vector<10x10x4xf32> to vector<8x8x4xf32>
    %32 = vector.shape_cast %31 : vector<8x8x4xf32> to vector<64x4xf32>
    %33 = vector.extract_strided_slice %30 {offsets = [0, 1, 0], sizes = [8, 8, 4], strides = [1, 1, 1]} : vector<10x10x4xf32> to vector<8x8x4xf32>
    %34 = vector.shape_cast %33 : vector<8x8x4xf32> to vector<64x4xf32>
    %35 = vector.extract_strided_slice %30 {offsets = [0, 2, 0], sizes = [8, 8, 4], strides = [1, 1, 1]} : vector<10x10x4xf32> to vector<8x8x4xf32>
    %36 = vector.shape_cast %35 : vector<8x8x4xf32> to vector<64x4xf32>
    %37 = vector.extract_strided_slice %30 {offsets = [1, 0, 0], sizes = [8, 8, 4], strides = [1, 1, 1]} : vector<10x10x4xf32> to vector<8x8x4xf32>
    %38 = vector.shape_cast %37 : vector<8x8x4xf32> to vector<64x4xf32>
    %39 = vector.extract_strided_slice %30 {offsets = [1, 1, 0], sizes = [8, 8, 4], strides = [1, 1, 1]} : vector<10x10x4xf32> to vector<8x8x4xf32>
    %40 = vector.shape_cast %39 : vector<8x8x4xf32> to vector<64x4xf32>
    %41 = vector.extract_strided_slice %30 {offsets = [1, 2, 0], sizes = [8, 8, 4], strides = [1, 1, 1]} : vector<10x10x4xf32> to vector<8x8x4xf32>
    %42 = vector.shape_cast %41 : vector<8x8x4xf32> to vector<64x4xf32>
    %43 = vector.extract_strided_slice %30 {offsets = [2, 0, 0], sizes = [8, 8, 4], strides = [1, 1, 1]} : vector<10x10x4xf32> to vector<8x8x4xf32>
    %44 = vector.shape_cast %43 : vector<8x8x4xf32> to vector<64x4xf32>
    %45 = vector.extract_strided_slice %30 {offsets = [2, 1, 0], sizes = [8, 8, 4], strides = [1, 1, 1]} : vector<10x10x4xf32> to vector<8x8x4xf32>
    %46 = vector.shape_cast %45 : vector<8x8x4xf32> to vector<64x4xf32>
    %47 = vector.extract_strided_slice %30 {offsets = [2, 2, 0], sizes = [8, 8, 4], strides = [1, 1, 1]} : vector<10x10x4xf32> to vector<8x8x4xf32>
    %48 = vector.shape_cast %47 : vector<8x8x4xf32> to vector<64x4xf32>
    %49 = tpu.concatenate %32, %34, %36, %38, %40, %42, %44, %46, %48 in 1 : vector<64x4xf32>, vector<64x4xf32>, vector<64x4xf32>, vector<64x4xf32>, vector<64x4xf32>, vector<64x4xf32>, vector<64x4xf32>, vector<64x4xf32>, vector<64x4xf32> -> vector<64x36xf32>
    %c1_15 = arith.constant 1 : index
    %c0_16 = arith.constant 0 : index
    %c0_17 = arith.constant 0 : index
    %50 = vector.load %arg9[%c1_15, %c0_16, %c0_17] : memref<4x64x36xf32, #tpu.memory_space<vmem>>, vector<1x64x36xf32>
    %51 = vector.shape_cast %50 : vector<1x64x36xf32> to vector<64x36xf32>
    %52 = vector.shape_cast %49 : vector<64x36xf32> to vector<1x64x36xf32>
    tpu.vector_store %arg9[%c1_15, %c0_16, %c0_17], %52 {strides = array<i32>} : memref<4x64x36xf32, #tpu.memory_space<vmem>>, vector<1x64x36xf32>,
    %c0_18 = arith.constant 0 : index
    %c0_19 = arith.constant 0 : index
    %c0_20 = arith.constant 0 : index
    %c0_21 = arith.constant 0 : index
    %c0_22 = arith.constant 0 : index
    %53 = vector.load %arg4[%c0_18, %c0_19, %c0_20, %c0_21, %c0_22] : memref<1x1x10x10x4xf32, #tpu.memory_space<vmem>>, vector<1x1x10x10x4xf32>
    %54 = vector.shape_cast %53 : vector<1x1x10x10x4xf32> to vector<10x10x4xf32>
    %55 = vector.extract_strided_slice %54 {offsets = [0, 0, 0], sizes = [8, 8, 4], strides = [1, 1, 1]} : vector<10x10x4xf32> to vector<8x8x4xf32>
    %56 = vector.shape_cast %55 : vector<8x8x4xf32> to vector<64x4xf32>
    %57 = vector.extract_strided_slice %54 {offsets = [0, 1, 0], sizes = [8, 8, 4], strides = [1, 1, 1]} : vector<10x10x4xf32> to vector<8x8x4xf32>
    %58 = vector.shape_cast %57 : vector<8x8x4xf32> to vector<64x4xf32>
    %59 = vector.extract_strided_slice %54 {offsets = [0, 2, 0], sizes = [8, 8, 4], strides = [1, 1, 1]} : vector<10x10x4xf32> to vector<8x8x4xf32>
    %60 = vector.shape_cast %59 : vector<8x8x4xf32> to vector<64x4xf32>
    %61 = vector.extract_strided_slice %54 {offsets = [1, 0, 0], sizes = [8, 8, 4], strides = [1, 1, 1]} : vector<10x10x4xf32> to vector<8x8x4xf32>
    %62 = vector.shape_cast %61 : vector<8x8x4xf32> to vector<64x4xf32>
    %63 = vector.extract_strided_slice %54 {offsets = [1, 1, 0], sizes = [8, 8, 4], strides = [1, 1, 1]} : vector<10x10x4xf32> to vector<8x8x4xf32>
    %64 = vector.shape_cast %63 : vector<8x8x4xf32> to vector<64x4xf32>
    %65 = vector.extract_strided_slice %54 {offsets = [1, 2, 0], sizes = [8, 8, 4], strides = [1, 1, 1]} : vector<10x10x4xf32> to vector<8x8x4xf32>
    %66 = vector.shape_cast %65 : vector<8x8x4xf32> to vector<64x4xf32>
    %67 = vector.extract_strided_slice %54 {offsets = [2, 0, 0], sizes = [8, 8, 4], strides = [1, 1, 1]} : vector<10x10x4xf32> to vector<8x8x4xf32>
    %68 = vector.shape_cast %67 : vector<8x8x4xf32> to vector<64x4xf32>
    %69 = vector.extract_strided_slice %54 {offsets = [2, 1, 0], sizes = [8, 8, 4], strides = [1, 1, 1]} : vector<10x10x4xf32> to vector<8x8x4xf32>
    %70 = vector.shape_cast %69 : vector<8x8x4xf32> to vector<64x4xf32>
    %71 = vector.extract_strided_slice %54 {offsets = [2, 2, 0], sizes = [8, 8, 4], strides = [1, 1, 1]} : vector<10x10x4xf32> to vector<8x8x4xf32>
    %72 = vector.shape_cast %71 : vector<8x8x4xf32> to vector<64x4xf32>
    %73 = tpu.concatenate %56, %58, %60, %62, %64, %66, %68, %70, %72 in 1 : vector<64x4xf32>, vector<64x4xf32>, vector<64x4xf32>, vector<64x4xf32>, vector<64x4xf32>, vector<64x4xf32>, vector<64x4xf32>, vector<64x4xf32>, vector<64x4xf32> -> vector<64x36xf32>
    %c2 = arith.constant 2 : index
    %c0_23 = arith.constant 0 : index
    %c0_24 = arith.constant 0 : index
    %74 = vector.load %arg9[%c2, %c0_23, %c0_24] : memref<4x64x36xf32, #tpu.memory_space<vmem>>, vector<1x64x36xf32>
    %75 = vector.shape_cast %74 : vector<1x64x36xf32> to vector<64x36xf32>
    %76 = vector.shape_cast %73 : vector<64x36xf32> to vector<1x64x36xf32>
    tpu.vector_store %arg9[%c2, %c0_23, %c0_24], %76 {strides = array<i32>} : memref<4x64x36xf32, #tpu.memory_space<vmem>>, vector<1x64x36xf32>,
    %c0_25 = arith.constant 0 : index
    %c0_26 = arith.constant 0 : index
    %c0_27 = arith.constant 0 : index
    %c0_28 = arith.constant 0 : index
    %c0_29 = arith.constant 0 : index
    %77 = vector.load %arg5[%c0_25, %c0_26, %c0_27, %c0_28, %c0_29] : memref<1x1x10x10x4xf32, #tpu.memory_space<vmem>>, vector<1x1x10x10x4xf32>
    %78 = vector.shape_cast %77 : vector<1x1x10x10x4xf32> to vector<10x10x4xf32>
    %79 = vector.extract_strided_slice %78 {offsets = [0, 0, 0], sizes = [8, 8, 4], strides = [1, 1, 1]} : vector<10x10x4xf32> to vector<8x8x4xf32>
    %80 = vector.shape_cast %79 : vector<8x8x4xf32> to vector<64x4xf32>
    %81 = vector.extract_strided_slice %78 {offsets = [0, 1, 0], sizes = [8, 8, 4], strides = [1, 1, 1]} : vector<10x10x4xf32> to vector<8x8x4xf32>
    %82 = vector.shape_cast %81 : vector<8x8x4xf32> to vector<64x4xf32>
    %83 = vector.extract_strided_slice %78 {offsets = [0, 2, 0], sizes = [8, 8, 4], strides = [1, 1, 1]} : vector<10x10x4xf32> to vector<8x8x4xf32>
    %84 = vector.shape_cast %83 : vector<8x8x4xf32> to vector<64x4xf32>
    %85 = vector.extract_strided_slice %78 {offsets = [1, 0, 0], sizes = [8, 8, 4], strides = [1, 1, 1]} : vector<10x10x4xf32> to vector<8x8x4xf32>
    %86 = vector.shape_cast %85 : vector<8x8x4xf32> to vector<64x4xf32>
    %87 = vector.extract_strided_slice %78 {offsets = [1, 1, 0], sizes = [8, 8, 4], strides = [1, 1, 1]} : vector<10x10x4xf32> to vector<8x8x4xf32>
    %88 = vector.shape_cast %87 : vector<8x8x4xf32> to vector<64x4xf32>
    %89 = vector.extract_strided_slice %78 {offsets = [1, 2, 0], sizes = [8, 8, 4], strides = [1, 1, 1]} : vector<10x10x4xf32> to vector<8x8x4xf32>
    %90 = vector.shape_cast %89 : vector<8x8x4xf32> to vector<64x4xf32>
    %91 = vector.extract_strided_slice %78 {offsets = [2, 0, 0], sizes = [8, 8, 4], strides = [1, 1, 1]} : vector<10x10x4xf32> to vector<8x8x4xf32>
    %92 = vector.shape_cast %91 : vector<8x8x4xf32> to vector<64x4xf32>
    %93 = vector.extract_strided_slice %78 {offsets = [2, 1, 0], sizes = [8, 8, 4], strides = [1, 1, 1]} : vector<10x10x4xf32> to vector<8x8x4xf32>
    %94 = vector.shape_cast %93 : vector<8x8x4xf32> to vector<64x4xf32>
    %95 = vector.extract_strided_slice %78 {offsets = [2, 2, 0], sizes = [8, 8, 4], strides = [1, 1, 1]} : vector<10x10x4xf32> to vector<8x8x4xf32>
    %96 = vector.shape_cast %95 : vector<8x8x4xf32> to vector<64x4xf32>
    %97 = tpu.concatenate %80, %82, %84, %86, %88, %90, %92, %94, %96 in 1 : vector<64x4xf32>, vector<64x4xf32>, vector<64x4xf32>, vector<64x4xf32>, vector<64x4xf32>, vector<64x4xf32>, vector<64x4xf32>, vector<64x4xf32>, vector<64x4xf32> -> vector<64x36xf32>
    %c3 = arith.constant 3 : index
    %c0_30 = arith.constant 0 : index
    %c0_31 = arith.constant 0 : index
    %98 = vector.load %arg9[%c3, %c0_30, %c0_31] : memref<4x64x36xf32, #tpu.memory_space<vmem>>, vector<1x64x36xf32>
    %99 = vector.shape_cast %98 : vector<1x64x36xf32> to vector<64x36xf32>
    %100 = vector.shape_cast %97 : vector<64x36xf32> to vector<1x64x36xf32>
    tpu.vector_store %arg9[%c3, %c0_30, %c0_31], %100 {strides = array<i32>} : memref<4x64x36xf32, #tpu.memory_space<vmem>>, vector<1x64x36xf32>,
    %c0_32 = arith.constant 0 : index
    %c0_33 = arith.constant 0 : index
    %c0_34 = arith.constant 0 : index
    %101 = vector.load %arg6[%c0_32, %c0_33, %c0_34] : memref<4x36x4xf32, #tpu.memory_space<vmem>>, vector<1x36x4xf32>
    %102 = vector.shape_cast %101 : vector<1x36x4xf32> to vector<36x4xf32>
    %c1_35 = arith.constant 1 : index
    %c0_36 = arith.constant 0 : index
    %c0_37 = arith.constant 0 : index
    %103 = vector.load %arg6[%c1_35, %c0_36, %c0_37] : memref<4x36x4xf32, #tpu.memory_space<vmem>>, vector<1x36x4xf32>
    %104 = vector.shape_cast %103 : vector<1x36x4xf32> to vector<36x4xf32>
    %c2_38 = arith.constant 2 : index
    %c0_39 = arith.constant 0 : index
    %c0_40 = arith.constant 0 : index
    %105 = vector.load %arg6[%c2_38, %c0_39, %c0_40] : memref<4x36x4xf32, #tpu.memory_space<vmem>>, vector<1x36x4xf32>
    %106 = vector.shape_cast %105 : vector<1x36x4xf32> to vector<36x4xf32>
    %c3_41 = arith.constant 3 : index
    %c0_42 = arith.constant 0 : index
    %c0_43 = arith.constant 0 : index
    %107 = vector.load %arg6[%c3_41, %c0_42, %c0_43] : memref<4x36x4xf32, #tpu.memory_space<vmem>>, vector<1x36x4xf32>
    %108 = vector.shape_cast %107 : vector<1x36x4xf32> to vector<36x4xf32>
    %c0_44 = arith.constant 0 : index
    %c0_45 = arith.constant 0 : index
    %c0_46 = arith.constant 0 : index
    %109 = vector.load %arg9[%c0_44, %c0_45, %c0_46] : memref<4x64x36xf32, #tpu.memory_space<vmem>>, vector<1x64x36xf32>
    %110 = vector.shape_cast %109 : vector<1x64x36xf32> to vector<64x36xf32>
    %c1_47 = arith.constant 1 : index
    %c0_48 = arith.constant 0 : index
    %c0_49 = arith.constant 0 : index
    %111 = vector.load %arg9[%c1_47, %c0_48, %c0_49] : memref<4x64x36xf32, #tpu.memory_space<vmem>>, vector<1x64x36xf32>
    %112 = vector.shape_cast %111 : vector<1x64x36xf32> to vector<64x36xf32>
    %c2_50 = arith.constant 2 : index
    %c0_51 = arith.constant 0 : index
    %c0_52 = arith.constant 0 : index
    %113 = vector.load %arg9[%c2_50, %c0_51, %c0_52] : memref<4x64x36xf32, #tpu.memory_space<vmem>>, vector<1x64x36xf32>
    %114 = vector.shape_cast %113 : vector<1x64x36xf32> to vector<64x36xf32>
    %cst_53 = arith.constant dense<0.000000e+00> : vector<64x4xf32>
    %115 = tpu.matmul %110, %102, %cst_53 {dimension_numbers = #tpu.dot_dimension_numbers<[1], [0], [0], [1], [0, 0, 1, 1], [], []>} : vector<64x36xf32>, vector<36x4xf32>, vector<64x4xf32> -> vector<64x4xf32>
    %cst_54 = arith.constant dense<0.000000e+00> : vector<64x4xf32>
    %116 = tpu.matmul %112, %104, %cst_54 {dimension_numbers = #tpu.dot_dimension_numbers<[1], [0], [0], [1], [0, 0, 1, 1], [], []>} : vector<64x36xf32>, vector<36x4xf32>, vector<64x4xf32> -> vector<64x4xf32>
    %117 = arith.addf %115, %116 : vector<64x4xf32>
    %118 = arith.addf %117, %4 : vector<64x4xf32>
    %cst_55 = arith.constant dense<0.000000e+00> : vector<64x4xf32>
    %119 = tpu.matmul %112, %106, %cst_55 {dimension_numbers = #tpu.dot_dimension_numbers<[1], [0], [0], [1], [0, 0, 1, 1], [], []>} : vector<64x36xf32>, vector<36x4xf32>, vector<64x4xf32> -> vector<64x4xf32>
    %cst_56 = arith.constant dense<0.000000e+00> : vector<64x4xf32>
    %120 = tpu.matmul %114, %108, %cst_56 {dimension_numbers = #tpu.dot_dimension_numbers<[1], [0], [0], [1], [0, 0, 1, 1], [], []>} : vector<64x36xf32>, vector<36x4xf32>, vector<64x4xf32> -> vector<64x4xf32>
    %121 = arith.addf %119, %120 : vector<64x4xf32>
    %122 = arith.addf %121, %4 : vector<64x4xf32>
    %123 = vector.extract_strided_slice %112 {offsets = [0, 16], sizes = [64, 4], strides = [1, 1]} : vector<64x36xf32> to vector<64x4xf32>
    %124 = vector.broadcast %0 : f32 to vector<64x4xf32>
    %125 = arith.mulf %124, %123 : vector<64x4xf32>
    %126 = vector.broadcast %1 : f32 to vector<64x4xf32>
    %127 = arith.mulf %126, %118 : vector<64x4xf32>
    %128 = arith.addf %125, %127 : vector<64x4xf32>
    %c0_57 = arith.constant 0 : index
    %c0_58 = arith.constant 0 : index
    %c0_59 = arith.constant 0 : index
    %c0_60 = arith.constant 0 : index
    %129 = vector.load %arg8[%c0_57, %c0_58, %c0_59, %c0_60] : memref<1x4x64x4xf32, #tpu.memory_space<vmem>>, vector<1x1x64x4xf32>
    %130 = vector.shape_cast %129 : vector<1x1x64x4xf32> to vector<64x4xf32>
    %131 = vector.shape_cast %128 : vector<64x4xf32> to vector<1x1x64x4xf32>
    tpu.vector_store %arg8[%c0_57, %c0_58, %c0_59, %c0_60], %131 {strides = array<i32>} : memref<1x4x64x4xf32, #tpu.memory_space<vmem>>, vector<1x1x64x4xf32>,
    %132 = vector.broadcast %1 : f32 to vector<64x4xf32>
    %133 = arith.mulf %132, %122 : vector<64x4xf32>
    %134 = arith.addf %125, %133 : vector<64x4xf32>
    %c0_61 = arith.constant 0 : index
    %c1_62 = arith.constant 1 : index
    %c0_63 = arith.constant 0 : index
    %c0_64 = arith.constant 0 : index
    %135 = vector.load %arg8[%c0_61, %c1_62, %c0_63, %c0_64] : memref<1x4x64x4xf32, #tpu.memory_space<vmem>>, vector<1x1x64x4xf32>
    %136 = vector.shape_cast %135 : vector<1x1x64x4xf32> to vector<64x4xf32>
    %137 = vector.shape_cast %134 : vector<64x4xf32> to vector<1x1x64x4xf32>
    tpu.vector_store %arg8[%c0_61, %c1_62, %c0_63, %c0_64], %137 {strides = array<i32>} : memref<1x4x64x4xf32, #tpu.memory_space<vmem>>, vector<1x1x64x4xf32>,
    %c1_65 = arith.constant 1 : index
    %c0_66 = arith.constant 0 : index
    %c0_67 = arith.constant 0 : index
    %138 = vector.load %arg9[%c1_65, %c0_66, %c0_67] : memref<4x64x36xf32, #tpu.memory_space<vmem>>, vector<1x64x36xf32>
    %139 = vector.shape_cast %138 : vector<1x64x36xf32> to vector<64x36xf32>
    %c2_68 = arith.constant 2 : index
    %c0_69 = arith.constant 0 : index
    %c0_70 = arith.constant 0 : index
    %140 = vector.load %arg9[%c2_68, %c0_69, %c0_70] : memref<4x64x36xf32, #tpu.memory_space<vmem>>, vector<1x64x36xf32>
    %141 = vector.shape_cast %140 : vector<1x64x36xf32> to vector<64x36xf32>
    %c3_71 = arith.constant 3 : index
    %c0_72 = arith.constant 0 : index
    %c0_73 = arith.constant 0 : index
    %142 = vector.load %arg9[%c3_71, %c0_72, %c0_73] : memref<4x64x36xf32, #tpu.memory_space<vmem>>, vector<1x64x36xf32>
    %143 = vector.shape_cast %142 : vector<1x64x36xf32> to vector<64x36xf32>
    %cst_74 = arith.constant dense<0.000000e+00> : vector<64x4xf32>
    %144 = tpu.matmul %139, %102, %cst_74 {dimension_numbers = #tpu.dot_dimension_numbers<[1], [0], [0], [1], [0, 0, 1, 1], [], []>} : vector<64x36xf32>, vector<36x4xf32>, vector<64x4xf32> -> vector<64x4xf32>
    %cst_75 = arith.constant dense<0.000000e+00> : vector<64x4xf32>
    %145 = tpu.matmul %141, %104, %cst_75 {dimension_numbers = #tpu.dot_dimension_numbers<[1], [0], [0], [1], [0, 0, 1, 1], [], []>} : vector<64x36xf32>, vector<36x4xf32>, vector<64x4xf32> -> vector<64x4xf32>
    %146 = arith.addf %144, %145 : vector<64x4xf32>
    %147 = arith.addf %146, %4 : vector<64x4xf32>
    %cst_76 = arith.constant dense<0.000000e+00> : vector<64x4xf32>
    %148 = tpu.matmul %141, %106, %cst_76 {dimension_numbers = #tpu.dot_dimension_numbers<[1], [0], [0], [1], [0, 0, 1, 1], [], []>} : vector<64x36xf32>, vector<36x4xf32>, vector<64x4xf32> -> vector<64x4xf32>
    %cst_77 = arith.constant dense<0.000000e+00> : vector<64x4xf32>
    %149 = tpu.matmul %143, %108, %cst_77 {dimension_numbers = #tpu.dot_dimension_numbers<[1], [0], [0], [1], [0, 0, 1, 1], [], []>} : vector<64x36xf32>, vector<36x4xf32>, vector<64x4xf32> -> vector<64x4xf32>
    %150 = arith.addf %148, %149 : vector<64x4xf32>
    %151 = arith.addf %150, %4 : vector<64x4xf32>
    %152 = vector.extract_strided_slice %141 {offsets = [0, 16], sizes = [64, 4], strides = [1, 1]} : vector<64x36xf32> to vector<64x4xf32>
    %153 = vector.broadcast %0 : f32 to vector<64x4xf32>
    %154 = arith.mulf %153, %152 : vector<64x4xf32>
    %155 = vector.broadcast %1 : f32 to vector<64x4xf32>
    %156 = arith.mulf %155, %147 : vector<64x4xf32>
    %157 = arith.addf %154, %156 : vector<64x4xf32>
    %c0_78 = arith.constant 0 : index
    %c2_79 = arith.constant 2 : index
    %c0_80 = arith.constant 0 : index
    %c0_81 = arith.constant 0 : index
    %158 = vector.load %arg8[%c0_78, %c2_79, %c0_80, %c0_81] : memref<1x4x64x4xf32, #tpu.memory_space<vmem>>, vector<1x1x64x4xf32>
    %159 = vector.shape_cast %158 : vector<1x1x64x4xf32> to vector<64x4xf32>
    %160 = vector.shape_cast %157 : vector<64x4xf32> to vector<1x1x64x4xf32>
    tpu.vector_store %arg8[%c0_78, %c2_79, %c0_80, %c0_81], %160 {strides = array<i32>} : memref<1x4x64x4xf32, #tpu.memory_space<vmem>>, vector<1x1x64x4xf32>,
    %161 = vector.broadcast %1 : f32 to vector<64x4xf32>
    %162 = arith.mulf %161, %151 : vector<64x4xf32>
    %163 = arith.addf %154, %162 : vector<64x4xf32>
    %c0_82 = arith.constant 0 : index
    %c3_83 = arith.constant 3 : index
    %c0_84 = arith.constant 0 : index
    %c0_85 = arith.constant 0 : index
    %164 = vector.load %arg8[%c0_82, %c3_83, %c0_84, %c0_85] : memref<1x4x64x4xf32, #tpu.memory_space<vmem>>, vector<1x1x64x4xf32>
    %165 = vector.shape_cast %164 : vector<1x1x64x4xf32> to vector<64x4xf32>
    %166 = vector.shape_cast %163 : vector<64x4xf32> to vector<1x1x64x4xf32>
    tpu.vector_store %arg8[%c0_82, %c3_83, %c0_84, %c0_85], %166 {strides = array<i32>} : memref<1x4x64x4xf32, #tpu.memory_space<vmem>>, vector<1x1x64x4xf32>,
    return
  }
  func.func @transform_0(%arg0: i32, %arg1: i32) -> (i32, i32) {
    %c0_i32 = arith.constant 0 : i32
    %c0_i32_0 = arith.constant 0 : i32
    %c0_i32_1 = arith.constant 0 : i32
    return %c0_i32, %c0_i32_0 : i32, i32
  }
  func.func @transform_1(%arg0: i32, %arg1: i32) -> (i32, i32, i32, i32, i32) {
    %c0_i32 = arith.constant 0 : i32
    %c0_i32_0 = arith.constant 0 : i32
    %c0_i32_1 = arith.constant 0 : i32
    %c0_i32_2 = arith.constant 0 : i32
    return %arg0, %arg1, %c0_i32, %c0_i32_0, %c0_i32_1 : i32, i32, i32, i32, i32
  }
  func.func @transform_2(%arg0: i32, %arg1: i32) -> (i32, i32, i32, i32, i32) {
    %c1_i32 = arith.constant 1 : i32
    %0 = arith.addi %arg1, %c1_i32 : i32
    %c2_i32 = arith.constant 2 : i32
    %1 = arith.muli %0, %c2_i32 : i32
    %c0_i32 = arith.constant 0 : i32
    %c0_i32_0 = arith.constant 0 : i32
    %c0_i32_1 = arith.constant 0 : i32
    %c0_i32_2 = arith.constant 0 : i32
    return %arg0, %1, %c0_i32, %c0_i32_0, %c0_i32_1 : i32, i32, i32, i32, i32
  }
  func.func @transform_3(%arg0: i32, %arg1: i32) -> (i32, i32, i32, i32, i32) {
    %c1_i32 = arith.constant 1 : i32
    %0 = arith.addi %arg1, %c1_i32 : i32
    %c2_i32 = arith.constant 2 : i32
    %1 = arith.muli %0, %c2_i32 : i32
    %c1_i32_0 = arith.constant 1 : i32
    %2 = arith.addi %1, %c1_i32_0 : i32
    %c0_i32 = arith.constant 0 : i32
    %c0_i32_1 = arith.constant 0 : i32
    %c0_i32_2 = arith.constant 0 : i32
    %c0_i32_3 = arith.constant 0 : i32
    return %arg0, %2, %c0_i32, %c0_i32_1, %c0_i32_2 : i32, i32, i32, i32, i32
  }
  func.func @transform_4(%arg0: i32, %arg1: i32) -> (i32, i32, i32) {
    %c0_i32 = arith.constant 0 : i32
    %c0_i32_0 = arith.constant 0 : i32
    %c0_i32_1 = arith.constant 0 : i32
    %c0_i32_2 = arith.constant 0 : i32
    return %c0_i32, %c0_i32_0, %c0_i32_1 : i32, i32, i32
  }
  func.func @transform_5(%arg0: i32, %arg1: i32) -> (i32, i32) {
    %c0_i32 = arith.constant 0 : i32
    %c0_i32_0 = arith.constant 0 : i32
    %c0_i32_1 = arith.constant 0 : i32
    return %c0_i32, %c0_i32_0 : i32, i32
  }
  func.func @transform_6(%arg0: i32, %arg1: i32) -> (i32, i32, i32, i32) {
    %c0_i32 = arith.constant 0 : i32
    %c0_i32_0 = arith.constant 0 : i32
    %c0_i32_1 = arith.constant 0 : i32
    return %arg0, %arg1, %c0_i32, %c0_i32_0 : i32, i32, i32, i32
  }
}

</mosaic_0001>

<llo_original>
// kernel: time_upsample_res2x.1
$region0: #{time_upsample_res2x.1}
  #allocation0 [shape = 'u32[]', space=smem, size = 0x4, offset = 0x4, fixed_abs, tag = 'smem constant byte address 0x4 - core index']
  #allocation1 [shape = 'u32[144,128]{1,0:T(1,128)}', space=vmem, size = 0x12000, scoped, tag = 'internal scratch']
  #allocation2 [shape = 'f32[4,64,36]{2,1,0:T(8,128)}', space=vmem, size = 0x20000, scoped, tag = 'scratch operand']
  #allocation3 [shape = 'f32[1,1]{1,0:T(1,128)S(6)}', space=smem, size = 0x200, scoped, tag = 'scoped memory for time_upsample_res2x.1']
  %s0 = inlined_call_operand.<no memory space> [shape: f32[1,1], index: 0, kind: input, shape index: {}]
  %s1 = inlined_call_operand.vmem [shape: f32[2,6,10,10,4], index: 1, kind: input, shape index: {}, may-alias: {1,2,3}]
  %s2 = inlined_call_operand.vmem [shape: f32[2,6,10,10,4], index: 2, kind: input, shape index: {}, may-alias: {1,2,3}]
  %s3 = inlined_call_operand.vmem [shape: f32[2,6,10,10,4], index: 3, kind: input, shape index: {}, may-alias: {1,2,3}]
  %s4 = inlined_call_operand.vmem [shape: f32[4,36,4], index: 4, kind: input, shape index: {}]
  %s5 = inlined_call_operand.vmem [shape: f32[1,4], index: 5, kind: input, shape index: {}]
  %s6 = inlined_call_operand.vmem [shape: f32[2,8,64,4], index: 6, kind: output, shape index: {}]
  %s7 = sld [smem:[#allocation0]]
  $region57: #{time_upsample_res2x.1} parent=0
    _
  %s9 = ssub.s32 1, %s7
  %s10 = scalar_select 0, %s9, %s7
  %11 = sst [smem:[#allocation3]] %s0
  loop: start=0, step=1, limit=6
  $region2: #{time_upsample_res2x.1} parent=0 // loop_pre_header
    _
  $region3: #{time_upsample_res2x.1} parent=0 // loop_header
    %s13 = sphi 0, %s17
    %p14 = scmp.ge.s32.totalorder %s13, 6
    %s20 = sphi 0, %s32
    %s21 = sphi 0, %s28
    %s22 = sphi 0, %s20
    %s23 = sphi 0, %s21
    %s24 = sphi 0, %s22
    %s25 = sphi 0, %s23
    %s33 = sphi 0, %s33
    %s35 = sphi 0, %s33
    %s36 = sphi 0, %s35
    %s50 = sphi 0, %s36
    %s58 = sphi 0, %s60
    %s61 = sphi 0, %s58
    %s62 = sphi 0, %s61
    %s78 = sphi 0, %s62
    %s90 = sphi 0, %s92
    %s93 = sphi 0, %s90
    %s94 = sphi 0, %s93
    %s110 = sphi 0, %s94
    %s124 = sphi 0, %s126
    %s127 = sphi 0, %s124
    %s128 = sphi 0, %s127
    %s144 = sphi 0, %s128
    %s148 = sphi 0, %s148
    %s150 = sphi 0, %s148
    %s151 = sphi 0, %s150
    %s165 = sphi 0, %s151
    %s169 = sphi 0, %s169
    %s171 = sphi 0, %s169
    %s172 = sphi 0, %s171
    %s186 = sphi 0, %s172
    %s194 = sphi 0, %s196
    %s197 = sphi 0, %s194
    %s198 = sphi 0, %s197
    %s214 = sphi 0, %s198
  $region4: #{time_upsample_res2x.1} parent=0 // loop_header_branch
    %16 = sbr.rel (%p14) target = $region8
  $region5: #{time_upsample_res2x.1} parent=0 // loop_body
    %s18 = ssub.s32 %s13, 1
    %s19 = ssub.s32 %s13, 2
    %s26 = sadd.s32 1, %s21
    %p27 = scmp.ge.s32.totalorder %s26, 2
    %s28 = scalar_select %p27, 0, %s26
    %s29 = sadd.s32 1, %s20
    %s30 = scalar_select %p27, %s29, %s20
    %p31 = scmp.ge.s32.totalorder %s30, 2
    %s32 = scalar_select %p31, 0, %s30
    %s34 = sadd.s32 %s33, 1
    %p37 = scmp.eq.s32.totalorder %s13, 3
    %p38 = scmp.ne.s32.totalorder %s33, %s35
    %p39 = scmp.eq.s32.totalorder %s13, 0
    %p40 = por %p38, %p39
    %p41 = scmp.ne.s32.totalorder %s33, %s35
    %p42 = scmp.eq.s32.totalorder %s18, 3
    %p43 = por %p41, %p42
    %p44 = scmp.ne.s32.totalorder %s35, %s36
    %p45 = scmp.eq.s32.totalorder %s18, 0
    %p46 = por %p44, %p45
    %p47 = scmp.ne.s32.totalorder %s35, %s36
    %p48 = scmp.eq.s32.totalorder %s19, 3
    %p49 = por %p47, %p48
    %p51 = scmp.ne.s32.totalorder %s36, %s50
    %p52 = scmp.eq.s32.totalorder %s19, 0
    %p53 = por %p51, %p52
    %s54 = ssub.s32 %s20, %s32
    %s55 = ssub.s32 %s21, %s28
    %s56 = sor.u32 %s54, %s55
    %p57 = scmp.eq.s32.totalorder %s56, 0
    %s59 = sadd.s32 %s58, 1
    %s60 = scalar_select %p57, %s58, %s59
    %p63 = pneg %p57
    %p64 = scmp.eq.s32.totalorder %s13, 3
    %p65 = por %p63, %p64
    %p66 = scmp.ne.s32.totalorder %s58, %s61
    %p67 = scmp.eq.s32.totalorder %s13, 0
    %p68 = por %p66, %p67
    %p69 = scmp.ne.s32.totalorder %s58, %s61
    %p70 = scmp.eq.s32.totalorder %s18, 3
    %p71 = por %p69, %p70
    %p72 = scmp.ne.s32.totalorder %s61, %s62
    %p73 = scmp.eq.s32.totalorder %s18, 0
    %p74 = por %p72, %p73
    %p75 = scmp.ne.s32.totalorder %s61, %s62
    %p76 = scmp.eq.s32.totalorder %s19, 3
    %p77 = por %p75, %p76
    %p79 = scmp.ne.s32.totalorder %s62, %s78
    %p80 = scmp.eq.s32.totalorder %s19, 0
    %p81 = por %p79, %p80
    %s82 = sadd.s32 %s21, 1
    %s83 = smul.u32 %s82, 2
    %s84 = sadd.s32 %s28, 1
    %s85 = smul.u32 %s84, 2
    %s86 = ssub.s32 %s20, %s32
    %s87 = ssub.s32 %s83, %s85
    %s88 = sor.u32 %s86, %s87
    %p89 = scmp.eq.s32.totalorder %s88, 0
    %s91 = sadd.s32 %s90, 1
    %s92 = scalar_select %p89, %s90, %s91
    %p95 = pneg %p89
    %p96 = scmp.eq.s32.totalorder %s13, 3
    %p97 = por %p95, %p96
    %p98 = scmp.ne.s32.totalorder %s90, %s93
    %p99 = scmp.eq.s32.totalorder %s13, 0
    %p100 = por %p98, %p99
    %p101 = scmp.ne.s32.totalorder %s90, %s93
    %p102 = scmp.eq.s32.totalorder %s18, 3
    %p103 = por %p101, %p102
    %p104 = scmp.ne.s32.totalorder %s93, %s94
    %p105 = scmp.eq.s32.totalorder %s18, 0
    %p106 = por %p104, %p105
    %p107 = scmp.ne.s32.totalorder %s93, %s94
    %p108 = scmp.eq.s32.totalorder %s19, 3
    %p109 = por %p107, %p108
    %p111 = scmp.ne.s32.totalorder %s94, %s110
    %p112 = scmp.eq.s32.totalorder %s19, 0
    %p113 = por %p111, %p112
    %s114 = sadd.s32 %s21, 1
    %s115 = smul.u32 %s114, 2
    %s116 = sadd.s32 %s115, 1
    %s117 = sadd.s32 %s28, 1
    %s118 = smul.u32 %s117, 2
    %s119 = sadd.s32 %s118, 1
    %s120 = ssub.s32 %s20, %s32
    %s121 = ssub.s32 %s116, %s119
    %s122 = sor.u32 %s120, %s121
    %p123 = scmp.eq.s32.totalorder %s122, 0
    %s125 = sadd.s32 %s124, 1
    %s126 = scalar_select %p123, %s124, %s125
    %p129 = pneg %p123
    %p130 = scmp.eq.s32.totalorder %s13, 3
    %p131 = por %p129, %p130
    %p132 = scmp.ne.s32.totalorder %s124, %s127
    %p133 = scmp.eq.s32.totalorder %s13, 0
    %p134 = por %p132, %p133
    %p135 = scmp.ne.s32.totalorder %s124, %s127
    %p136 = scmp.eq.s32.totalorder %s18, 3
    %p137 = por %p135, %p136
    %p138 = scmp.ne.s32.totalorder %s127, %s128
    %p139 = scmp.eq.s32.totalorder %s18, 0
    %p140 = por %p138, %p139
    %p141 = scmp.ne.s32.totalorder %s127, %s128
    %p142 = scmp.eq.s32.totalorder %s19, 3
    %p143 = por %p141, %p142
    %p145 = scmp.ne.s32.totalorder %s128, %s144
    %p146 = scmp.eq.s32.totalorder %s19, 0
    %p147 = por %p145, %p146
    %s149 = sadd.s32 %s148, 1
    %p152 = scmp.eq.s32.totalorder %s13, 3
    %p153 = scmp.ne.s32.totalorder %s148, %s150
    %p154 = scmp.eq.s32.totalorder %s13, 0
    %p155 = por %p153, %p154
    %p156 = scmp.ne.s32.totalorder %s148, %s150
    %p157 = scmp.eq.s32.totalorder %s18, 3
    %p158 = por %p156, %p157
    %p159 = scmp.ne.s32.totalorder %s150, %s151
    %p160 = scmp.eq.s32.totalorder %s18, 0
    %p161 = por %p159, %p160
    %p162 = scmp.ne.s32.totalorder %s150, %s151
    %p163 = scmp.eq.s32.totalorder %s19, 3
    %p164 = por %p162, %p163
    %p166 = scmp.ne.s32.totalorder %s151, %s165
    %p167 = scmp.eq.s32.totalorder %s19, 0
    %p168 = por %p166, %p167
    %s170 = sadd.s32 %s169, 1
    %p173 = scmp.eq.s32.totalorder %s13, 3
    %p174 = scmp.ne.s32.totalorder %s169, %s171
    %p175 = scmp.eq.s32.totalorder %s13, 0
    %p176 = por %p174, %p175
    %p177 = scmp.ne.s32.totalorder %s169, %s171
    %p178 = scmp.eq.s32.totalorder %s18, 3
    %p179 = por %p177, %p178
    %p180 = scmp.ne.s32.totalorder %s171, %s172
    %p181 = scmp.eq.s32.totalorder %s18, 0
    %p182 = por %p180, %p181
    %p183 = scmp.ne.s32.totalorder %s171, %s172
    %p184 = scmp.eq.s32.totalorder %s19, 3
    %p185 = por %p183, %p184
    %p187 = scmp.ne.s32.totalorder %s172, %s186
    %p188 = scmp.eq.s32.totalorder %s19, 0
    %p189 = por %p187, %p188
    %s190 = ssub.s32 %s20, %s32
    %s191 = ssub.s32 %s21, %s28
    %s192 = sor.u32 %s190, %s191
    %p193 = scmp.eq.s32.totalorder %s192, 0
    %s195 = sadd.s32 %s194, 1
    %s196 = scalar_select %p193, %s194, %s195
    %p199 = pneg %p193
    %p200 = scmp.eq.s32.totalorder %s13, 3
    %p201 = por %p199, %p200
    %p202 = scmp.ne.s32.totalorder %s194, %s197
    %p203 = scmp.eq.s32.totalorder %s13, 0
    %p204 = por %p202, %p203
    %p205 = scmp.ne.s32.totalorder %s194, %s197
    %p206 = scmp.eq.s32.totalorder %s18, 3
    %p207 = por %p205, %p206
    %p208 = scmp.ne.s32.totalorder %s197, %s198
    %p209 = scmp.eq.s32.totalorder %s18, 0
    %p210 = por %p208, %p209
    %p211 = scmp.ne.s32.totalorder %s197, %s198
    %p212 = scmp.eq.s32.totalorder %s19, 3
    %p213 = por %p211, %p212
    %p215 = scmp.ne.s32.totalorder %s198, %s214
    %p216 = scmp.eq.s32.totalorder %s19, 0
    %p217 = por %p215, %p216
    %p218 = scmp.le.s32.totalorder 1, %s13
    %p219 = scmp.lt.s32.totalorder %s13, 5
    %p220 = pnand %p218, %p219
    %p221 = pneg %p220
    // Predicated region
    $region9: #{time_upsample_res2x.1} parent=5 // pred_check
      _
    $region10: #{time_upsample_res2x.1} parent=5 // pred_check_branch
      %223 = sbr.rel (%p220) target = $region12
    $region11: #{time_upsample_res2x.1} parent=5 // pred_region
      %s224 = ssub.s32 %s13, 1
      // Predicated region
      $region13: #{time_upsample_res2x.1} parent=11 // pred_check
        %p225 = pneg %p46
      $region14: #{time_upsample_res2x.1} parent=11 // pred_check_branch
        %227 = sbr.rel (%p225) target = $region16
      $region15: #{time_upsample_res2x.1} parent=11 // pred_region
        _
      $region16: #{time_upsample_res2x.1} parent=11 // pred_fallthru
        _
      // Predicated region
      $region17: #{time_upsample_res2x.1} parent=11 // pred_check
        %p228 = pneg %p161
      $region18: #{time_upsample_res2x.1} parent=11 // pred_check_branch
        %230 = sbr.rel (%p228) target = $region20
      $region19: #{time_upsample_res2x.1} parent=11 // pred_region
        _
      $region20: #{time_upsample_res2x.1} parent=11 // pred_fallthru
        _
      // Predicated region
      $region21: #{time_upsample_res2x.1} parent=11 // pred_check
        %p231 = pneg %p182
      $region22: #{time_upsample_res2x.1} parent=11 // pred_check_branch
        %233 = sbr.rel (%p231) target = $region24
      $region23: #{time_upsample_res2x.1} parent=11 // pred_region
        _
      $region24: #{time_upsample_res2x.1} parent=11 // pred_fallthru
        _
    $region12: #{time_upsample_res2x.1} parent=5 // pred_fallthru
      _
    %p234 = scmp.lt.s32.totalorder %s13, 4
    // Predicated region
    $region25: #{time_upsample_res2x.1} parent=5 // pred_check
      %p235 = pneg %p234
    $region26: #{time_upsample_res2x.1} parent=5 // pred_check_branch
      %237 = sbr.rel (%p235) target = $region28
    $region27: #{time_upsample_res2x.1} parent=5 // pred_region
      // Predicated region
      $region29: #{time_upsample_res2x.1} parent=27 // pred_check
        %p238 = pneg %p68
      $region30: #{time_upsample_res2x.1} parent=27 // pred_check_branch
        %240 = sbr.rel (%p238) target = $region32
      $region31: #{time_upsample_res2x.1} parent=27 // pred_region
        %s241 = smul.u32 2, %s21
        %p242 = scmp.lt.s32.totalorder %s20, 1
        %s243 = scalar_select %p242, %s20, 1
        %p244 = scmp.lt.s32.totalorder %s241, 5
        %s245 = scalar_select %p244, %s241, 5
        %s246 = smul.addr %s245, 20
        %s247 = smul.addr %s243, 120
        %s248 = sadd.s32 %s246, %s247
        %s249 = smul.addr %s248, 8
        %s250 = scalar_lea.vmem %s1, %s249
        %s251 = smul.u32 2, %s21
      $region32: #{time_upsample_res2x.1} parent=27 // pred_fallthru
        _
      // Predicated region
      $region33: #{time_upsample_res2x.1} parent=27 // pred_check
        %p252 = pneg %p100
      $region34: #{time_upsample_res2x.1} parent=27 // pred_check_branch
        %254 = sbr.rel (%p252) target = $region36
      $region35: #{time_upsample_res2x.1} parent=27 // pred_region
        %s255 = sadd.s32 %s21, 1
        %s256 = smul.u32 %s255, 2
        %p257 = scmp.lt.s32.totalorder %s20, 1
        %s258 = scalar_select %p257, %s20, 1
        %p259 = scmp.lt.s32.totalorder %s256, 5
        %s260 = scalar_select %p259, %s256, 5
        %s261 = smul.addr %s260, 20
        %s262 = smul.addr %s258, 120
        %s263 = sadd.s32 %s261, %s262
        %s264 = smul.addr %s263, 8
        %s265 = scalar_lea.vmem %s2, %s264
        %s266 = sadd.s32 %s21, 1
        %s267 = smul.u32 %s266, 2
      $region36: #{time_upsample_res2x.1} parent=27 // pred_fallthru
        _
      // Predicated region
      $region37: #{time_upsample_res2x.1} parent=27 // pred_check
        %p268 = pneg %p134
      $region38: #{time_upsample_res2x.1} parent=27 // pred_check_branch
        %270 = sbr.rel (%p268) target = $region40
      $region39: #{time_upsample_res2x.1} parent=27 // pred_region
        %s271 = sadd.s32 %s21, 1
        %s272 = smul.u32 %s271, 2
        %s273 = sadd.s32 %s272, 1
        %p274 = scmp.lt.s32.totalorder %s20, 1
        %s275 = scalar_select %p274, %s20, 1
        %p276 = scmp.lt.s32.totalorder %s273, 5
        %s277 = scalar_select %p276, %s273, 5
        %s278 = smul.addr %s277, 20
        %s279 = smul.addr %s275, 120
        %s280 = sadd.s32 %s278, %s279
        %s281 = smul.addr %s280, 8
        %s282 = scalar_lea.vmem %s3, %s281
        %s283 = sadd.s32 %s21, 1
        %s284 = smul.u32 %s283, 2
        %s285 = sadd.s32 %s284, 1
      $region40: #{time_upsample_res2x.1} parent=27 // pred_fallthru
        _
    $region28: #{time_upsample_res2x.1} parent=5 // pred_fallthru
      _
    %p286 = scmp.le.s32.totalorder 1, %s13
    %p287 = scmp.lt.s32.totalorder %s13, 5
    %p288 = pnand %p286, %p287
    %p289 = pneg %p288
    // Predicated region
    $region41: #{time_upsample_res2x.1} parent=5 // pred_check
      _
    $region42: #{time_upsample_res2x.1} parent=5 // pred_check_branch
      %291 = sbr.rel (%p288) target = $region44
    $region43: #{time_upsample_res2x.1} parent=5 // pred_region
      %s292 = ssub.s32 %s13, 1
      %p293 = pneg %p46
      %p294 = pneg %p43
      %s295 = smul.u32 2, %s23
      %p296 = scmp.lt.s32.totalorder %s22, 1
      %s297 = scalar_select %p296, %s22, 1
      %p298 = scmp.lt.s32.totalorder %s295, 5
      %s299 = scalar_select %p298, %s295, 5
      %s300 = smul.addr %s299, 20
      %s301 = smul.addr %s297, 120
      %s302 = sadd.s32 %s300, %s301
      %s303 = smul.addr %s302, 8
      %s304 = scalar_lea.vmem %s1, %s303
      %p305 = pneg %p74
      %p306 = pneg %p71
      %s307 = sadd.s32 %s23, 1
      %s308 = smul.u32 %s307, 2
      %p309 = scmp.lt.s32.totalorder %s22, 1
      %s310 = scalar_select %p309, %s22, 1
      %p311 = scmp.lt.s32.totalorder %s308, 5
      %s312 = scalar_select %p311, %s308, 5
      %s313 = smul.addr %s312, 20
      %s314 = smul.addr %s310, 120
      %s315 = sadd.s32 %s313, %s314
      %s316 = smul.addr %s315, 8
      %s317 = scalar_lea.vmem %s2, %s316
      %p318 = pneg %p106
      %p319 = pneg %p103
      %s320 = sadd.s32 %s23, 1
      %s321 = smul.u32 %s320, 2
      %s322 = sadd.s32 %s321, 1
      %p323 = scmp.lt.s32.totalorder %s22, 1
      %s324 = scalar_select %p323, %s22, 1
      %p325 = scmp.lt.s32.totalorder %s322, 5
      %s326 = scalar_select %p325, %s322, 5
      %s327 = smul.addr %s326, 20
      %s328 = smul.addr %s324, 120
      %s329 = sadd.s32 %s327, %s328
      %s330 = smul.addr %s329, 8
      %s331 = scalar_lea.vmem %s3, %s330
      %p332 = pneg %p140
      %p333 = pneg %p137
      %p334 = pneg %p161
      %p335 = pneg %p158
      %p336 = pneg %p182
      %p337 = pneg %p179
      %p338 = pneg %p210
      %p339 = pneg %p207
      %s340 = smul.u32 4, %s23
      %p341 = scmp.lt.s32.totalorder %s22, 1
      %s342 = scalar_select %p341, %s22, 1
      %p343 = scmp.lt.s32.totalorder %s340, 7
      %s344 = scalar_select %p343, %s340, 7
      %s345 = smul.addr %s344, 8
      %s346 = smul.addr %s342, 64
      %s347 = sadd.s32 %s345, %s346
      %s348 = smul.addr %s347, 8
      %s349 = scalar_lea.vmem %s6, %s348
      %s350 = smul.u32 2, %s23
      %p351 = scmp.lt.s32.totalorder %s22, 1
      %s352 = scalar_select %p351, %s22, 1
      %p353 = scmp.lt.s32.totalorder %s350, 5
      %s354 = scalar_select %p353, %s350, 5
      %s355 = smul.addr %s354, 20
      %s356 = smul.addr %s352, 120
      %s357 = sadd.s32 %s355, %s356
      %s358 = smul.addr %s357, 8
      %s359 = scalar_lea.vmem %s1, %s358
      %s360 = smul.u32 2, %s23
      %s361 = sadd.s32 %s23, 1
      %s362 = smul.u32 %s361, 2
      %p363 = scmp.lt.s32.totalorder %s22, 1
      %s364 = scalar_select %p363, %s22, 1
      %p365 = scmp.lt.s32.totalorder %s362, 5
      %s366 = scalar_select %p365, %s362, 5
      %s367 = smul.addr %s366, 20
      %s368 = smul.addr %s364, 120
      %s369 = sadd.s32 %s367, %s368
      %s370 = smul.addr %s369, 8
      %s371 = scalar_lea.vmem %s2, %s370
      %s372 = sadd.s32 %s23, 1
      %s373 = smul.u32 %s372, 2
      %s374 = sadd.s32 %s23, 1
      %s375 = smul.u32 %s374, 2
      %s376 = sadd.s32 %s375, 1
      %p377 = scmp.lt.s32.totalorder %s22, 1
      %s378 = scalar_select %p377, %s22, 1
      %p379 = scmp.lt.s32.totalorder %s376, 5
      %s380 = scalar_select %p379, %s376, 5
      %s381 = smul.addr %s380, 20
      %s382 = smul.addr %s378, 120
      %s383 = sadd.s32 %s381, %s382
      %s384 = smul.addr %s383, 8
      %s385 = scalar_lea.vmem %s3, %s384
      %s386 = sadd.s32 %s23, 1
      %s387 = smul.u32 %s386, 2
      %s388 = sadd.s32 %s387, 1
      %s389 = smul.u32 4, %s23
      %p390 = scmp.lt.s32.totalorder %s22, 1
      %s391 = scalar_select %p390, %s22, 1
      %p392 = scmp.lt.s32.totalorder %s389, 7
      %s393 = scalar_select %p392, %s389, 7
      %s394 = smul.addr %s393, 8
      %s395 = smul.addr %s391, 64
      %s396 = sadd.s32 %s394, %s395
      %s397 = smul.addr %s396, 8
      %s398 = scalar_lea.vmem %s6, %s397
      %s399 = smul.u32 4, %s23
      %s400 = sld [smem:[#allocation3]]
      %s401 = ssub.f32 1.0, %s400
      %v402 = vld [vmem:[%s5] sm:$0x1]
      %v404 = vlaneseq
      %v405 = vshrl.u32 %v404, 7
      %v406 = vsub.s32 0, %v405
      %v407 = vrot.slane %v402, %v406
      %v409 = vld [vmem:[%s359] sm:$0xff]
      %v410 = vld [vmem:[%s359 + $0x8] sm:$0x3]
      %v411 = vld [vmem:[%s359 + $0x10] sm:$0xff]
      %v412 = vld [vmem:[%s359 + $0x18] sm:$0x3]
      %v413 = vld [vmem:[%s359 + $0x20] sm:$0xff]
      %v414 = vld [vmem:[%s359 + $0x28] sm:$0x3]
      %v415 = vld [vmem:[%s359 + $0x30] sm:$0xff]
      %v416 = vld [vmem:[%s359 + $0x38] sm:$0x3]
      %v417 = vld [vmem:[%s359 + $0x40] sm:$0xff]
      %v418 = vld [vmem:[%s359 + $0x48] sm:$0x3]
      %v419 = vld [vmem:[%s359 + $0x50] sm:$0xff]
      %v420 = vld [vmem:[%s359 + $0x58] sm:$0x3]
      %v421 = vld [vmem:[%s359 + $0x60] sm:$0xff]
      %v422 = vld [vmem:[%s359 + $0x68] sm:$0x3]
      %v423 = vld [vmem:[%s359 + $0x70] sm:$0xff]
      %v424 = vld [vmem:[%s359 + $0x78] sm:$0x3]
      %v425 = vld [vmem:[%s359 + $0x80] sm:$0xff]
      %v426 = vld [vmem:[%s359 + $0x88] sm:$0x3]
      %v427 = vld [vmem:[%s359 + $0x90] sm:$0xff]
      %v428 = vld [vmem:[%s359 + $0x98] sm:$0x3]
      %vm445 = vcmask 1046528
      %v446 = vrot.slane %v409, 1
      %v447 = vrot.slane %v410, 1
      %v448 = vsel %vm445, %v446, %v447
      %v449 = vrot.slane %v411, 1
      %v450 = vrot.slane %v412, 1
      %v451 = vsel %vm445, %v449, %v450
      %v452 = vrot.slane %v413, 1
      %v453 = vrot.slane %v414, 1
      %v454 = vsel %vm445, %v452, %v453
      %v455 = vrot.slane %v415, 1
      %v456 = vrot.slane %v416, 1
      %v457 = vsel %vm445, %v455, %v456
      %v458 = vrot.slane %v417, 1
      %v459 = vrot.slane %v418, 1
      %v460 = vsel %vm445, %v458, %v459
      %v461 = vrot.slane %v419, 1
      %v462 = vrot.slane %v420, 1
      %v463 = vsel %vm445, %v461, %v462
      %v464 = vrot.slane %v421, 1
      %v465 = vrot.slane %v422, 1
      %v466 = vsel %vm445, %v464, %v465
      %v467 = vrot.slane %v423, 1
      %v468 = vrot.slane %v424, 1
      %v469 = vsel %vm445, %v467, %v468
      %vm470 = vcmask 1045504
      %v471 = vrot.slane %v409, 2
      %v472 = vrot.slane %v410, 2
      %v473 = vsel %vm470, %v471, %v472
      %v474 = vrot.slane %v411, 2
      %v475 = vrot.slane %v412, 2
      %v476 = vsel %vm470, %v474, %v475
      %v477 = vrot.slane %v413, 2
      %v478 = vrot.slane %v414, 2
      %v479 = vsel %vm470, %v477, %v478
      %v480 = vrot.slane %v415, 2
      %v481 = vrot.slane %v416, 2
      %v482 = vsel %vm470, %v480, %v481
      %v483 = vrot.slane %v417, 2
      %v484 = vrot.slane %v418, 2
      %v485 = vsel %vm470, %v483, %v484
      %v486 = vrot.slane %v419, 2
      %v487 = vrot.slane %v420, 2
      %v488 = vsel %vm470, %v486, %v487
      %v489 = vrot.slane %v421, 2
      %v490 = vrot.slane %v422, 2
      %v491 = vsel %vm470, %v489, %v490
      %v492 = vrot.slane %v423, 2
      %v493 = vrot.slane %v424, 2
      %v494 = vsel %vm470, %v492, %v493
      %v497 = vrot.slane %v425, 1
      %v498 = vrot.slane %v426, 1
      %v499 = vsel %vm445, %v497, %v498
      %v500 = vrot.slane %v425, 2
      %v501 = vrot.slane %v426, 2
      %v502 = vsel %vm470, %v500, %v501
      %v505 = vrot.slane %v427, 1
      %v506 = vrot.slane %v428, 1
      %v507 = vsel %vm445, %v505, %v506
      %v508 = vrot.slane %v427, 2
      %v509 = vrot.slane %v428, 2
      %v510 = vsel %vm470, %v508, %v509
      %511 = vrot.lane.b32.xlu0 %v448, 4
      %v512 = vpop.permute.xlu0 %511
      %513 = vrot.lane.b32.xlu0 %v451, 4
      %v514 = vpop.permute.xlu0 %513
      %515 = vrot.lane.b32.xlu0 %v454, 4
      %v516 = vpop.permute.xlu0 %515
      %517 = vrot.lane.b32.xlu0 %v457, 4
      %v518 = vpop.permute.xlu0 %517
      %519 = vrot.lane.b32.xlu0 %v460, 4
      %v520 = vpop.permute.xlu0 %519
      %521 = vrot.lane.b32.xlu0 %v463, 4
      %v522 = vpop.permute.xlu0 %521
      %523 = vrot.lane.b32.xlu0 %v466, 4
      %v524 = vpop.permute.xlu0 %523
      %525 = vrot.lane.b32.xlu0 %v469, 4
      %v526 = vpop.permute.xlu0 %525
      %535 = vrot.lane.b32.xlu0 %v473, 8
      %v536 = vpop.permute.xlu0 %535
      %537 = vrot.lane.b32.xlu0 %v476, 8
      %v538 = vpop.permute.xlu0 %537
      %539 = vrot.lane.b32.xlu0 %v479, 8
      %v540 = vpop.permute.xlu0 %539
      %541 = vrot.lane.b32.xlu0 %v482, 8
      %v542 = vpop.permute.xlu0 %541
      %543 = vrot.lane.b32.xlu0 %v485, 8
      %v544 = vpop.permute.xlu0 %543
      %545 = vrot.lane.b32.xlu0 %v488, 8
      %v546 = vpop.permute.xlu0 %545
      %547 = vrot.lane.b32.xlu0 %v491, 8
      %v548 = vpop.permute.xlu0 %547
      %549 = vrot.lane.b32.xlu0 %v494, 8
      %v550 = vpop.permute.xlu0 %549
      %559 = vrot.lane.b32.xlu0 %v411, 12
      %v560 = vpop.permute.xlu0 %559
      %561 = vrot.lane.b32.xlu0 %v413, 12
      %v562 = vpop.permute.xlu0 %561
      %563 = vrot.lane.b32.xlu0 %v415, 12
      %v564 = vpop.permute.xlu0 %563
      %565 = vrot.lane.b32.xlu0 %v417, 12
      %v566 = vpop.permute.xlu0 %565
      %567 = vrot.lane.b32.xlu0 %v419, 12
      %v568 = vpop.permute.xlu0 %567
      %569 = vrot.lane.b32.xlu0 %v421, 12
      %v570 = vpop.permute.xlu0 %569
      %571 = vrot.lane.b32.xlu0 %v423, 12
      %v572 = vpop.permute.xlu0 %571
      %573 = vrot.lane.b32.xlu0 %v425, 12
      %v574 = vpop.permute.xlu0 %573
      %583 = vrot.lane.b32.xlu0 %v451, 16
      %v584 = vpop.permute.xlu0 %583
      %585 = vrot.lane.b32.xlu0 %v454, 16
      %v586 = vpop.permute.xlu0 %585
      %587 = vrot.lane.b32.xlu0 %v457, 16
      %v588 = vpop.permute.xlu0 %587
      %589 = vrot.lane.b32.xlu0 %v460, 16
      %v590 = vpop.permute.xlu0 %589
      %591 = vrot.lane.b32.xlu0 %v463, 16
      %v592 = vpop.permute.xlu0 %591
      %593 = vrot.lane.b32.xlu0 %v466, 16
      %v594 = vpop.permute.xlu0 %593
      %595 = vrot.lane.b32.xlu0 %v469, 16
      %v596 = vpop.permute.xlu0 %595
      %597 = vrot.lane.b32.xlu0 %v499, 16
      %v598 = vpop.permute.xlu0 %597
      %607 = vrot.lane.b32.xlu0 %v476, 20
      %v608 = vpop.permute.xlu0 %607
      %609 = vrot.lane.b32.xlu0 %v479, 20
      %v610 = vpop.permute.xlu0 %609
      %611 = vrot.lane.b32.xlu0 %v482, 20
      %v612 = vpop.permute.xlu0 %611
      %613 = vrot.lane.b32.xlu0 %v485, 20
      %v614 = vpop.permute.xlu0 %613
      %615 = vrot.lane.b32.xlu0 %v488, 20
      %v616 = vpop.permute.xlu0 %615
      %617 = vrot.lane.b32.xlu0 %v491, 20
      %v618 = vpop.permute.xlu0 %617
      %619 = vrot.lane.b32.xlu0 %v494, 20
      %v620 = vpop.permute.xlu0 %619
      %621 = vrot.lane.b32.xlu0 %v502, 20
      %v622 = vpop.permute.xlu0 %621
      %631 = vrot.lane.b32.xlu0 %v413, 24
      %v632 = vpop.permute.xlu0 %631
      %633 = vrot.lane.b32.xlu0 %v415, 24
      %v634 = vpop.permute.xlu0 %633
      %635 = vrot.lane.b32.xlu0 %v417, 24
      %v636 = vpop.permute.xlu0 %635
      %637 = vrot.lane.b32.xlu0 %v419, 24
      %v638 = vpop.permute.xlu0 %637
      %639 = vrot.lane.b32.xlu0 %v421, 24
      %v640 = vpop.permute.xlu0 %639
      %641 = vrot.lane.b32.xlu0 %v423, 24
      %v642 = vpop.permute.xlu0 %641
      %643 = vrot.lane.b32.xlu0 %v425, 24
      %v644 = vpop.permute.xlu0 %643
      %645 = vrot.lane.b32.xlu0 %v427, 24
      %v646 = vpop.permute.xlu0 %645
      %655 = vrot.lane.b32.xlu0 %v454, 28
      %v656 = vpop.permute.xlu0 %655
      %657 = vrot.lane.b32.xlu0 %v457, 28
      %v658 = vpop.permute.xlu0 %657
      %659 = vrot.lane.b32.xlu0 %v460, 28
      %v660 = vpop.permute.xlu0 %659
      %661 = vrot.lane.b32.xlu0 %v463, 28
      %v662 = vpop.permute.xlu0 %661
      %663 = vrot.lane.b32.xlu0 %v466, 28
      %v664 = vpop.permute.xlu0 %663
      %665 = vrot.lane.b32.xlu0 %v469, 28
      %v666 = vpop.permute.xlu0 %665
      %667 = vrot.lane.b32.xlu0 %v499, 28
      %v668 = vpop.permute.xlu0 %667
      %669 = vrot.lane.b32.xlu0 %v507, 28
      %v670 = vpop.permute.xlu0 %669
      %679 = vrot.lane.b32.xlu0 %v479, 32
      %v680 = vpop.permute.xlu0 %679
      %681 = vrot.lane.b32.xlu0 %v482, 32
      %v682 = vpop.permute.xlu0 %681
      %683 = vrot.lane.b32.xlu0 %v485, 32
      %v684 = vpop.permute.xlu0 %683
      %685 = vrot.lane.b32.xlu0 %v488, 32
      %v686 = vpop.permute.xlu0 %685
      %687 = vrot.lane.b32.xlu0 %v491, 32
      %v688 = vpop.permute.xlu0 %687
      %689 = vrot.lane.b32.xlu0 %v494, 32
      %v690 = vpop.permute.xlu0 %689
      %691 = vrot.lane.b32.xlu0 %v502, 32
      %v692 = vpop.permute.xlu0 %691
      %693 = vrot.lane.b32.xlu0 %v510, 32
      %v694 = vpop.permute.xlu0 %693
      %vm703 = vcmask 31744
      %v704 = vsel %vm703, %v409, %v512
      %v705 = vsel %vm703, %v411, %v514
      %v706 = vsel %vm703, %v413, %v516
      %v707 = vsel %vm703, %v415, %v518
      %v708 = vsel %vm703, %v417, %v520
      %v709 = vsel %vm703, %v419, %v522
      %v710 = vsel %vm703, %v421, %v524
      %v711 = vsel %vm703, %v423, %v526
      %vm712 = vcmask 64512
      %v713 = vsel %vm712, %v704, %v536
      %v714 = vsel %vm712, %v705, %v538
      %v715 = vsel %vm712, %v706, %v540
      %v716 = vsel %vm712, %v707, %v542
      %v717 = vsel %vm712, %v708, %v544
      %v718 = vsel %vm712, %v709, %v546
      %v719 = vsel %vm712, %v710, %v548
      %v720 = vsel %vm712, %v711, %v550
      %vm721 = vcmask 97280
      %v722 = vsel %vm721, %v713, %v560
      %v723 = vsel %vm721, %v714, %v562
      %v724 = vsel %vm721, %v715, %v564
      %v725 = vsel %vm721, %v716, %v566
      %v726 = vsel %vm721, %v717, %v568
      %v727 = vsel %vm721, %v718, %v570
      %v728 = vsel %vm721, %v719, %v572
      %v729 = vsel %vm721, %v720, %v574
      %vm730 = vcmask 130048
      %v731 = vsel %vm730, %v722, %v584
      %v732 = vsel %vm730, %v723, %v586
      %v733 = vsel %vm730, %v724, %v588
      %v734 = vsel %vm730, %v725, %v590
      %v735 = vsel %vm730, %v726, %v592
      %v736 = vsel %vm730, %v727, %v594
      %v737 = vsel %vm730, %v728, %v596
      %v738 = vsel %vm730, %v729, %v598
      %vm739 = vcmask 162816
      %v740 = vsel %vm739, %v731, %v608
      %v741 = vsel %vm739, %v732, %v610
      %v742 = vsel %vm739, %v733, %v612
      %v743 = vsel %vm739, %v734, %v614
      %v744 = vsel %vm739, %v735, %v616
      %v745 = vsel %vm739, %v736, %v618
      %v746 = vsel %vm739, %v737, %v620
      %v747 = vsel %vm739, %v738, %v622
      %vm748 = vcmask 195584
      %v749 = vsel %vm748, %v740, %v632
      %v750 = vsel %vm748, %v741, %v634
      %v751 = vsel %vm748, %v742, %v636
      %v752 = vsel %vm748, %v743, %v638
      %v753 = vsel %vm748, %v744, %v640
      %v754 = vsel %vm748, %v745, %v642
      %v755 = vsel %vm748, %v746, %v644
      %v756 = vsel %vm748, %v747, %v646
      %vm757 = vcmask 228352
      %v758 = vsel %vm757, %v749, %v656
      %v759 = vsel %vm757, %v750, %v658
      %v760 = vsel %vm757, %v751, %v660
      %v761 = vsel %vm757, %v752, %v662
      %v762 = vsel %vm757, %v753, %v664
      %v763 = vsel %vm757, %v754, %v666
      %v764 = vsel %vm757, %v755, %v668
      %v765 = vsel %vm757, %v756, %v670
      %vm766 = vcmask 261120
      %v767 = vsel %vm766, %v758, %v680
      %v768 = vsel %vm766, %v759, %v682
      %v769 = vsel %vm766, %v760, %v684
      %v770 = vsel %vm766, %v761, %v686
      %v771 = vsel %vm766, %v762, %v688
      %v772 = vsel %vm766, %v763, %v690
      %v773 = vsel %vm766, %v764, %v692
      %v774 = vsel %vm766, %v765, %v694
      %vm775 = vcmask 293888
      %776 = vst.msk [vmem:[#allocation2] sm:$0xff] %vm775, %v767
      %777 = vst.msk [vmem:[#allocation2 + $0x8] sm:$0xff] %vm775, %v768
      %778 = vst.msk [vmem:[#allocation2 + $0x10] sm:$0xff] %vm775, %v769
      %779 = vst.msk [vmem:[#allocation2 + $0x18] sm:$0xff] %vm775, %v770
      %780 = vst.msk [vmem:[#allocation2 + $0x20] sm:$0xff] %vm775, %v771
      %781 = vst.msk [vmem:[#allocation2 + $0x28] sm:$0xff] %vm775, %v772
      %782 = vst.msk [vmem:[#allocation2 + $0x30] sm:$0xff] %vm775, %v773
      %783 = vst.msk [vmem:[#allocation2 + $0x38] sm:$0xff] %vm775, %v774
      %s784 = scalar_lea.vmem %s359, 160
      %v785 = vld [vmem:[%s784] sm:$0xff]
      %v786 = vld [vmem:[%s784 + $0x8] sm:$0x3]
      %v787 = vld [vmem:[%s784 + $0x10] sm:$0xff]
      %v788 = vld [vmem:[%s784 + $0x18] sm:$0x3]
      %v789 = vld [vmem:[%s784 + $0x20] sm:$0xff]
      %v790 = vld [vmem:[%s784 + $0x28] sm:$0x3]
      %v791 = vld [vmem:[%s784 + $0x30] sm:$0xff]
      %v792 = vld [vmem:[%s784 + $0x38] sm:$0x3]
      %v793 = vld [vmem:[%s784 + $0x40] sm:$0xff]
      %v794 = vld [vmem:[%s784 + $0x48] sm:$0x3]
      %v795 = vld [vmem:[%s784 + $0x50] sm:$0xff]
      %v796 = vld [vmem:[%s784 + $0x58] sm:$0x3]
      %v797 = vld [vmem:[%s784 + $0x60] sm:$0xff]
      %v798 = vld [vmem:[%s784 + $0x68] sm:$0x3]
      %v799 = vld [vmem:[%s784 + $0x70] sm:$0xff]
      %v800 = vld [vmem:[%s784 + $0x78] sm:$0x3]
      %v801 = vld [vmem:[%s784 + $0x80] sm:$0xff]
      %v802 = vld [vmem:[%s784 + $0x88] sm:$0x3]
      %v803 = vld [vmem:[%s784 + $0x90] sm:$0xff]
      %v804 = vld [vmem:[%s784 + $0x98] sm:$0x3]
      %v821 = vrot.slane %v785, 1
      %v822 = vrot.slane %v786, 1
      %v823 = vsel %vm445, %v821, %v822
      %v824 = vrot.slane %v787, 1
      %v825 = vrot.slane %v788, 1
      %v826 = vsel %vm445, %v824, %v825
      %v827 = vrot.slane %v789, 1
      %v828 = vrot.slane %v790, 1
      %v829 = vsel %vm445, %v827, %v828
      %v830 = vrot.slane %v791, 1
      %v831 = vrot.slane %v792, 1
      %v832 = vsel %vm445, %v830, %v831
      %v833 = vrot.slane %v793, 1
      %v834 = vrot.slane %v794, 1
      %v835 = vsel %vm445, %v833, %v834
      %v836 = vrot.slane %v795, 1
      %v837 = vrot.slane %v796, 1
      %v838 = vsel %vm445, %v836, %v837
      %v839 = vrot.slane %v797, 1
      %v840 = vrot.slane %v798, 1
      %v841 = vsel %vm445, %v839, %v840
      %v842 = vrot.slane %v799, 1
      %v843 = vrot.slane %v800, 1
      %v844 = vsel %vm445, %v842, %v843
      %v845 = vrot.slane %v785, 2
      %v846 = vrot.slane %v786, 2
      %v847 = vsel %vm470, %v845, %v846
      %v848 = vrot.slane %v787, 2
      %v849 = vrot.slane %v788, 2
      %v850 = vsel %vm470, %v848, %v849
      %v851 = vrot.slane %v789, 2
      %v852 = vrot.slane %v790, 2
      %v853 = vsel %vm470, %v851, %v852
      %v854 = vrot.slane %v791, 2
      %v855 = vrot.slane %v792, 2
      %v856 = vsel %vm470, %v854, %v855
      %v857 = vrot.slane %v793, 2
      %v858 = vrot.slane %v794, 2
      %v859 = vsel %vm470, %v857, %v858
      %v860 = vrot.slane %v795, 2
      %v861 = vrot.slane %v796, 2
      %v862 = vsel %vm470, %v860, %v861
      %v863 = vrot.slane %v797, 2
      %v864 = vrot.slane %v798, 2
      %v865 = vsel %vm470, %v863, %v864
      %v866 = vrot.slane %v799, 2
      %v867 = vrot.slane %v800, 2
      %v868 = vsel %vm470, %v866, %v867
      %v871 = vrot.slane %v801, 1
      %v872 = vrot.slane %v802, 1
      %v873 = vsel %vm445, %v871, %v872
      %v874 = vrot.slane %v801, 2
      %v875 = vrot.slane %v802, 2
      %v876 = vsel %vm470, %v874, %v875
      %v879 = vrot.slane %v803, 1
      %v880 = vrot.slane %v804, 1
      %v881 = vsel %vm445, %v879, %v880
      %v882 = vrot.slane %v803, 2
      %v883 = vrot.slane %v804, 2
      %v884 = vsel %vm470, %v882, %v883
      %885 = vrot.lane.b32.xlu0 %v823, 4
      %v886 = vpop.permute.xlu0 %885
      %887 = vrot.lane.b32.xlu0 %v826, 4
      %v888 = vpop.permute.xlu0 %887
      %889 = vrot.lane.b32.xlu0 %v829, 4
      %v890 = vpop.permute.xlu0 %889
      %891 = vrot.lane.b32.xlu0 %v832, 4
      %v892 = vpop.permute.xlu0 %891
      %893 = vrot.lane.b32.xlu0 %v835, 4
      %v894 = vpop.permute.xlu0 %893
      %895 = vrot.lane.b32.xlu0 %v838, 4
      %v896 = vpop.permute.xlu0 %895
      %897 = vrot.lane.b32.xlu0 %v841, 4
      %v898 = vpop.permute.xlu0 %897
      %899 = vrot.lane.b32.xlu0 %v844, 4
      %v900 = vpop.permute.xlu0 %899
      %909 = vrot.lane.b32.xlu0 %v847, 8
      %v910 = vpop.permute.xlu0 %909
      %911 = vrot.lane.b32.xlu0 %v850, 8
      %v912 = vpop.permute.xlu0 %911
      %913 = vrot.lane.b32.xlu0 %v853, 8
      %v914 = vpop.permute.xlu0 %913
      %915 = vrot.lane.b32.xlu0 %v856, 8
      %v916 = vpop.permute.xlu0 %915
      %917 = vrot.lane.b32.xlu0 %v859, 8
      %v918 = vpop.permute.xlu0 %917
      %919 = vrot.lane.b32.xlu0 %v862, 8
      %v920 = vpop.permute.xlu0 %919
      %921 = vrot.lane.b32.xlu0 %v865, 8
      %v922 = vpop.permute.xlu0 %921
      %923 = vrot.lane.b32.xlu0 %v868, 8
      %v924 = vpop.permute.xlu0 %923
      %933 = vrot.lane.b32.xlu0 %v787, 12
      %v934 = vpop.permute.xlu0 %933
      %935 = vrot.lane.b32.xlu0 %v789, 12
      %v936 = vpop.permute.xlu0 %935
      %937 = vrot.lane.b32.xlu0 %v791, 12
      %v938 = vpop.permute.xlu0 %937
      %939 = vrot.lane.b32.xlu0 %v793, 12
      %v940 = vpop.permute.xlu0 %939
      %941 = vrot.lane.b32.xlu0 %v795, 12
      %v942 = vpop.permute.xlu0 %941
      %943 = vrot.lane.b32.xlu0 %v797, 12
      %v944 = vpop.permute.xlu0 %943
      %945 = vrot.lane.b32.xlu0 %v799, 12
      %v946 = vpop.permute.xlu0 %945
      %947 = vrot.lane.b32.xlu0 %v801, 12
      %v948 = vpop.permute.xlu0 %947
      %957 = vrot.lane.b32.xlu0 %v826, 16
      %v958 = vpop.permute.xlu0 %957
      %959 = vrot.lane.b32.xlu0 %v829, 16
      %v960 = vpop.permute.xlu0 %959
      %961 = vrot.lane.b32.xlu0 %v832, 16
      %v962 = vpop.permute.xlu0 %961
      %963 = vrot.lane.b32.xlu0 %v835, 16
      %v964 = vpop.permute.xlu0 %963
      %965 = vrot.lane.b32.xlu0 %v838, 16
      %v966 = vpop.permute.xlu0 %965
      %967 = vrot.lane.b32.xlu0 %v841, 16
      %v968 = vpop.permute.xlu0 %967
      %969 = vrot.lane.b32.xlu0 %v844, 16
      %v970 = vpop.permute.xlu0 %969
      %971 = vrot.lane.b32.xlu0 %v873, 16
      %v972 = vpop.permute.xlu0 %971
      %981 = vrot.lane.b32.xlu0 %v850, 20
      %v982 = vpop.permute.xlu0 %981
      %983 = vrot.lane.b32.xlu0 %v853, 20
      %v984 = vpop.permute.xlu0 %983
      %985 = vrot.lane.b32.xlu0 %v856, 20
      %v986 = vpop.permute.xlu0 %985
      %987 = vrot.lane.b32.xlu0 %v859, 20
      %v988 = vpop.permute.xlu0 %987
      %989 = vrot.lane.b32.xlu0 %v862, 20
      %v990 = vpop.permute.xlu0 %989
      %991 = vrot.lane.b32.xlu0 %v865, 20
      %v992 = vpop.permute.xlu0 %991
      %993 = vrot.lane.b32.xlu0 %v868, 20
      %v994 = vpop.permute.xlu0 %993
      %995 = vrot.lane.b32.xlu0 %v876, 20
      %v996 = vpop.permute.xlu0 %995
      %1005 = vrot.lane.b32.xlu0 %v789, 24
      %v1006 = vpop.permute.xlu0 %1005
      %1007 = vrot.lane.b32.xlu0 %v791, 24
      %v1008 = vpop.permute.xlu0 %1007
      %1009 = vrot.lane.b32.xlu0 %v793, 24
      %v1010 = vpop.permute.xlu0 %1009
      %1011 = vrot.lane.b32.xlu0 %v795, 24
      %v1012 = vpop.permute.xlu0 %1011
      %1013 = vrot.lane.b32.xlu0 %v797, 24
      %v1014 = vpop.permute.xlu0 %1013
      %1015 = vrot.lane.b32.xlu0 %v799, 24
      %v1016 = vpop.permute.xlu0 %1015
      %1017 = vrot.lane.b32.xlu0 %v801, 24
      %v1018 = vpop.permute.xlu0 %1017
      %1019 = vrot.lane.b32.xlu0 %v803, 24
      %v1020 = vpop.permute.xlu0 %1019
      %1029 = vrot.lane.b32.xlu0 %v829, 28
      %v1030 = vpop.permute.xlu0 %1029
      %1031 = vrot.lane.b32.xlu0 %v832, 28
      %v1032 = vpop.permute.xlu0 %1031
      %1033 = vrot.lane.b32.xlu0 %v835, 28
      %v1034 = vpop.permute.xlu0 %1033
      %1035 = vrot.lane.b32.xlu0 %v838, 28
      %v1036 = vpop.permute.xlu0 %1035
      %1037 = vrot.lane.b32.xlu0 %v841, 28
      %v1038 = vpop.permute.xlu0 %1037
      %1039 = vrot.lane.b32.xlu0 %v844, 28
      %v1040 = vpop.permute.xlu0 %1039
      %1041 = vrot.lane.b32.xlu0 %v873, 28
      %v1042 = vpop.permute.xlu0 %1041
      %1043 = vrot.lane.b32.xlu0 %v881, 28
      %v1044 = vpop.permute.xlu0 %1043
      %1053 = vrot.lane.b32.xlu0 %v853, 32
      %v1054 = vpop.permute.xlu0 %1053
      %1055 = vrot.lane.b32.xlu0 %v856, 32
      %v1056 = vpop.permute.xlu0 %1055
      %1057 = vrot.lane.b32.xlu0 %v859, 32
      %v1058 = vpop.permute.xlu0 %1057
      %1059 = vrot.lane.b32.xlu0 %v862, 32
      %v1060 = vpop.permute.xlu0 %1059
      %1061 = vrot.lane.b32.xlu0 %v865, 32
      %v1062 = vpop.permute.xlu0 %1061
      %1063 = vrot.lane.b32.xlu0 %v868, 32
      %v1064 = vpop.permute.xlu0 %1063
      %1065 = vrot.lane.b32.xlu0 %v876, 32
      %v1066 = vpop.permute.xlu0 %1065
      %1067 = vrot.lane.b32.xlu0 %v884, 32
      %v1068 = vpop.permute.xlu0 %1067
      %v1077 = vsel %vm703, %v785, %v886
      %v1078 = vsel %vm703, %v787, %v888
      %v1079 = vsel %vm703, %v789, %v890
      %v1080 = vsel %vm703, %v791, %v892
      %v1081 = vsel %vm703, %v793, %v894
      %v1082 = vsel %vm703, %v795, %v896
      %v1083 = vsel %vm703, %v797, %v898
      %v1084 = vsel %vm703, %v799, %v900
      %v1085 = vsel %vm712, %v1077, %v910
      %v1086 = vsel %vm712, %v1078, %v912
      %v1087 = vsel %vm712, %v1079, %v914
      %v1088 = vsel %vm712, %v1080, %v916
      %v1089 = vsel %vm712, %v1081, %v918
      %v1090 = vsel %vm712, %v1082, %v920
      %v1091 = vsel %vm712, %v1083, %v922
      %v1092 = vsel %vm712, %v1084, %v924
      %v1093 = vsel %vm721, %v1085, %v934
      %v1094 = vsel %vm721, %v1086, %v936
      %v1095 = vsel %vm721, %v1087, %v938
      %v1096 = vsel %vm721, %v1088, %v940
      %v1097 = vsel %vm721, %v1089, %v942
      %v1098 = vsel %vm721, %v1090, %v944
      %v1099 = vsel %vm721, %v1091, %v946
      %v1100 = vsel %vm721, %v1092, %v948
      %v1101 = vsel %vm730, %v1093, %v958
      %v1102 = vsel %vm730, %v1094, %v960
      %v1103 = vsel %vm730, %v1095, %v962
      %v1104 = vsel %vm730, %v1096, %v964
      %v1105 = vsel %vm730, %v1097, %v966
      %v1106 = vsel %vm730, %v1098, %v968
      %v1107 = vsel %vm730, %v1099, %v970
      %v1108 = vsel %vm730, %v1100, %v972
      %v1109 = vsel %vm739, %v1101, %v982
      %v1110 = vsel %vm739, %v1102, %v984
      %v1111 = vsel %vm739, %v1103, %v986
      %v1112 = vsel %vm739, %v1104, %v988
      %v1113 = vsel %vm739, %v1105, %v990
      %v1114 = vsel %vm739, %v1106, %v992
      %v1115 = vsel %vm739, %v1107, %v994
      %v1116 = vsel %vm739, %v1108, %v996
      %v1117 = vsel %vm748, %v1109, %v1006
      %v1118 = vsel %vm748, %v1110, %v1008
      %v1119 = vsel %vm748, %v1111, %v1010
      %v1120 = vsel %vm748, %v1112, %v1012
      %v1121 = vsel %vm748, %v1113, %v1014
      %v1122 = vsel %vm748, %v1114, %v1016
      %v1123 = vsel %vm748, %v1115, %v1018
      %v1124 = vsel %vm748, %v1116, %v1020
      %v1125 = vsel %vm757, %v1117, %v1030
      %v1126 = vsel %vm757, %v1118, %v1032
      %v1127 = vsel %vm757, %v1119, %v1034
      %v1128 = vsel %vm757, %v1120, %v1036
      %v1129 = vsel %vm757, %v1121, %v1038
      %v1130 = vsel %vm757, %v1122, %v1040
      %v1131 = vsel %vm757, %v1123, %v1042
      %v1132 = vsel %vm757, %v1124, %v1044
      %v1133 = vsel %vm766, %v1125, %v1054
      %v1134 = vsel %vm766, %v1126, %v1056
      %v1135 = vsel %vm766, %v1127, %v1058
      %v1136 = vsel %vm766, %v1128, %v1060
      %v1137 = vsel %vm766, %v1129, %v1062
      %v1138 = vsel %vm766, %v1130, %v1064
      %v1139 = vsel %vm766, %v1131, %v1066
      %v1140 = vsel %vm766, %v1132, %v1068
      %s1141 = scalar_lea.vmem [#allocation2], 64
      %1142 = vst.msk [vmem:[%s1141] sm:$0xff] %vm775, %v1133
      %1143 = vst.msk [vmem:[%s1141 + $0x8] sm:$0xff] %vm775, %v1134
      %1144 = vst.msk [vmem:[%s1141 + $0x10] sm:$0xff] %vm775, %v1135
      %1145 = vst.msk [vmem:[%s1141 + $0x18] sm:$0xff] %vm775, %v1136
      %1146 = vst.msk [vmem:[%s1141 + $0x20] sm:$0xff] %vm775, %v1137
      %1147 = vst.msk [vmem:[%s1141 + $0x28] sm:$0xff] %vm775, %v1138
      %1148 = vst.msk [vmem:[%s1141 + $0x30] sm:$0xff] %vm775, %v1139
      %1149 = vst.msk [vmem:[%s1141 + $0x38] sm:$0xff] %vm775, %v1140
      %v1150 = vld [vmem:[%s371] sm:$0xff]
      %v1151 = vld [vmem:[%s371 + $0x8] sm:$0x3]
      %v1152 = vld [vmem:[%s371 + $0x10] sm:$0xff]
      %v1153 = vld [vmem:[%s371 + $0x18] sm:$0x3]
      %v1154 = vld [vmem:[%s371 + $0x20] sm:$0xff]
      %v1155 = vld [vmem:[%s371 + $0x28] sm:$0x3]
      %v1156 = vld [vmem:[%s371 + $0x30] sm:$0xff]
      %v1157 = vld [vmem:[%s371 + $0x38] sm:$0x3]
      %v1158 = vld [vmem:[%s371 + $0x40] sm:$0xff]
      %v1159 = vld [vmem:[%s371 + $0x48] sm:$0x3]
      %v1160 = vld [vmem:[%s371 + $0x50] sm:$0xff]
      %v1161 = vld [vmem:[%s371 + $0x58] sm:$0x3]
      %v1162 = vld [vmem:[%s371 + $0x60] sm:$0xff]
      %v1163 = vld [vmem:[%s371 + $0x68] sm:$0x3]
      %v1164 = vld [vmem:[%s371 + $0x70] sm:$0xff]
      %v1165 = vld [vmem:[%s371 + $0x78] sm:$0x3]
      %v1166 = vld [vmem:[%s371 + $0x80] sm:$0xff]
      %v1167 = vld [vmem:[%s371 + $0x88] sm:$0x3]
      %v1168 = vld [vmem:[%s371 + $0x90] sm:$0xff]
      %v1169 = vld [vmem:[%s371 + $0x98] sm:$0x3]
      %v1186 = vrot.slane %v1150, 1
      %v1187 = vrot.slane %v1151, 1
      %v1188 = vsel %vm445, %v1186, %v1187
      %v1189 = vrot.slane %v1152, 1
      %v1190 = vrot.slane %v1153, 1
      %v1191 = vsel %vm445, %v1189, %v1190
      %v1192 = vrot.slane %v1154, 1
      %v1193 = vrot.slane %v1155, 1
      %v1194 = vsel %vm445, %v1192, %v1193
      %v1195 = vrot.slane %v1156, 1
      %v1196 = vrot.slane %v1157, 1
      %v1197 = vsel %vm445, %v1195, %v1196
      %v1198 = vrot.slane %v1158, 1
      %v1199 = vrot.slane %v1159, 1
      %v1200 = vsel %vm445, %v1198, %v1199
      %v1201 = vrot.slane %v1160, 1
      %v1202 = vrot.slane %v1161, 1
      %v1203 = vsel %vm445, %v1201, %v1202
      %v1204 = vrot.slane %v1162, 1
      %v1205 = vrot.slane %v1163, 1
      %v1206 = vsel %vm445, %v1204, %v1205
      %v1207 = vrot.slane %v1164, 1
      %v1208 = vrot.slane %v1165, 1
      %v1209 = vsel %vm445, %v1207, %v1208
      %v1210 = vrot.slane %v1150, 2
      %v1211 = vrot.slane %v1151, 2
      %v1212 = vsel %vm470, %v1210, %v1211
      %v1213 = vrot.slane %v1152, 2
      %v1214 = vrot.slane %v1153, 2
      %v1215 = vsel %vm470, %v1213, %v1214
      %v1216 = vrot.slane %v1154, 2
      %v1217 = vrot.slane %v1155, 2
      %v1218 = vsel %vm470, %v1216, %v1217
      %v1219 = vrot.slane %v1156, 2
      %v1220 = vrot.slane %v1157, 2
      %v1221 = vsel %vm470, %v1219, %v1220
      %v1222 = vrot.slane %v1158, 2
      %v1223 = vrot.slane %v1159, 2
      %v1224 = vsel %vm470, %v1222, %v1223
      %v1225 = vrot.slane %v1160, 2
      %v1226 = vrot.slane %v1161, 2
      %v1227 = vsel %vm470, %v1225, %v1226
      %v1228 = vrot.slane %v1162, 2
      %v1229 = vrot.slane %v1163, 2
      %v1230 = vsel %vm470, %v1228, %v1229
      %v1231 = vrot.slane %v1164, 2
      %v1232 = vrot.slane %v1165, 2
      %v1233 = vsel %vm470, %v1231, %v1232
      %v1236 = vrot.slane %v1166, 1
      %v1237 = vrot.slane %v1167, 1
      %v1238 = vsel %vm445, %v1236, %v1237
      %v1239 = vrot.slane %v1166, 2
      %v1240 = vrot.slane %v1167, 2
      %v1241 = vsel %vm470, %v1239, %v1240
      %v1244 = vrot.slane %v1168, 1
      %v1245 = vrot.slane %v1169, 1
      %v1246 = vsel %vm445, %v1244, %v1245
      %v1247 = vrot.slane %v1168, 2
      %v1248 = vrot.slane %v1169, 2
      %v1249 = vsel %vm470, %v1247, %v1248
      %1250 = vrot.lane.b32.xlu0 %v1188, 4
      %v1251 = vpop.permute.xlu0 %1250
      %1252 = vrot.lane.b32.xlu0 %v1191, 4
      %v1253 = vpop.permute.xlu0 %1252
      %1254 = vrot.lane.b32.xlu0 %v1194, 4
      %v1255 = vpop.permute.xlu0 %1254
      %1256 = vrot.lane.b32.xlu0 %v1197, 4
      %v1257 = vpop.permute.xlu0 %1256
      %1258 = vrot.lane.b32.xlu0 %v1200, 4
      %v1259 = vpop.permute.xlu0 %1258
      %1260 = vrot.lane.b32.xlu0 %v1203, 4
      %v1261 = vpop.permute.xlu0 %1260
      %1262 = vrot.lane.b32.xlu0 %v1206, 4
      %v1263 = vpop.permute.xlu0 %1262
      %1264 = vrot.lane.b32.xlu0 %v1209, 4
      %v1265 = vpop.permute.xlu0 %1264
      %1274 = vrot.lane.b32.xlu0 %v1212, 8
      %v1275 = vpop.permute.xlu0 %1274
      %1276 = vrot.lane.b32.xlu0 %v1215, 8
      %v1277 = vpop.permute.xlu0 %1276
      %1278 = vrot.lane.b32.xlu0 %v1218, 8
      %v1279 = vpop.permute.xlu0 %1278
      %1280 = vrot.lane.b32.xlu0 %v1221, 8
      %v1281 = vpop.permute.xlu0 %1280
      %1282 = vrot.lane.b32.xlu0 %v1224, 8
      %v1283 = vpop.permute.xlu0 %1282
      %1284 = vrot.lane.b32.xlu0 %v1227, 8
      %v1285 = vpop.permute.xlu0 %1284
      %1286 = vrot.lane.b32.xlu0 %v1230, 8
      %v1287 = vpop.permute.xlu0 %1286
      %1288 = vrot.lane.b32.xlu0 %v1233, 8
      %v1289 = vpop.permute.xlu0 %1288
      %1298 = vrot.lane.b32.xlu0 %v1152, 12
      %v1299 = vpop.permute.xlu0 %1298
      %1300 = vrot.lane.b32.xlu0 %v1154, 12
      %v1301 = vpop.permute.xlu0 %1300
      %1302 = vrot.lane.b32.xlu0 %v1156, 12
      %v1303 = vpop.permute.xlu0 %1302
      %1304 = vrot.lane.b32.xlu0 %v1158, 12
      %v1305 = vpop.permute.xlu0 %1304
      %1306 = vrot.lane.b32.xlu0 %v1160, 12
      %v1307 = vpop.permute.xlu0 %1306
      %1308 = vrot.lane.b32.xlu0 %v1162, 12
      %v1309 = vpop.permute.xlu0 %1308
      %1310 = vrot.lane.b32.xlu0 %v1164, 12
      %v1311 = vpop.permute.xlu0 %1310
      %1312 = vrot.lane.b32.xlu0 %v1166, 12
      %v1313 = vpop.permute.xlu0 %1312
      %1322 = vrot.lane.b32.xlu0 %v1191, 16
      %v1323 = vpop.permute.xlu0 %1322
      %1324 = vrot.lane.b32.xlu0 %v1194, 16
      %v1325 = vpop.permute.xlu0 %1324
      %1326 = vrot.lane.b32.xlu0 %v1197, 16
      %v1327 = vpop.permute.xlu0 %1326
      %1328 = vrot.lane.b32.xlu0 %v1200, 16
      %v1329 = vpop.permute.xlu0 %1328
      %1330 = vrot.lane.b32.xlu0 %v1203, 16
      %v1331 = vpop.permute.xlu0 %1330
      %1332 = vrot.lane.b32.xlu0 %v1206, 16
      %v1333 = vpop.permute.xlu0 %1332
      %1334 = vrot.lane.b32.xlu0 %v1209, 16
      %v1335 = vpop.permute.xlu0 %1334
      %1336 = vrot.lane.b32.xlu0 %v1238, 16
      %v1337 = vpop.permute.xlu0 %1336
      %1346 = vrot.lane.b32.xlu0 %v1215, 20
      %v1347 = vpop.permute.xlu0 %1346
      %1348 = vrot.lane.b32.xlu0 %v1218, 20
      %v1349 = vpop.permute.xlu0 %1348
      %1350 = vrot.lane.b32.xlu0 %v1221, 20
      %v1351 = vpop.permute.xlu0 %1350
      %1352 = vrot.lane.b32.xlu0 %v1224, 20
      %v1353 = vpop.permute.xlu0 %1352
      %1354 = vrot.lane.b32.xlu0 %v1227, 20
      %v1355 = vpop.permute.xlu0 %1354
      %1356 = vrot.lane.b32.xlu0 %v1230, 20
      %v1357 = vpop.permute.xlu0 %1356
      %1358 = vrot.lane.b32.xlu0 %v1233, 20
      %v1359 = vpop.permute.xlu0 %1358
      %1360 = vrot.lane.b32.xlu0 %v1241, 20
      %v1361 = vpop.permute.xlu0 %1360
      %1370 = vrot.lane.b32.xlu0 %v1154, 24
      %v1371 = vpop.permute.xlu0 %1370
      %1372 = vrot.lane.b32.xlu0 %v1156, 24
      %v1373 = vpop.permute.xlu0 %1372
      %1374 = vrot.lane.b32.xlu0 %v1158, 24
      %v1375 = vpop.permute.xlu0 %1374
      %1376 = vrot.lane.b32.xlu0 %v1160, 24
      %v1377 = vpop.permute.xlu0 %1376
      %1378 = vrot.lane.b32.xlu0 %v1162, 24
      %v1379 = vpop.permute.xlu0 %1378
      %1380 = vrot.lane.b32.xlu0 %v1164, 24
      %v1381 = vpop.permute.xlu0 %1380
      %1382 = vrot.lane.b32.xlu0 %v1166, 24
      %v1383 = vpop.permute.xlu0 %1382
      %1384 = vrot.lane.b32.xlu0 %v1168, 24
      %v1385 = vpop.permute.xlu0 %1384
      %1394 = vrot.lane.b32.xlu0 %v1194, 28
      %v1395 = vpop.permute.xlu0 %1394
      %1396 = vrot.lane.b32.xlu0 %v1197, 28
      %v1397 = vpop.permute.xlu0 %1396
      %1398 = vrot.lane.b32.xlu0 %v1200, 28
      %v1399 = vpop.permute.xlu0 %1398
      %1400 = vrot.lane.b32.xlu0 %v1203, 28
      %v1401 = vpop.permute.xlu0 %1400
      %1402 = vrot.lane.b32.xlu0 %v1206, 28
      %v1403 = vpop.permute.xlu0 %1402
      %1404 = vrot.lane.b32.xlu0 %v1209, 28
      %v1405 = vpop.permute.xlu0 %1404
      %1406 = vrot.lane.b32.xlu0 %v1238, 28
      %v1407 = vpop.permute.xlu0 %1406
      %1408 = vrot.lane.b32.xlu0 %v1246, 28
      %v1409 = vpop.permute.xlu0 %1408
      %1418 = vrot.lane.b32.xlu0 %v1218, 32
      %v1419 = vpop.permute.xlu0 %1418
      %1420 = vrot.lane.b32.xlu0 %v1221, 32
      %v1421 = vpop.permute.xlu0 %1420
      %1422 = vrot.lane.b32.xlu0 %v1224, 32
      %v1423 = vpop.permute.xlu0 %1422
      %1424 = vrot.lane.b32.xlu0 %v1227, 32
      %v1425 = vpop.permute.xlu0 %1424
      %1426 = vrot.lane.b32.xlu0 %v1230, 32
      %v1427 = vpop.permute.xlu0 %1426
      %1428 = vrot.lane.b32.xlu0 %v1233, 32
      %v1429 = vpop.permute.xlu0 %1428
      %1430 = vrot.lane.b32.xlu0 %v1241, 32
      %v1431 = vpop.permute.xlu0 %1430
      %1432 = vrot.lane.b32.xlu0 %v1249, 32
      %v1433 = vpop.permute.xlu0 %1432
      %v1442 = vsel %vm703, %v1150, %v1251
      %v1443 = vsel %vm703, %v1152, %v1253
      %v1444 = vsel %vm703, %v1154, %v1255
      %v1445 = vsel %vm703, %v1156, %v1257
      %v1446 = vsel %vm703, %v1158, %v1259
      %v1447 = vsel %vm703, %v1160, %v1261
      %v1448 = vsel %vm703, %v1162, %v1263
      %v1449 = vsel %vm703, %v1164, %v1265
      %v1450 = vsel %vm712, %v1442, %v1275
      %v1451 = vsel %vm712, %v1443, %v1277
      %v1452 = vsel %vm712, %v1444, %v1279
      %v1453 = vsel %vm712, %v1445, %v1281
      %v1454 = vsel %vm712, %v1446, %v1283
      %v1455 = vsel %vm712, %v1447, %v1285
      %v1456 = vsel %vm712, %v1448, %v1287
      %v1457 = vsel %vm712, %v1449, %v1289
      %v1458 = vsel %vm721, %v1450, %v1299
      %v1459 = vsel %vm721, %v1451, %v1301
      %v1460 = vsel %vm721, %v1452, %v1303
      %v1461 = vsel %vm721, %v1453, %v1305
      %v1462 = vsel %vm721, %v1454, %v1307
      %v1463 = vsel %vm721, %v1455, %v1309
      %v1464 = vsel %vm721, %v1456, %v1311
      %v1465 = vsel %vm721, %v1457, %v1313
      %v1466 = vsel %vm730, %v1458, %v1323
      %v1467 = vsel %vm730, %v1459, %v1325
      %v1468 = vsel %vm730, %v1460, %v1327
      %v1469 = vsel %vm730, %v1461, %v1329
      %v1470 = vsel %vm730, %v1462, %v1331
      %v1471 = vsel %vm730, %v1463, %v1333
      %v1472 = vsel %vm730, %v1464, %v1335
      %v1473 = vsel %vm730, %v1465, %v1337
      %v1474 = vsel %vm739, %v1466, %v1347
      %v1475 = vsel %vm739, %v1467, %v1349
      %v1476 = vsel %vm739, %v1468, %v1351
      %v1477 = vsel %vm739, %v1469, %v1353
      %v1478 = vsel %vm739, %v1470, %v1355
      %v1479 = vsel %vm739, %v1471, %v1357
      %v1480 = vsel %vm739, %v1472, %v1359
      %v1481 = vsel %vm739, %v1473, %v1361
      %v1482 = vsel %vm748, %v1474, %v1371
      %v1483 = vsel %vm748, %v1475, %v1373
      %v1484 = vsel %vm748, %v1476, %v1375
      %v1485 = vsel %vm748, %v1477, %v1377
      %v1486 = vsel %vm748, %v1478, %v1379
      %v1487 = vsel %vm748, %v1479, %v1381
      %v1488 = vsel %vm748, %v1480, %v1383
      %v1489 = vsel %vm748, %v1481, %v1385
      %v1490 = vsel %vm757, %v1482, %v1395
      %v1491 = vsel %vm757, %v1483, %v1397
      %v1492 = vsel %vm757, %v1484, %v1399
      %v1493 = vsel %vm757, %v1485, %v1401
      %v1494 = vsel %vm757, %v1486, %v1403
      %v1495 = vsel %vm757, %v1487, %v1405
      %v1496 = vsel %vm757, %v1488, %v1407
      %v1497 = vsel %vm757, %v1489, %v1409
      %v1498 = vsel %vm766, %v1490, %v1419
      %v1499 = vsel %vm766, %v1491, %v1421
      %v1500 = vsel %vm766, %v1492, %v1423
      %v1501 = vsel %vm766, %v1493, %v1425
      %v1502 = vsel %vm766, %v1494, %v1427
      %v1503 = vsel %vm766, %v1495, %v1429
      %v1504 = vsel %vm766, %v1496, %v1431
      %v1505 = vsel %vm766, %v1497, %v1433
      %s1506 = scalar_lea.vmem [#allocation2], 128
      %1507 = vst.msk [vmem:[%s1506] sm:$0xff] %vm775, %v1498
      %1508 = vst.msk [vmem:[%s1506 + $0x8] sm:$0xff] %vm775, %v1499
      %1509 = vst.msk [vmem:[%s1506 + $0x10] sm:$0xff] %vm775, %v1500
      %1510 = vst.msk [vmem:[%s1506 + $0x18] sm:$0xff] %vm775, %v1501
      %1511 = vst.msk [vmem:[%s1506 + $0x20] sm:$0xff] %vm775, %v1502
      %1512 = vst.msk [vmem:[%s1506 + $0x28] sm:$0xff] %vm775, %v1503
      %1513 = vst.msk [vmem:[%s1506 + $0x30] sm:$0xff] %vm775, %v1504
      %1514 = vst.msk [vmem:[%s1506 + $0x38] sm:$0xff] %vm775, %v1505
      %v1515 = vld [vmem:[%s385] sm:$0xff]
      %v1516 = vld [vmem:[%s385 + $0x8] sm:$0x3]
      %v1517 = vld [vmem:[%s385 + $0x10] sm:$0xff]
      %v1518 = vld [vmem:[%s385 + $0x18] sm:$0x3]
      %v1519 = vld [vmem:[%s385 + $0x20] sm:$0xff]
      %v1520 = vld [vmem:[%s385 + $0x28] sm:$0x3]
      %v1521 = vld [vmem:[%s385 + $0x30] sm:$0xff]
      %v1522 = vld [vmem:[%s385 + $0x38] sm:$0x3]
      %v1523 = vld [vmem:[%s385 + $0x40] sm:$0xff]
      %v1524 = vld [vmem:[%s385 + $0x48] sm:$0x3]
      %v1525 = vld [vmem:[%s385 + $0x50] sm:$0xff]
      %v1526 = vld [vmem:[%s385 + $0x58] sm:$0x3]
      %v1527 = vld [vmem:[%s385 + $0x60] sm:$0xff]
      %v1528 = vld [vmem:[%s385 + $0x68] sm:$0x3]
      %v1529 = vld [vmem:[%s385 + $0x70] sm:$0xff]
      %v1530 = vld [vmem:[%s385 + $0x78] sm:$0x3]
      %v1531 = vld [vmem:[%s385 + $0x80] sm:$0xff]
      %v1532 = vld [vmem:[%s385 + $0x88] sm:$0x3]
      %v1533 = vld [vmem:[%s385 + $0x90] sm:$0xff]
      %v1534 = vld [vmem:[%s385 + $0x98] sm:$0x3]
      %v1551 = vrot.slane %v1515, 1
      %v1552 = vrot.slane %v1516, 1
      %v1553 = vsel %vm445, %v1551, %v1552
      %v1554 = vrot.slane %v1517, 1
      %v1555 = vrot.slane %v1518, 1
      %v1556 = vsel %vm445, %v1554, %v1555
      %v1557 = vrot.slane %v1519, 1
      %v1558 = vrot.slane %v1520, 1
      %v1559 = vsel %vm445, %v1557, %v1558
      %v1560 = vrot.slane %v1521, 1
      %v1561 = vrot.slane %v1522, 1
      %v1562 = vsel %vm445, %v1560, %v1561
      %v1563 = vrot.slane %v1523, 1
      %v1564 = vrot.slane %v1524, 1
      %v1565 = vsel %vm445, %v1563, %v1564
      %v1566 = vrot.slane %v1525, 1
      %v1567 = vrot.slane %v1526, 1
      %v1568 = vsel %vm445, %v1566, %v1567
      %v1569 = vrot.slane %v1527, 1
      %v1570 = vrot.slane %v1528, 1
      %v1571 = vsel %vm445, %v1569, %v1570
      %v1572 = vrot.slane %v1529, 1
      %v1573 = vrot.slane %v1530, 1
      %v1574 = vsel %vm445, %v1572, %v1573
      %v1575 = vrot.slane %v1515, 2
      %v1576 = vrot.slane %v1516, 2
      %v1577 = vsel %vm470, %v1575, %v1576
      %v1578 = vrot.slane %v1517, 2
      %v1579 = vrot.slane %v1518, 2
      %v1580 = vsel %vm470, %v1578, %v1579
      %v1581 = vrot.slane %v1519, 2
      %v1582 = vrot.slane %v1520, 2
      %v1583 = vsel %vm470, %v1581, %v1582
      %v1584 = vrot.slane %v1521, 2
      %v1585 = vrot.slane %v1522, 2
      %v1586 = vsel %vm470, %v1584, %v1585
      %v1587 = vrot.slane %v1523, 2
      %v1588 = vrot.slane %v1524, 2
      %v1589 = vsel %vm470, %v1587, %v1588
      %v1590 = vrot.slane %v1525, 2
      %v1591 = vrot.slane %v1526, 2
      %v1592 = vsel %vm470, %v1590, %v1591
      %v1593 = vrot.slane %v1527, 2
      %v1594 = vrot.slane %v1528, 2
      %v1595 = vsel %vm470, %v1593, %v1594
      %v1596 = vrot.slane %v1529, 2
      %v1597 = vrot.slane %v1530, 2
      %v1598 = vsel %vm470, %v1596, %v1597
      %v1601 = vrot.slane %v1531, 1
      %v1602 = vrot.slane %v1532, 1
      %v1603 = vsel %vm445, %v1601, %v1602
      %v1604 = vrot.slane %v1531, 2
      %v1605 = vrot.slane %v1532, 2
      %v1606 = vsel %vm470, %v1604, %v1605
      %v1609 = vrot.slane %v1533, 1
      %v1610 = vrot.slane %v1534, 1
      %v1611 = vsel %vm445, %v1609, %v1610
      %v1612 = vrot.slane %v1533, 2
      %v1613 = vrot.slane %v1534, 2
      %v1614 = vsel %vm470, %v1612, %v1613
      %1615 = vrot.lane.b32.xlu0 %v1553, 4
      %v1616 = vpop.permute.xlu0 %1615
      %1617 = vrot.lane.b32.xlu0 %v1556, 4
      %v1618 = vpop.permute.xlu0 %1617
      %1619 = vrot.lane.b32.xlu0 %v1559, 4
      %v1620 = vpop.permute.xlu0 %1619
      %1621 = vrot.lane.b32.xlu0 %v1562, 4
      %v1622 = vpop.permute.xlu0 %1621
      %1623 = vrot.lane.b32.xlu0 %v1565, 4
      %v1624 = vpop.permute.xlu0 %1623
      %1625 = vrot.lane.b32.xlu0 %v1568, 4
      %v1626 = vpop.permute.xlu0 %1625
      %1627 = vrot.lane.b32.xlu0 %v1571, 4
      %v1628 = vpop.permute.xlu0 %1627
      %1629 = vrot.lane.b32.xlu0 %v1574, 4
      %v1630 = vpop.permute.xlu0 %1629
      %1639 = vrot.lane.b32.xlu0 %v1577, 8
      %v1640 = vpop.permute.xlu0 %1639
      %1641 = vrot.lane.b32.xlu0 %v1580, 8
      %v1642 = vpop.permute.xlu0 %1641
      %1643 = vrot.lane.b32.xlu0 %v1583, 8
      %v1644 = vpop.permute.xlu0 %1643
      %1645 = vrot.lane.b32.xlu0 %v1586, 8
      %v1646 = vpop.permute.xlu0 %1645
      %1647 = vrot.lane.b32.xlu0 %v1589, 8
      %v1648 = vpop.permute.xlu0 %1647
      %1649 = vrot.lane.b32.xlu0 %v1592, 8
      %v1650 = vpop.permute.xlu0 %1649
      %1651 = vrot.lane.b32.xlu0 %v1595, 8
      %v1652 = vpop.permute.xlu0 %1651
      %1653 = vrot.lane.b32.xlu0 %v1598, 8
      %v1654 = vpop.permute.xlu0 %1653
      %1663 = vrot.lane.b32.xlu0 %v1517, 12
      %v1664 = vpop.permute.xlu0 %1663
      %1665 = vrot.lane.b32.xlu0 %v1519, 12
      %v1666 = vpop.permute.xlu0 %1665
      %1667 = vrot.lane.b32.xlu0 %v1521, 12
      %v1668 = vpop.permute.xlu0 %1667
      %1669 = vrot.lane.b32.xlu0 %v1523, 12
      %v1670 = vpop.permute.xlu0 %1669
      %1671 = vrot.lane.b32.xlu0 %v1525, 12
      %v1672 = vpop.permute.xlu0 %1671
      %1673 = vrot.lane.b32.xlu0 %v1527, 12
      %v1674 = vpop.permute.xlu0 %1673
      %1675 = vrot.lane.b32.xlu0 %v1529, 12
      %v1676 = vpop.permute.xlu0 %1675
      %1677 = vrot.lane.b32.xlu0 %v1531, 12
      %v1678 = vpop.permute.xlu0 %1677
      %1687 = vrot.lane.b32.xlu0 %v1556, 16
      %v1688 = vpop.permute.xlu0 %1687
      %1689 = vrot.lane.b32.xlu0 %v1559, 16
      %v1690 = vpop.permute.xlu0 %1689
      %1691 = vrot.lane.b32.xlu0 %v1562, 16
      %v1692 = vpop.permute.xlu0 %1691
      %1693 = vrot.lane.b32.xlu0 %v1565, 16
      %v1694 = vpop.permute.xlu0 %1693
      %1695 = vrot.lane.b32.xlu0 %v1568, 16
      %v1696 = vpop.permute.xlu0 %1695
      %1697 = vrot.lane.b32.xlu0 %v1571, 16
      %v1698 = vpop.permute.xlu0 %1697
      %1699 = vrot.lane.b32.xlu0 %v1574, 16
      %v1700 = vpop.permute.xlu0 %1699
      %1701 = vrot.lane.b32.xlu0 %v1603, 16
      %v1702 = vpop.permute.xlu0 %1701
      %1711 = vrot.lane.b32.xlu0 %v1580, 20
      %v1712 = vpop.permute.xlu0 %1711
      %1713 = vrot.lane.b32.xlu0 %v1583, 20
      %v1714 = vpop.permute.xlu0 %1713
      %1715 = vrot.lane.b32.xlu0 %v1586, 20
      %v1716 = vpop.permute.xlu0 %1715
      %1717 = vrot.lane.b32.xlu0 %v1589, 20
      %v1718 = vpop.permute.xlu0 %1717
      %1719 = vrot.lane.b32.xlu0 %v1592, 20
      %v1720 = vpop.permute.xlu0 %1719
      %1721 = vrot.lane.b32.xlu0 %v1595, 20
      %v1722 = vpop.permute.xlu0 %1721
      %1723 = vrot.lane.b32.xlu0 %v1598, 20
      %v1724 = vpop.permute.xlu0 %1723
      %1725 = vrot.lane.b32.xlu0 %v1606, 20
      %v1726 = vpop.permute.xlu0 %1725
      %1735 = vrot.lane.b32.xlu0 %v1519, 24
      %v1736 = vpop.permute.xlu0 %1735
      %1737 = vrot.lane.b32.xlu0 %v1521, 24
      %v1738 = vpop.permute.xlu0 %1737
      %1739 = vrot.lane.b32.xlu0 %v1523, 24
      %v1740 = vpop.permute.xlu0 %1739
      %1741 = vrot.lane.b32.xlu0 %v1525, 24
      %v1742 = vpop.permute.xlu0 %1741
      %1743 = vrot.lane.b32.xlu0 %v1527, 24
      %v1744 = vpop.permute.xlu0 %1743
      %1745 = vrot.lane.b32.xlu0 %v1529, 24
      %v1746 = vpop.permute.xlu0 %1745
      %1747 = vrot.lane.b32.xlu0 %v1531, 24
      %v1748 = vpop.permute.xlu0 %1747
      %1749 = vrot.lane.b32.xlu0 %v1533, 24
      %v1750 = vpop.permute.xlu0 %1749
      %1759 = vrot.lane.b32.xlu0 %v1559, 28
      %v1760 = vpop.permute.xlu0 %1759
      %1761 = vrot.lane.b32.xlu0 %v1562, 28
      %v1762 = vpop.permute.xlu0 %1761
      %1763 = vrot.lane.b32.xlu0 %v1565, 28
      %v1764 = vpop.permute.xlu0 %1763
      %1765 = vrot.lane.b32.xlu0 %v1568, 28
      %v1766 = vpop.permute.xlu0 %1765
      %1767 = vrot.lane.b32.xlu0 %v1571, 28
      %v1768 = vpop.permute.xlu0 %1767
      %1769 = vrot.lane.b32.xlu0 %v1574, 28
      %v1770 = vpop.permute.xlu0 %1769
      %1771 = vrot.lane.b32.xlu0 %v1603, 28
      %v1772 = vpop.permute.xlu0 %1771
      %1773 = vrot.lane.b32.xlu0 %v1611, 28
      %v1774 = vpop.permute.xlu0 %1773
      %1783 = vrot.lane.b32.xlu0 %v1583, 32
      %v1784 = vpop.permute.xlu0 %1783
      %1785 = vrot.lane.b32.xlu0 %v1586, 32
      %v1786 = vpop.permute.xlu0 %1785
      %1787 = vrot.lane.b32.xlu0 %v1589, 32
      %v1788 = vpop.permute.xlu0 %1787
      %1789 = vrot.lane.b32.xlu0 %v1592, 32
      %v1790 = vpop.permute.xlu0 %1789
      %1791 = vrot.lane.b32.xlu0 %v1595, 32
      %v1792 = vpop.permute.xlu0 %1791
      %1793 = vrot.lane.b32.xlu0 %v1598, 32
      %v1794 = vpop.permute.xlu0 %1793
      %1795 = vrot.lane.b32.xlu0 %v1606, 32
      %v1796 = vpop.permute.xlu0 %1795
      %1797 = vrot.lane.b32.xlu0 %v1614, 32
      %v1798 = vpop.permute.xlu0 %1797
      %v1807 = vsel %vm703, %v1515, %v1616
      %v1808 = vsel %vm703, %v1517, %v1618
      %v1809 = vsel %vm703, %v1519, %v1620
      %v1810 = vsel %vm703, %v1521, %v1622
      %v1811 = vsel %vm703, %v1523, %v1624
      %v1812 = vsel %vm703, %v1525, %v1626
      %v1813 = vsel %vm703, %v1527, %v1628
      %v1814 = vsel %vm703, %v1529, %v1630
      %v1815 = vsel %vm712, %v1807, %v1640
      %v1816 = vsel %vm712, %v1808, %v1642
      %v1817 = vsel %vm712, %v1809, %v1644
      %v1818 = vsel %vm712, %v1810, %v1646
      %v1819 = vsel %vm712, %v1811, %v1648
      %v1820 = vsel %vm712, %v1812, %v1650
      %v1821 = vsel %vm712, %v1813, %v1652
      %v1822 = vsel %vm712, %v1814, %v1654
      %v1823 = vsel %vm721, %v1815, %v1664
      %v1824 = vsel %vm721, %v1816, %v1666
      %v1825 = vsel %vm721, %v1817, %v1668
      %v1826 = vsel %vm721, %v1818, %v1670
      %v1827 = vsel %vm721, %v1819, %v1672
      %v1828 = vsel %vm721, %v1820, %v1674
      %v1829 = vsel %vm721, %v1821, %v1676
      %v1830 = vsel %vm721, %v1822, %v1678
      %v1831 = vsel %vm730, %v1823, %v1688
      %v1832 = vsel %vm730, %v1824, %v1690
      %v1833 = vsel %vm730, %v1825, %v1692
      %v1834 = vsel %vm730, %v1826, %v1694
      %v1835 = vsel %vm730, %v1827, %v1696
      %v1836 = vsel %vm730, %v1828, %v1698
      %v1837 = vsel %vm730, %v1829, %v1700
      %v1838 = vsel %vm730, %v1830, %v1702
      %v1839 = vsel %vm739, %v1831, %v1712
      %v1840 = vsel %vm739, %v1832, %v1714
      %v1841 = vsel %vm739, %v1833, %v1716
      %v1842 = vsel %vm739, %v1834, %v1718
      %v1843 = vsel %vm739, %v1835, %v1720
      %v1844 = vsel %vm739, %v1836, %v1722
      %v1845 = vsel %vm739, %v1837, %v1724
      %v1846 = vsel %vm739, %v1838, %v1726
      %v1847 = vsel %vm748, %v1839, %v1736
      %v1848 = vsel %vm748, %v1840, %v1738
      %v1849 = vsel %vm748, %v1841, %v1740
      %v1850 = vsel %vm748, %v1842, %v1742
      %v1851 = vsel %vm748, %v1843, %v1744
      %v1852 = vsel %vm748, %v1844, %v1746
      %v1853 = vsel %vm748, %v1845, %v1748
      %v1854 = vsel %vm748, %v1846, %v1750
      %v1855 = vsel %vm757, %v1847, %v1760
      %v1856 = vsel %vm757, %v1848, %v1762
      %v1857 = vsel %vm757, %v1849, %v1764
      %v1858 = vsel %vm757, %v1850, %v1766
      %v1859 = vsel %vm757, %v1851, %v1768
      %v1860 = vsel %vm757, %v1852, %v1770
      %v1861 = vsel %vm757, %v1853, %v1772
      %v1862 = vsel %vm757, %v1854, %v1774
      %v1863 = vsel %vm766, %v1855, %v1784
      %v1864 = vsel %vm766, %v1856, %v1786
      %v1865 = vsel %vm766, %v1857, %v1788
      %v1866 = vsel %vm766, %v1858, %v1790
      %v1867 = vsel %vm766, %v1859, %v1792
      %v1868 = vsel %vm766, %v1860, %v1794
      %v1869 = vsel %vm766, %v1861, %v1796
      %v1870 = vsel %vm766, %v1862, %v1798
      %s1871 = scalar_lea.vmem [#allocation2], 192
      %1872 = vst.msk [vmem:[%s1871] sm:$0xff] %vm775, %v1863
      %1873 = vst.msk [vmem:[%s1871 + $0x8] sm:$0xff] %vm775, %v1864
      %1874 = vst.msk [vmem:[%s1871 + $0x10] sm:$0xff] %vm775, %v1865
      %1875 = vst.msk [vmem:[%s1871 + $0x18] sm:$0xff] %vm775, %v1866
      %1876 = vst.msk [vmem:[%s1871 + $0x20] sm:$0xff] %vm775, %v1867
      %1877 = vst.msk [vmem:[%s1871 + $0x28] sm:$0xff] %vm775, %v1868
      %1878 = vst.msk [vmem:[%s1871 + $0x30] sm:$0xff] %vm775, %v1869
      %1879 = vst.msk [vmem:[%s1871 + $0x38] sm:$0xff] %vm775, %v1870
      %v1880 = vld [vmem:[%s4] sm:$0xff]
      %v1881 = vld [vmem:[%s4 + $0x8] sm:$0xff]
      %v1882 = vld [vmem:[%s4 + $0x10] sm:$0xff]
      %v1883 = vld [vmem:[%s4 + $0x18] sm:$0xff]
      %v1884 = vld [vmem:[%s4 + $0x20] sm:$0xf]
      %s1885 = scalar_lea.vmem %s4, 40
      %v1886 = vld [vmem:[%s1885] sm:$0xff]
      %v1887 = vld [vmem:[%s1885 + $0x8] sm:$0xff]
      %v1888 = vld [vmem:[%s1885 + $0x10] sm:$0xff]
      %v1889 = vld [vmem:[%s1885 + $0x18] sm:$0xff]
      %v1890 = vld [vmem:[%s1885 + $0x20] sm:$0xf]
      %s1891 = scalar_lea.vmem %s4, 80
      %v1892 = vld [vmem:[%s1891] sm:$0xff]
      %v1893 = vld [vmem:[%s1891 + $0x8] sm:$0xff]
      %v1894 = vld [vmem:[%s1891 + $0x10] sm:$0xff]
      %v1895 = vld [vmem:[%s1891 + $0x18] sm:$0xff]
      %v1896 = vld [vmem:[%s1891 + $0x20] sm:$0xf]
      %s1897 = scalar_lea.vmem %s4, 120
      %v1898 = vld [vmem:[%s1897] sm:$0xff]
      %v1899 = vld [vmem:[%s1897 + $0x8] sm:$0xff]
      %v1900 = vld [vmem:[%s1897 + $0x10] sm:$0xff]
      %v1901 = vld [vmem:[%s1897 + $0x18] sm:$0xff]
      %v1902 = vld [vmem:[%s1897 + $0x20] sm:$0xf]
      %v1903 = vld [vmem:[#allocation2] sm:$0xff]
      %v1904 = vld [vmem:[#allocation2 + $0x8] sm:$0xff]
      %v1905 = vld [vmem:[#allocation2 + $0x10] sm:$0xff]
      %v1906 = vld [vmem:[#allocation2 + $0x18] sm:$0xff]
      %v1907 = vld [vmem:[#allocation2 + $0x20] sm:$0xff]
      %v1908 = vld [vmem:[#allocation2 + $0x28] sm:$0xff]
      %v1909 = vld [vmem:[#allocation2 + $0x30] sm:$0xff]
      %v1910 = vld [vmem:[#allocation2 + $0x38] sm:$0xff]
      %v1911 = vld [vmem:[%s1141] sm:$0xff]
      %v1912 = vld [vmem:[%s1141 + $0x8] sm:$0xff]
      %v1913 = vld [vmem:[%s1141 + $0x10] sm:$0xff]
      %v1914 = vld [vmem:[%s1141 + $0x18] sm:$0xff]
      %v1915 = vld [vmem:[%s1141 + $0x20] sm:$0xff]
      %v1916 = vld [vmem:[%s1141 + $0x28] sm:$0xff]
      %v1917 = vld [vmem:[%s1141 + $0x30] sm:$0xff]
      %v1918 = vld [vmem:[%s1141 + $0x38] sm:$0xff]
      %v1919 = vld [vmem:[%s1506] sm:$0xff]
      %v1920 = vld [vmem:[%s1506 + $0x8] sm:$0xff]
      %v1921 = vld [vmem:[%s1506 + $0x10] sm:$0xff]
      %v1922 = vld [vmem:[%s1506 + $0x18] sm:$0xff]
      %v1923 = vld [vmem:[%s1506 + $0x20] sm:$0xff]
      %v1924 = vld [vmem:[%s1506 + $0x28] sm:$0xff]
      %v1925 = vld [vmem:[%s1506 + $0x30] sm:$0xff]
      %v1926 = vld [vmem:[%s1506 + $0x38] sm:$0xff]
      %v1928 = vsel %vm775, %v1911, 0
      %v1931 = vsel %vm775, %v1912, 0
      %v1934 = vsel %vm775, %v1913, 0
      %v1937 = vsel %vm775, %v1914, 0
      %v1940 = vsel %vm775, %v1915, 0
      %v1943 = vsel %vm775, %v1916, 0
      %v1946 = vsel %vm775, %v1917, 0
      %v1949 = vsel %vm775, %v1918, 0
      %vm1951 = vcmask 1043456
      %v1953 = vsel %vm1951, %v1890, 0
      %1955 = vmatprep.subr.mxu0 0.0
      %1956 = vmatpush1.msra.mxu0 %v1886
      %1957 = vmatprep.subr.mxu0 0.0
      %1958 = vmatpush1.msra.mxu0 %v1887
      %1959 = vmatprep.subr.mxu0 0.0
      %1960 = vmatpush1.msra.mxu0 %v1888
      %1961 = vmatprep.subr.mxu0 0.0
      %1962 = vmatpush1.msra.mxu0 %v1889
      %1963 = vmatprep.subr.mxu0 0.0
      %1964 = vmatpush1.msra.mxu0 %v1953
      %1965 = vmatprep.subr.mxu0 0.0
      %1966 = vmatpush1.msra.mxu0 0.0
      %1967 = vmatprep.subr.mxu0 0.0
      %1968 = vmatpush1.msra.mxu0 0.0
      %1969 = vmatprep.subr.mxu0 0.0
      %1970 = vmatpush1.msra.mxu0 0.0
      %1971 = vmatprep.subr.mxu0 0.0
      %1972 = vmatpush1.msra.mxu0 0.0
      %1973 = vmatprep.subr.mxu0 0.0
      %1974 = vmatpush1.msra.mxu0 0.0
      %1975 = vmatprep.subr.mxu0 0.0
      %1976 = vmatpush1.msra.mxu0 0.0
      %1977 = vmatprep.subr.mxu0 0.0
      %1978 = vmatpush1.msra.mxu0 0.0
      %1979 = vmatprep.subr.mxu0 0.0
      %1980 = vmatpush1.msra.mxu0 0.0
      %1981 = vmatprep.subr.mxu0 0.0
      %1982 = vmatpush1.msra.mxu0 0.0
      %1983 = vmatprep.subr.mxu0 0.0
      %1984 = vmatpush1.msra.mxu0 0.0
      %1985 = vmatprep.subr.mxu0 0.0
      %1986 = vmatpush1.msra.mxu0 0.0
      %1987 = vmatprep.subr.mxu0 0.0
      %1988 = vmatpush1.msra.mxu0 0.0
      %1989 = vmatprep.subr.mxu0 0.0
      %1990 = vmatpush1.msra.mxu0 0.0
      %1991 = vmatprep.subr.mxu0 0.0
      %1992 = vmatpush1.msra.mxu0 0.0
      %1993 = vmatprep.subr.mxu0 0.0
      %1994 = vmatpush1.msra.mxu0 0.0
      %1995 = vmatprep.subr.mxu0 0.0
      %1996 = vmatpush1.msra.mxu0 0.0
      %1997 = vmatprep.subr.mxu0 0.0
      %1998 = vmatpush1.msra.mxu0 0.0
      %1999 = vmatprep.subr.mxu0 0.0
      %2000 = vmatpush1.msra.mxu0 0.0
      %2001 = vmatprep.subr.mxu0 0.0
      %2002 = vmatpush1.msra.mxu0 0.0
      %2003 = vmatprep.subr.mxu0 0.0
      %2004 = vmatpush1.msra.mxu0 0.0
      %2005 = vmatprep.subr.mxu0 0.0
      %2006 = vmatpush1.msra.mxu0 0.0
      %2007 = vmatprep.subr.mxu0 0.0
      %2008 = vmatpush1.msra.mxu0 0.0
      %2009 = vmatprep.subr.mxu0 0.0
      %2010 = vmatpush1.msra.mxu0 0.0
      %2011 = vmatprep.subr.mxu0 0.0
      %2012 = vmatpush1.msra.mxu0 0.0
      %2013 = vmatprep.subr.mxu0 0.0
      %2014 = vmatpush1.msra.mxu0 0.0
      %2015 = vmatprep.subr.mxu0 0.0
      %2016 = vmatpush1.msra.mxu0 0.0
      %2017 = vmatprep.subr.mxu0 0.0
      %2018 = vmatpush1.msra.mxu0 0.0
      %2019 = vmatprep.mubr.f32.mxu0 0.0
      %2020 = vmatmul.mubr.f32.gmra.mrb[0].mxu0 %v1928
      %v2021 = vpop.f32.mrb[0].mxu0
      %v2022 = vadd.f32 0.0, %v2021
      %v2023 = vpop.f32.mrb[0].mxu0
      %2024 = vmatprep.mubr.f32.mxu0 0.0
      %2025 = vmatmul.mubr.f32.gmra.mrb[0].mxu0 %v1931
      %v2026 = vpop.f32.mrb[0].mxu0
      %v2027 = vadd.f32 0.0, %v2026
      %v2028 = vpop.f32.mrb[0].mxu0
      %2029 = vmatprep.mubr.f32.mxu0 0.0
      %2030 = vmatmul.mubr.f32.gmra.mrb[0].mxu0 %v1934
      %v2031 = vpop.f32.mrb[0].mxu0
      %v2032 = vadd.f32 0.0, %v2031
      %v2033 = vpop.f32.mrb[0].mxu0
      %2034 = vmatprep.mubr.f32.mxu0 0.0
      %2035 = vmatmul.mubr.f32.gmra.mrb[0].mxu0 %v1937
      %v2036 = vpop.f32.mrb[0].mxu0
      %v2037 = vadd.f32 0.0, %v2036
      %v2038 = vpop.f32.mrb[0].mxu0
      %2039 = vmatprep.mubr.f32.mxu0 0.0
      %2040 = vmatmul.mubr.f32.gmra.mrb[0].mxu0 %v1940
      %v2041 = vpop.f32.mrb[0].mxu0
      %v2042 = vadd.f32 0.0, %v2041
      %v2043 = vpop.f32.mrb[0].mxu0
      %2044 = vmatprep.mubr.f32.mxu0 0.0
      %2045 = vmatmul.mubr.f32.gmra.mrb[0].mxu0 %v1943
      %v2046 = vpop.f32.mrb[0].mxu0
      %v2047 = vadd.f32 0.0, %v2046
      %v2048 = vpop.f32.mrb[0].mxu0
      %2049 = vmatprep.mubr.f32.mxu0 0.0
      %2050 = vmatmul.mubr.f32.gmra.mrb[0].mxu0 %v1946
      %v2051 = vpop.f32.mrb[0].mxu0
      %v2052 = vadd.f32 0.0, %v2051
      %v2053 = vpop.f32.mrb[0].mxu0
      %2054 = vmatprep.mubr.f32.mxu0 0.0
      %2055 = vmatmul.mubr.f32.gmra.mrb[0].mxu0 %v1949
      %v2056 = vpop.f32.mrb[0].mxu0
      %v2057 = vadd.f32 0.0, %v2056
      %v2058 = vpop.f32.mrb[0].mxu0
      %2059 = vdwg.mxu0
      %v2061 = vsel %vm775, %v1903, 0
      %v2064 = vsel %vm775, %v1904, 0
      %v2067 = vsel %vm775, %v1905, 0
      %v2070 = vsel %vm775, %v1906, 0
      %v2073 = vsel %vm775, %v1907, 0
      %v2076 = vsel %vm775, %v1908, 0
      %v2079 = vsel %vm775, %v1909, 0
      %v2082 = vsel %vm775, %v1910, 0
      %v2085 = vsel %vm1951, %v1884, 0
      %2087 = vmatprep.subr.mxu0 0.0
      %2088 = vmatpush1.msra.mxu0 %v1880
      %2089 = vmatprep.subr.mxu0 0.0
      %2090 = vmatpush1.msra.mxu0 %v1881
      %2091 = vmatprep.subr.mxu0 0.0
      %2092 = vmatpush1.msra.mxu0 %v1882
      %2093 = vmatprep.subr.mxu0 0.0
      %2094 = vmatpush1.msra.mxu0 %v1883
      %2095 = vmatprep.subr.mxu0 0.0
      %2096 = vmatpush1.msra.mxu0 %v2085
      %2097 = vmatprep.subr.mxu0 0.0
      %2098 = vmatpush1.msra.mxu0 0.0
      %2099 = vmatprep.subr.mxu0 0.0
      %2100 = vmatpush1.msra.mxu0 0.0
      %2101 = vmatprep.subr.mxu0 0.0
      %2102 = vmatpush1.msra.mxu0 0.0
      %2103 = vmatprep.subr.mxu0 0.0
      %2104 = vmatpush1.msra.mxu0 0.0
      %2105 = vmatprep.subr.mxu0 0.0
      %2106 = vmatpush1.msra.mxu0 0.0
      %2107 = vmatprep.subr.mxu0 0.0
      %2108 = vmatpush1.msra.mxu0 0.0
      %2109 = vmatprep.subr.mxu0 0.0
      %2110 = vmatpush1.msra.mxu0 0.0
      %2111 = vmatprep.subr.mxu0 0.0
      %2112 = vmatpush1.msra.mxu0 0.0
      %2113 = vmatprep.subr.mxu0 0.0
      %2114 = vmatpush1.msra.mxu0 0.0
      %2115 = vmatprep.subr.mxu0 0.0
      %2116 = vmatpush1.msra.mxu0 0.0
      %2117 = vmatprep.subr.mxu0 0.0
      %2118 = vmatpush1.msra.mxu0 0.0
      %2119 = vmatprep.subr.mxu0 0.0
      %2120 = vmatpush1.msra.mxu0 0.0
      %2121 = vmatprep.subr.mxu0 0.0
      %2122 = vmatpush1.msra.mxu0 0.0
      %2123 = vmatprep.subr.mxu0 0.0
      %2124 = vmatpush1.msra.mxu0 0.0
      %2125 = vmatprep.subr.mxu0 0.0
      %2126 = vmatpush1.msra.mxu0 0.0
      %2127 = vmatprep.subr.mxu0 0.0
      %2128 = vmatpush1.msra.mxu0 0.0
      %2129 = vmatprep.subr.mxu0 0.0
      %2130 = vmatpush1.msra.mxu0 0.0
      %2131 = vmatprep.subr.mxu0 0.0
      %2132 = vmatpush1.msra.mxu0 0.0
      %2133 = vmatprep.subr.mxu0 0.0
      %2134 = vmatpush1.msra.mxu0 0.0
      %2135 = vmatprep.subr.mxu0 0.0
      %2136 = vmatpush1.msra.mxu0 0.0
      %2137 = vmatprep.subr.mxu0 0.0
      %2138 = vmatpush1.msra.mxu0 0.0
      %2139 = vmatprep.subr.mxu0 0.0
      %2140 = vmatpush1.msra.mxu0 0.0
      %2141 = vmatprep.subr.mxu0 0.0
      %2142 = vmatpush1.msra.mxu0 0.0
      %2143 = vmatprep.subr.mxu0 0.0
      %2144 = vmatpush1.msra.mxu0 0.0
      %2145 = vmatprep.subr.mxu0 0.0
      %2146 = vmatpush1.msra.mxu0 0.0
      %2147 = vmatprep.subr.mxu0 0.0
      %2148 = vmatpush1.msra.mxu0 0.0
      %2149 = vmatprep.subr.mxu0 0.0
      %2150 = vmatpush1.msra.mxu0 0.0
      %2151 = vmatprep.mubr.f32.mxu0 0.0
      %2152 = vmatmul.mubr.f32.gmra.mrb[0].mxu0 %v2061
      %v2153 = vpop.f32.mrb[0].mxu0
      %v2154 = vadd.f32 %v2022, %v2153
      %v2155 = vpop.f32.mrb[0].mxu0
      %2156 = vmatprep.mubr.f32.mxu0 0.0
      %2157 = vmatmul.mubr.f32.gmra.mrb[0].mxu0 %v2064
      %v2158 = vpop.f32.mrb[0].mxu0
      %v2159 = vadd.f32 %v2027, %v2158
      %v2160 = vpop.f32.mrb[0].mxu0
      %2161 = vmatprep.mubr.f32.mxu0 0.0
      %2162 = vmatmul.mubr.f32.gmra.mrb[0].mxu0 %v2067
      %v2163 = vpop.f32.mrb[0].mxu0
      %v2164 = vadd.f32 %v2032, %v2163
      %v2165 = vpop.f32.mrb[0].mxu0
      %2166 = vmatprep.mubr.f32.mxu0 0.0
      %2167 = vmatmul.mubr.f32.gmra.mrb[0].mxu0 %v2070
      %v2168 = vpop.f32.mrb[0].mxu0
      %v2169 = vadd.f32 %v2037, %v2168
      %v2170 = vpop.f32.mrb[0].mxu0
      %2171 = vmatprep.mubr.f32.mxu0 0.0
      %2172 = vmatmul.mubr.f32.gmra.mrb[0].mxu0 %v2073
      %v2173 = vpop.f32.mrb[0].mxu0
      %v2174 = vadd.f32 %v2042, %v2173
      %v2175 = vpop.f32.mrb[0].mxu0
      %2176 = vmatprep.mubr.f32.mxu0 0.0
      %2177 = vmatmul.mubr.f32.gmra.mrb[0].mxu0 %v2076
      %v2178 = vpop.f32.mrb[0].mxu0
      %v2179 = vadd.f32 %v2047, %v2178
      %v2180 = vpop.f32.mrb[0].mxu0
      %2181 = vmatprep.mubr.f32.mxu0 0.0
      %2182 = vmatmul.mubr.f32.gmra.mrb[0].mxu0 %v2079
      %v2183 = vpop.f32.mrb[0].mxu0
      %v2184 = vadd.f32 %v2052, %v2183
      %v2185 = vpop.f32.mrb[0].mxu0
      %2186 = vmatprep.mubr.f32.mxu0 0.0
      %2187 = vmatmul.mubr.f32.gmra.mrb[0].mxu0 %v2082
      %v2188 = vpop.f32.mrb[0].mxu0
      %v2189 = vadd.f32 %v2057, %v2188
      %v2190 = vpop.f32.mrb[0].mxu0
      %2191 = vdwg.mxu0
      %v2192 = vadd.f32 %v2154, %v407
      %v2193 = vadd.f32 %v2159, %v407
      %v2194 = vadd.f32 %v2164, %v407
      %v2195 = vadd.f32 %v2169, %v407
      %v2196 = vadd.f32 %v2174, %v407
      %v2197 = vadd.f32 %v2179, %v407
      %v2198 = vadd.f32 %v2184, %v407
      %v2199 = vadd.f32 %v2189, %v407
      %v2201 = vsel %vm775, %v1919, 0
      %v2204 = vsel %vm775, %v1920, 0
      %v2207 = vsel %vm775, %v1921, 0
      %v2210 = vsel %vm775, %v1922, 0
      %v2213 = vsel %vm775, %v1923, 0
      %v2216 = vsel %vm775, %v1924, 0
      %v2219 = vsel %vm775, %v1925, 0
      %v2222 = vsel %vm775, %v1926, 0
      %v2225 = vsel %vm1951, %v1902, 0
      %2227 = vmatprep.subr.mxu0 0.0
      %2228 = vmatpush1.msra.mxu0 %v1898
      %2229 = vmatprep.subr.mxu0 0.0
      %2230 = vmatpush1.msra.mxu0 %v1899
      %2231 = vmatprep.subr.mxu0 0.0
      %2232 = vmatpush1.msra.mxu0 %v1900
      %2233 = vmatprep.subr.mxu0 0.0
      %2234 = vmatpush1.msra.mxu0 %v1901
      %2235 = vmatprep.subr.mxu0 0.0
      %2236 = vmatpush1.msra.mxu0 %v2225
      %2237 = vmatprep.subr.mxu0 0.0
      %2238 = vmatpush1.msra.mxu0 0.0
      %2239 = vmatprep.subr.mxu0 0.0
      %2240 = vmatpush1.msra.mxu0 0.0
      %2241 = vmatprep.subr.mxu0 0.0
      %2242 = vmatpush1.msra.mxu0 0.0
      %2243 = vmatprep.subr.mxu0 0.0
      %2244 = vmatpush1.msra.mxu0 0.0
      %2245 = vmatprep.subr.mxu0 0.0
      %2246 = vmatpush1.msra.mxu0 0.0
      %2247 = vmatprep.subr.mxu0 0.0
      %2248 = vmatpush1.msra.mxu0 0.0
      %2249 = vmatprep.subr.mxu0 0.0
      %2250 = vmatpush1.msra.mxu0 0.0
      %2251 = vmatprep.subr.mxu0 0.0
      %2252 = vmatpush1.msra.mxu0 0.0
      %2253 = vmatprep.subr.mxu0 0.0
      %2254 = vmatpush1.msra.mxu0 0.0
      %2255 = vmatprep.subr.mxu0 0.0
      %2256 = vmatpush1.msra.mxu0 0.0
      %2257 = vmatprep.subr.mxu0 0.0
      %2258 = vmatpush1.msra.mxu0 0.0
      %2259 = vmatprep.subr.mxu0 0.0
      %2260 = vmatpush1.msra.mxu0 0.0
      %2261 = vmatprep.subr.mxu0 0.0
      %2262 = vmatpush1.msra.mxu0 0.0
      %2263 = vmatprep.subr.mxu0 0.0
      %2264 = vmatpush1.msra.mxu0 0.0
      %2265 = vmatprep.subr.mxu0 0.0
      %2266 = vmatpush1.msra.mxu0 0.0
      %2267 = vmatprep.subr.mxu0 0.0
      %2268 = vmatpush1.msra.mxu0 0.0
      %2269 = vmatprep.subr.mxu0 0.0
      %2270 = vmatpush1.msra.mxu0 0.0
      %2271 = vmatprep.subr.mxu0 0.0
      %2272 = vmatpush1.msra.mxu0 0.0
      %2273 = vmatprep.subr.mxu0 0.0
      %2274 = vmatpush1.msra.mxu0 0.0
      %2275 = vmatprep.subr.mxu0 0.0
      %2276 = vmatpush1.msra.mxu0 0.0
      %2277 = vmatprep.subr.mxu0 0.0
      %2278 = vmatpush1.msra.mxu0 0.0
      %2279 = vmatprep.subr.mxu0 0.0
      %2280 = vmatpush1.msra.mxu0 0.0
      %2281 = vmatprep.subr.mxu0 0.0
      %2282 = vmatpush1.msra.mxu0 0.0
      %2283 = vmatprep.subr.mxu0 0.0
      %2284 = vmatpush1.msra.mxu0 0.0
      %2285 = vmatprep.subr.mxu0 0.0
      %2286 = vmatpush1.msra.mxu0 0.0
      %2287 = vmatprep.subr.mxu0 0.0
      %2288 = vmatpush1.msra.mxu0 0.0
      %2289 = vmatprep.subr.mxu0 0.0
      %2290 = vmatpush1.msra.mxu0 0.0
      %2291 = vmatprep.mubr.f32.mxu0 0.0
      %2292 = vmatmul.mubr.f32.gmra.mrb[0].mxu0 %v2201
      %v2293 = vpop.f32.mrb[0].mxu0
      %v2294 = vadd.f32 0.0, %v2293
      %v2295 = vpop.f32.mrb[0].mxu0
      %2296 = vmatprep.mubr.f32.mxu0 0.0
      %2297 = vmatmul.mubr.f32.gmra.mrb[0].mxu0 %v2204
      %v2298 = vpop.f32.mrb[0].mxu0
      %v2299 = vadd.f32 0.0, %v2298
      %v2300 = vpop.f32.mrb[0].mxu0
      %2301 = vmatprep.mubr.f32.mxu0 0.0
      %2302 = vmatmul.mubr.f32.gmra.mrb[0].mxu0 %v2207
      %v2303 = vpop.f32.mrb[0].mxu0
      %v2304 = vadd.f32 0.0, %v2303
      %v2305 = vpop.f32.mrb[0].mxu0
      %2306 = vmatprep.mubr.f32.mxu0 0.0
      %2307 = vmatmul.mubr.f32.gmra.mrb[0].mxu0 %v2210
      %v2308 = vpop.f32.mrb[0].mxu0
      %v2309 = vadd.f32 0.0, %v2308
      %v2310 = vpop.f32.mrb[0].mxu0
      %2311 = vmatprep.mubr.f32.mxu0 0.0
      %2312 = vmatmul.mubr.f32.gmra.mrb[0].mxu0 %v2213
      %v2313 = vpop.f32.mrb[0].mxu0
      %v2314 = vadd.f32 0.0, %v2313
      %v2315 = vpop.f32.mrb[0].mxu0
      %2316 = vmatprep.mubr.f32.mxu0 0.0
      %2317 = vmatmul.mubr.f32.gmra.mrb[0].mxu0 %v2216
      %v2318 = vpop.f32.mrb[0].mxu0
      %v2319 = vadd.f32 0.0, %v2318
      %v2320 = vpop.f32.mrb[0].mxu0
      %2321 = vmatprep.mubr.f32.mxu0 0.0
      %2322 = vmatmul.mubr.f32.gmra.mrb[0].mxu0 %v2219
      %v2323 = vpop.f32.mrb[0].mxu0
      %v2324 = vadd.f32 0.0, %v2323
      %v2325 = vpop.f32.mrb[0].mxu0
      %2326 = vmatprep.mubr.f32.mxu0 0.0
      %2327 = vmatmul.mubr.f32.gmra.mrb[0].mxu0 %v2222
      %v2328 = vpop.f32.mrb[0].mxu0
      %v2329 = vadd.f32 0.0, %v2328
      %v2330 = vpop.f32.mrb[0].mxu0
      %2331 = vdwg.mxu0
      %v2333 = vsel %vm1951, %v1896, 0
      %2335 = vmatprep.subr.mxu0 0.0
      %2336 = vmatpush1.msra.mxu0 %v1892
      %2337 = vmatprep.subr.mxu0 0.0
      %2338 = vmatpush1.msra.mxu0 %v1893
      %2339 = vmatprep.subr.mxu0 0.0
      %2340 = vmatpush1.msra.mxu0 %v1894
      %2341 = vmatprep.subr.mxu0 0.0
      %2342 = vmatpush1.msra.mxu0 %v1895
      %2343 = vmatprep.subr.mxu0 0.0
      %2344 = vmatpush1.msra.mxu0 %v2333
      %2345 = vmatprep.subr.mxu0 0.0
      %2346 = vmatpush1.msra.mxu0 0.0
      %2347 = vmatprep.subr.mxu0 0.0
      %2348 = vmatpush1.msra.mxu0 0.0
      %2349 = vmatprep.subr.mxu0 0.0
      %2350 = vmatpush1.msra.mxu0 0.0
      %2351 = vmatprep.subr.mxu0 0.0
      %2352 = vmatpush1.msra.mxu0 0.0
      %2353 = vmatprep.subr.mxu0 0.0
      %2354 = vmatpush1.msra.mxu0 0.0
      %2355 = vmatprep.subr.mxu0 0.0
      %2356 = vmatpush1.msra.mxu0 0.0
      %2357 = vmatprep.subr.mxu0 0.0
      %2358 = vmatpush1.msra.mxu0 0.0
      %2359 = vmatprep.subr.mxu0 0.0
      %2360 = vmatpush1.msra.mxu0 0.0
      %2361 = vmatprep.subr.mxu0 0.0
      %2362 = vmatpush1.msra.mxu0 0.0
      %2363 = vmatprep.subr.mxu0 0.0
      %2364 = vmatpush1.msra.mxu0 0.0
      %2365 = vmatprep.subr.mxu0 0.0
      %2366 = vmatpush1.msra.mxu0 0.0
      %2367 = vmatprep.subr.mxu0 0.0
      %2368 = vmatpush1.msra.mxu0 0.0
      %2369 = vmatprep.subr.mxu0 0.0
      %2370 = vmatpush1.msra.mxu0 0.0
      %2371 = vmatprep.subr.mxu0 0.0
      %2372 = vmatpush1.msra.mxu0 0.0
      %2373 = vmatprep.subr.mxu0 0.0
      %2374 = vmatpush1.msra.mxu0 0.0
      %2375 = vmatprep.subr.mxu0 0.0
      %2376 = vmatpush1.msra.mxu0 0.0
      %2377 = vmatprep.subr.mxu0 0.0
      %2378 = vmatpush1.msra.mxu0 0.0
      %2379 = vmatprep.subr.mxu0 0.0
      %2380 = vmatpush1.msra.mxu0 0.0
      %2381 = vmatprep.subr.mxu0 0.0
      %2382 = vmatpush1.msra.mxu0 0.0
      %2383 = vmatprep.subr.mxu0 0.0
      %2384 = vmatpush1.msra.mxu0 0.0
      %2385 = vmatprep.subr.mxu0 0.0
      %2386 = vmatpush1.msra.mxu0 0.0
      %2387 = vmatprep.subr.mxu0 0.0
      %2388 = vmatpush1.msra.mxu0 0.0
      %2389 = vmatprep.subr.mxu0 0.0
      %2390 = vmatpush1.msra.mxu0 0.0
      %2391 = vmatprep.subr.mxu0 0.0
      %2392 = vmatpush1.msra.mxu0 0.0
      %2393 = vmatprep.subr.mxu0 0.0
      %2394 = vmatpush1.msra.mxu0 0.0
      %2395 = vmatprep.subr.mxu0 0.0
      %2396 = vmatpush1.msra.mxu0 0.0
      %2397 = vmatprep.subr.mxu0 0.0
      %2398 = vmatpush1.msra.mxu0 0.0
      %2399 = vmatprep.mubr.f32.mxu0 0.0
      %2400 = vmatmul.mubr.f32.gmra.mrb[0].mxu0 %v1928
      %v2401 = vpop.f32.mrb[0].mxu0
      %v2402 = vadd.f32 %v2294, %v2401
      %v2403 = vpop.f32.mrb[0].mxu0
      %2404 = vmatprep.mubr.f32.mxu0 0.0
      %2405 = vmatmul.mubr.f32.gmra.mrb[0].mxu0 %v1931
      %v2406 = vpop.f32.mrb[0].mxu0
      %v2407 = vadd.f32 %v2299, %v2406
      %v2408 = vpop.f32.mrb[0].mxu0
      %2409 = vmatprep.mubr.f32.mxu0 0.0
      %2410 = vmatmul.mubr.f32.gmra.mrb[0].mxu0 %v1934
      %v2411 = vpop.f32.mrb[0].mxu0
      %v2412 = vadd.f32 %v2304, %v2411
      %v2413 = vpop.f32.mrb[0].mxu0
      %2414 = vmatprep.mubr.f32.mxu0 0.0
      %2415 = vmatmul.mubr.f32.gmra.mrb[0].mxu0 %v1937
      %v2416 = vpop.f32.mrb[0].mxu0
      %v2417 = vadd.f32 %v2309, %v2416
      %v2418 = vpop.f32.mrb[0].mxu0
      %2419 = vmatprep.mubr.f32.mxu0 0.0
      %2420 = vmatmul.mubr.f32.gmra.mrb[0].mxu0 %v1940
      %v2421 = vpop.f32.mrb[0].mxu0
      %v2422 = vadd.f32 %v2314, %v2421
      %v2423 = vpop.f32.mrb[0].mxu0
      %2424 = vmatprep.mubr.f32.mxu0 0.0
      %2425 = vmatmul.mubr.f32.gmra.mrb[0].mxu0 %v1943
      %v2426 = vpop.f32.mrb[0].mxu0
      %v2427 = vadd.f32 %v2319, %v2426
      %v2428 = vpop.f32.mrb[0].mxu0
      %2429 = vmatprep.mubr.f32.mxu0 0.0
      %2430 = vmatmul.mubr.f32.gmra.mrb[0].mxu0 %v1946
      %v2431 = vpop.f32.mrb[0].mxu0
      %v2432 = vadd.f32 %v2324, %v2431
      %v2433 = vpop.f32.mrb[0].mxu0
      %2434 = vmatprep.mubr.f32.mxu0 0.0
      %2435 = vmatmul.mubr.f32.gmra.mrb[0].mxu0 %v1949
      %v2436 = vpop.f32.mrb[0].mxu0
      %v2437 = vadd.f32 %v2329, %v2436
      %v2438 = vpop.f32.mrb[0].mxu0
      %2439 = vdwg.mxu0
      %v2440 = vadd.f32 %v2402, %v407
      %v2441 = vadd.f32 %v2407, %v407
      %v2442 = vadd.f32 %v2412, %v407
      %v2443 = vadd.f32 %v2417, %v407
      %v2444 = vadd.f32 %v2422, %v407
      %v2445 = vadd.f32 %v2427, %v407
      %v2446 = vadd.f32 %v2432, %v407
      %v2447 = vadd.f32 %v2437, %v407
      %v2448 = vstv %s400
      %v2449 = vmul.f32 %v2448, %v1911
      %v2450 = vmul.f32 %v2448, %v1912
      %v2451 = vmul.f32 %v2448, %v1913
      %v2452 = vmul.f32 %v2448, %v1914
      %v2453 = vmul.f32 %v2448, %v1915
      %v2454 = vmul.f32 %v2448, %v1916
      %v2455 = vmul.f32 %v2448, %v1917
      %v2456 = vmul.f32 %v2448, %v1918
      %v2457 = vstv %s401
      %v2458 = vmul.f32 %v2457, %v2192
      %v2459 = vmul.f32 %v2457, %v2193
      %v2460 = vmul.f32 %v2457, %v2194
      %v2461 = vmul.f32 %v2457, %v2195
      %v2462 = vmul.f32 %v2457, %v2196
      %v2463 = vmul.f32 %v2457, %v2197
      %v2464 = vmul.f32 %v2457, %v2198
      %v2465 = vmul.f32 %v2457, %v2199
      %2474 = vrot.lane.b32.xlu0 %v2458, 16
      %v2475 = vpop.permute.xlu0 %2474
      %2476 = vrot.lane.b32.xlu0 %v2459, 16
      %v2477 = vpop.permute.xlu0 %2476
      %2478 = vrot.lane.b32.xlu0 %v2460, 16
      %v2479 = vpop.permute.xlu0 %2478
      %2480 = vrot.lane.b32.xlu0 %v2461, 16
      %v2481 = vpop.permute.xlu0 %2480
      %2482 = vrot.lane.b32.xlu0 %v2462, 16
      %v2483 = vpop.permute.xlu0 %2482
      %2484 = vrot.lane.b32.xlu0 %v2463, 16
      %v2485 = vpop.permute.xlu0 %2484
      %2486 = vrot.lane.b32.xlu0 %v2464, 16
      %v2487 = vpop.permute.xlu0 %2486
      %2488 = vrot.lane.b32.xlu0 %v2465, 16
      %v2489 = vpop.permute.xlu0 %2488
      %v2498 = vadd.f32 %v2449, %v2475
      %v2499 = vadd.f32 %v2450, %v2477
      %v2500 = vadd.f32 %v2451, %v2479
      %v2501 = vadd.f32 %v2452, %v2481
      %v2502 = vadd.f32 %v2453, %v2483
      %v2503 = vadd.f32 %v2454, %v2485
      %v2504 = vadd.f32 %v2455, %v2487
      %v2505 = vadd.f32 %v2456, %v2489
      %2514 = vrot.lane.b32.xlu0 %v2498, 112
      %v2515 = vpop.permute.xlu0 %2514
      %2516 = vrot.lane.b32.xlu0 %v2499, 112
      %v2517 = vpop.permute.xlu0 %2516
      %2518 = vrot.lane.b32.xlu0 %v2500, 112
      %v2519 = vpop.permute.xlu0 %2518
      %2520 = vrot.lane.b32.xlu0 %v2501, 112
      %v2521 = vpop.permute.xlu0 %2520
      %2522 = vrot.lane.b32.xlu0 %v2502, 112
      %v2523 = vpop.permute.xlu0 %2522
      %2524 = vrot.lane.b32.xlu0 %v2503, 112
      %v2525 = vpop.permute.xlu0 %2524
      %2526 = vrot.lane.b32.xlu0 %v2504, 112
      %v2527 = vpop.permute.xlu0 %2526
      %2528 = vrot.lane.b32.xlu0 %v2505, 112
      %v2529 = vpop.permute.xlu0 %2528
      %2538 = vst.msk [vmem:[%s398] sm:$0xff] %vm703, %v2515
      %2539 = vst.msk [vmem:[%s398 + $0x8] sm:$0xff] %vm703, %v2517
      %2540 = vst.msk [vmem:[%s398 + $0x10] sm:$0xff] %vm703, %v2519
      %2541 = vst.msk [vmem:[%s398 + $0x18] sm:$0xff] %vm703, %v2521
      %2542 = vst.msk [vmem:[%s398 + $0x20] sm:$0xff] %vm703, %v2523
      %2543 = vst.msk [vmem:[%s398 + $0x28] sm:$0xff] %vm703, %v2525
      %2544 = vst.msk [vmem:[%s398 + $0x30] sm:$0xff] %vm703, %v2527
      %2545 = vst.msk [vmem:[%s398 + $0x38] sm:$0xff] %vm703, %v2529
      %v2546 = vmul.f32 %v2457, %v2440
      %v2547 = vmul.f32 %v2457, %v2441
      %v2548 = vmul.f32 %v2457, %v2442
      %v2549 = vmul.f32 %v2457, %v2443
      %v2550 = vmul.f32 %v2457, %v2444
      %v2551 = vmul.f32 %v2457, %v2445
      %v2552 = vmul.f32 %v2457, %v2446
      %v2553 = vmul.f32 %v2457, %v2447
      %2562 = vrot.lane.b32.xlu0 %v2546, 16
      %v2563 = vpop.permute.xlu0 %2562
      %2564 = vrot.lane.b32.xlu0 %v2547, 16
      %v2565 = vpop.permute.xlu0 %2564
      %2566 = vrot.lane.b32.xlu0 %v2548, 16
      %v2567 = vpop.permute.xlu0 %2566
      %2568 = vrot.lane.b32.xlu0 %v2549, 16
      %v2569 = vpop.permute.xlu0 %2568
      %2570 = vrot.lane.b32.xlu0 %v2550, 16
      %v2571 = vpop.permute.xlu0 %2570
      %2572 = vrot.lane.b32.xlu0 %v2551, 16
      %v2573 = vpop.permute.xlu0 %2572
      %2574 = vrot.lane.b32.xlu0 %v2552, 16
      %v2575 = vpop.permute.xlu0 %2574
      %2576 = vrot.lane.b32.xlu0 %v2553, 16
      %v2577 = vpop.permute.xlu0 %2576
      %v2586 = vadd.f32 %v2449, %v2563
      %v2587 = vadd.f32 %v2450, %v2565
      %v2588 = vadd.f32 %v2451, %v2567
      %v2589 = vadd.f32 %v2452, %v2569
      %v2590 = vadd.f32 %v2453, %v2571
      %v2591 = vadd.f32 %v2454, %v2573
      %v2592 = vadd.f32 %v2455, %v2575
      %v2593 = vadd.f32 %v2456, %v2577
      %2602 = vrot.lane.b32.xlu0 %v2586, 112
      %v2603 = vpop.permute.xlu0 %2602
      %2604 = vrot.lane.b32.xlu0 %v2587, 112
      %v2605 = vpop.permute.xlu0 %2604
      %2606 = vrot.lane.b32.xlu0 %v2588, 112
      %v2607 = vpop.permute.xlu0 %2606
      %2608 = vrot.lane.b32.xlu0 %v2589, 112
      %v2609 = vpop.permute.xlu0 %2608
      %2610 = vrot.lane.b32.xlu0 %v2590, 112
      %v2611 = vpop.permute.xlu0 %2610
      %2612 = vrot.lane.b32.xlu0 %v2591, 112
      %v2613 = vpop.permute.xlu0 %2612
      %2614 = vrot.lane.b32.xlu0 %v2592, 112
      %v2615 = vpop.permute.xlu0 %2614
      %2616 = vrot.lane.b32.xlu0 %v2593, 112
      %v2617 = vpop.permute.xlu0 %2616
      %s2626 = scalar_lea.vmem %s398, 64
      %2627 = vst.msk [vmem:[%s2626] sm:$0xff] %vm703, %v2603
      %2628 = vst.msk [vmem:[%s2626 + $0x8] sm:$0xff] %vm703, %v2605
      %2629 = vst.msk [vmem:[%s2626 + $0x10] sm:$0xff] %vm703, %v2607
      %2630 = vst.msk [vmem:[%s2626 + $0x18] sm:$0xff] %vm703, %v2609
      %2631 = vst.msk [vmem:[%s2626 + $0x20] sm:$0xff] %vm703, %v2611
      %2632 = vst.msk [vmem:[%s2626 + $0x28] sm:$0xff] %vm703, %v2613
      %2633 = vst.msk [vmem:[%s2626 + $0x30] sm:$0xff] %vm703, %v2615
      %2634 = vst.msk [vmem:[%s2626 + $0x38] sm:$0xff] %vm703, %v2617
      %v2635 = vld [vmem:[%s1141] sm:$0xff]
      %v2636 = vld [vmem:[%s1141 + $0x8] sm:$0xff]
      %v2637 = vld [vmem:[%s1141 + $0x10] sm:$0xff]
      %v2638 = vld [vmem:[%s1141 + $0x18] sm:$0xff]
      %v2639 = vld [vmem:[%s1141 + $0x20] sm:$0xff]
      %v2640 = vld [vmem:[%s1141 + $0x28] sm:$0xff]
      %v2641 = vld [vmem:[%s1141 + $0x30] sm:$0xff]
      %v2642 = vld [vmem:[%s1141 + $0x38] sm:$0xff]
      %v2643 = vld [vmem:[%s1506] sm:$0xff]
      %v2644 = vld [vmem:[%s1506 + $0x8] sm:$0xff]
      %v2645 = vld [vmem:[%s1506 + $0x10] sm:$0xff]
      %v2646 = vld [vmem:[%s1506 + $0x18] sm:$0xff]
      %v2647 = vld [vmem:[%s1506 + $0x20] sm:$0xff]
      %v2648 = vld [vmem:[%s1506 + $0x28] sm:$0xff]
      %v2649 = vld [vmem:[%s1506 + $0x30] sm:$0xff]
      %v2650 = vld [vmem:[%s1506 + $0x38] sm:$0xff]
      %v2651 = vld [vmem:[%s1871] sm:$0xff]
      %v2652 = vld [vmem:[%s1871 + $0x8] sm:$0xff]
      %v2653 = vld [vmem:[%s1871 + $0x10] sm:$0xff]
      %v2654 = vld [vmem:[%s1871 + $0x18] sm:$0xff]
      %v2655 = vld [vmem:[%s1871 + $0x20] sm:$0xff]
      %v2656 = vld [vmem:[%s1871 + $0x28] sm:$0xff]
      %v2657 = vld [vmem:[%s1871 + $0x30] sm:$0xff]
      %v2658 = vld [vmem:[%s1871 + $0x38] sm:$0xff]
      %v2660 = vsel %vm775, %v2643, 0
      %v2663 = vsel %vm775, %v2644, 0
      %v2666 = vsel %vm775, %v2645, 0
      %v2669 = vsel %vm775, %v2646, 0
      %v2672 = vsel %vm775, %v2647, 0
      %v2675 = vsel %vm775, %v2648, 0
      %v2678 = vsel %vm775, %v2649, 0
      %v2681 = vsel %vm775, %v2650, 0
      %2683 = vmatprep.subr.mxu0 0.0
      %2684 = vmatpush1.msra.mxu0 %v1886
      %2685 = vmatprep.subr.mxu0 0.0
      %2686 = vmatpush1.msra.mxu0 %v1887
      %2687 = vmatprep.subr.mxu0 0.0
      %2688 = vmatpush1.msra.mxu0 %v1888
      %2689 = vmatprep.subr.mxu0 0.0
      %2690 = vmatpush1.msra.mxu0 %v1889
      %2691 = vmatprep.subr.mxu0 0.0
      %2692 = vmatpush1.msra.mxu0 %v1953
      %2693 = vmatprep.subr.mxu0 0.0
      %2694 = vmatpush1.msra.mxu0 0.0
      %2695 = vmatprep.subr.mxu0 0.0
      %2696 = vmatpush1.msra.mxu0 0.0
      %2697 = vmatprep.subr.mxu0 0.0
      %2698 = vmatpush1.msra.mxu0 0.0
      %2699 = vmatprep.subr.mxu0 0.0
      %2700 = vmatpush1.msra.mxu0 0.0
      %2701 = vmatprep.subr.mxu0 0.0
      %2702 = vmatpush1.msra.mxu0 0.0
      %2703 = vmatprep.subr.mxu0 0.0
      %2704 = vmatpush1.msra.mxu0 0.0
      %2705 = vmatprep.subr.mxu0 0.0
      %2706 = vmatpush1.msra.mxu0 0.0
      %2707 = vmatprep.subr.mxu0 0.0
      %2708 = vmatpush1.msra.mxu0 0.0
      %2709 = vmatprep.subr.mxu0 0.0
      %2710 = vmatpush1.msra.mxu0 0.0
      %2711 = vmatprep.subr.mxu0 0.0
      %2712 = vmatpush1.msra.mxu0 0.0
      %2713 = vmatprep.subr.mxu0 0.0
      %2714 = vmatpush1.msra.mxu0 0.0
      %2715 = vmatprep.subr.mxu0 0.0
      %2716 = vmatpush1.msra.mxu0 0.0
      %2717 = vmatprep.subr.mxu0 0.0
      %2718 = vmatpush1.msra.mxu0 0.0
      %2719 = vmatprep.subr.mxu0 0.0
      %2720 = vmatpush1.msra.mxu0 0.0
      %2721 = vmatprep.subr.mxu0 0.0
      %2722 = vmatpush1.msra.mxu0 0.0
      %2723 = vmatprep.subr.mxu0 0.0
      %2724 = vmatpush1.msra.mxu0 0.0
      %2725 = vmatprep.subr.mxu0 0.0
      %2726 = vmatpush1.msra.mxu0 0.0
      %2727 = vmatprep.subr.mxu0 0.0
      %2728 = vmatpush1.msra.mxu0 0.0
      %2729 = vmatprep.subr.mxu0 0.0
      %2730 = vmatpush1.msra.mxu0 0.0
      %2731 = vmatprep.subr.mxu0 0.0
      %2732 = vmatpush1.msra.mxu0 0.0
      %2733 = vmatprep.subr.mxu0 0.0
      %2734 = vmatpush1.msra.mxu0 0.0
      %2735 = vmatprep.subr.mxu0 0.0
      %2736 = vmatpush1.msra.mxu0 0.0
      %2737 = vmatprep.subr.mxu0 0.0
      %2738 = vmatpush1.msra.mxu0 0.0
      %2739 = vmatprep.subr.mxu0 0.0
      %2740 = vmatpush1.msra.mxu0 0.0
      %2741 = vmatprep.subr.mxu0 0.0
      %2742 = vmatpush1.msra.mxu0 0.0
      %2743 = vmatprep.subr.mxu0 0.0
      %2744 = vmatpush1.msra.mxu0 0.0
      %2745 = vmatprep.subr.mxu0 0.0
      %2746 = vmatpush1.msra.mxu0 0.0
      %2747 = vmatprep.mubr.f32.mxu0 0.0
      %2748 = vmatmul.mubr.f32.gmra.mrb[0].mxu0 %v2660
      %v2749 = vpop.f32.mrb[0].mxu0
      %v2750 = vadd.f32 0.0, %v2749
      %v2751 = vpop.f32.mrb[0].mxu0
      %2752 = vmatprep.mubr.f32.mxu0 0.0
      %2753 = vmatmul.mubr.f32.gmra.mrb[0].mxu0 %v2663
      %v2754 = vpop.f32.mrb[0].mxu0
      %v2755 = vadd.f32 0.0, %v2754
      %v2756 = vpop.f32.mrb[0].mxu0
      %2757 = vmatprep.mubr.f32.mxu0 0.0
      %2758 = vmatmul.mubr.f32.gmra.mrb[0].mxu0 %v2666
      %v2759 = vpop.f32.mrb[0].mxu0
      %v2760 = vadd.f32 0.0, %v2759
      %v2761 = vpop.f32.mrb[0].mxu0
      %2762 = vmatprep.mubr.f32.mxu0 0.0
      %2763 = vmatmul.mubr.f32.gmra.mrb[0].mxu0 %v2669
      %v2764 = vpop.f32.mrb[0].mxu0
      %v2765 = vadd.f32 0.0, %v2764
      %v2766 = vpop.f32.mrb[0].mxu0
      %2767 = vmatprep.mubr.f32.mxu0 0.0
      %2768 = vmatmul.mubr.f32.gmra.mrb[0].mxu0 %v2672
      %v2769 = vpop.f32.mrb[0].mxu0
      %v2770 = vadd.f32 0.0, %v2769
      %v2771 = vpop.f32.mrb[0].mxu0
      %2772 = vmatprep.mubr.f32.mxu0 0.0
      %2773 = vmatmul.mubr.f32.gmra.mrb[0].mxu0 %v2675
      %v2774 = vpop.f32.mrb[0].mxu0
      %v2775 = vadd.f32 0.0, %v2774
      %v2776 = vpop.f32.mrb[0].mxu0
      %2777 = vmatprep.mubr.f32.mxu0 0.0
      %2778 = vmatmul.mubr.f32.gmra.mrb[0].mxu0 %v2678
      %v2779 = vpop.f32.mrb[0].mxu0
      %v2780 = vadd.f32 0.0, %v2779
      %v2781 = vpop.f32.mrb[0].mxu0
      %2782 = vmatprep.mubr.f32.mxu0 0.0
      %2783 = vmatmul.mubr.f32.gmra.mrb[0].mxu0 %v2681
      %v2784 = vpop.f32.mrb[0].mxu0
      %v2785 = vadd.f32 0.0, %v2784
      %v2786 = vpop.f32.mrb[0].mxu0
      %2787 = vdwg.mxu0
      %v2789 = vsel %vm775, %v2635, 0
      %v2792 = vsel %vm775, %v2636, 0
      %v2795 = vsel %vm775, %v2637, 0
      %v2798 = vsel %vm775, %v2638, 0
      %v2801 = vsel %vm775, %v2639, 0
      %v2804 = vsel %vm775, %v2640, 0
      %v2807 = vsel %vm775, %v2641, 0
      %v2810 = vsel %vm775, %v2642, 0
      %2812 = vmatprep.subr.mxu0 0.0
      %2813 = vmatpush1.msra.mxu0 %v1880
      %2814 = vmatprep.subr.mxu0 0.0
      %2815 = vmatpush1.msra.mxu0 %v1881
      %2816 = vmatprep.subr.mxu0 0.0
      %2817 = vmatpush1.msra.mxu0 %v1882
      %2818 = vmatprep.subr.mxu0 0.0
      %2819 = vmatpush1.msra.mxu0 %v1883
      %2820 = vmatprep.subr.mxu0 0.0
      %2821 = vmatpush1.msra.mxu0 %v2085
      %2822 = vmatprep.subr.mxu0 0.0
      %2823 = vmatpush1.msra.mxu0 0.0
      %2824 = vmatprep.subr.mxu0 0.0
      %2825 = vmatpush1.msra.mxu0 0.0
      %2826 = vmatprep.subr.mxu0 0.0
      %2827 = vmatpush1.msra.mxu0 0.0
      %2828 = vmatprep.subr.mxu0 0.0
      %2829 = vmatpush1.msra.mxu0 0.0
      %2830 = vmatprep.subr.mxu0 0.0
      %2831 = vmatpush1.msra.mxu0 0.0
      %2832 = vmatprep.subr.mxu0 0.0
      %2833 = vmatpush1.msra.mxu0 0.0
      %2834 = vmatprep.subr.mxu0 0.0
      %2835 = vmatpush1.msra.mxu0 0.0
      %2836 = vmatprep.subr.mxu0 0.0
      %2837 = vmatpush1.msra.mxu0 0.0
      %2838 = vmatprep.subr.mxu0 0.0
      %2839 = vmatpush1.msra.mxu0 0.0
      %2840 = vmatprep.subr.mxu0 0.0
      %2841 = vmatpush1.msra.mxu0 0.0
      %2842 = vmatprep.subr.mxu0 0.0
      %2843 = vmatpush1.msra.mxu0 0.0
      %2844 = vmatprep.subr.mxu0 0.0
      %2845 = vmatpush1.msra.mxu0 0.0
      %2846 = vmatprep.subr.mxu0 0.0
      %2847 = vmatpush1.msra.mxu0 0.0
      %2848 = vmatprep.subr.mxu0 0.0
      %2849 = vmatpush1.msra.mxu0 0.0
      %2850 = vmatprep.subr.mxu0 0.0
      %2851 = vmatpush1.msra.mxu0 0.0
      %2852 = vmatprep.subr.mxu0 0.0
      %2853 = vmatpush1.msra.mxu0 0.0
      %2854 = vmatprep.subr.mxu0 0.0
      %2855 = vmatpush1.msra.mxu0 0.0
      %2856 = vmatprep.subr.mxu0 0.0
      %2857 = vmatpush1.msra.mxu0 0.0
      %2858 = vmatprep.subr.mxu0 0.0
      %2859 = vmatpush1.msra.mxu0 0.0
      %2860 = vmatprep.subr.mxu0 0.0
      %2861 = vmatpush1.msra.mxu0 0.0
      %2862 = vmatprep.subr.mxu0 0.0
      %2863 = vmatpush1.msra.mxu0 0.0
      %2864 = vmatprep.subr.mxu0 0.0
      %2865 = vmatpush1.msra.mxu0 0.0
      %2866 = vmatprep.subr.mxu0 0.0
      %2867 = vmatpush1.msra.mxu0 0.0
      %2868 = vmatprep.subr.mxu0 0.0
      %2869 = vmatpush1.msra.mxu0 0.0
      %2870 = vmatprep.subr.mxu0 0.0
      %2871 = vmatpush1.msra.mxu0 0.0
      %2872 = vmatprep.subr.mxu0 0.0
      %2873 = vmatpush1.msra.mxu0 0.0
      %2874 = vmatprep.subr.mxu0 0.0
      %2875 = vmatpush1.msra.mxu0 0.0
      %2876 = vmatprep.mubr.f32.mxu0 0.0
      %2877 = vmatmul.mubr.f32.gmra.mrb[0].mxu0 %v2789
      %v2878 = vpop.f32.mrb[0].mxu0
      %v2879 = vadd.f32 %v2750, %v2878
      %v2880 = vpop.f32.mrb[0].mxu0
      %2881 = vmatprep.mubr.f32.mxu0 0.0
      %2882 = vmatmul.mubr.f32.gmra.mrb[0].mxu0 %v2792
      %v2883 = vpop.f32.mrb[0].mxu0
      %v2884 = vadd.f32 %v2755, %v2883
      %v2885 = vpop.f32.mrb[0].mxu0
      %2886 = vmatprep.mubr.f32.mxu0 0.0
      %2887 = vmatmul.mubr.f32.gmra.mrb[0].mxu0 %v2795
      %v2888 = vpop.f32.mrb[0].mxu0
      %v2889 = vadd.f32 %v2760, %v2888
      %v2890 = vpop.f32.mrb[0].mxu0
      %2891 = vmatprep.mubr.f32.mxu0 0.0
      %2892 = vmatmul.mubr.f32.gmra.mrb[0].mxu0 %v2798
      %v2893 = vpop.f32.mrb[0].mxu0
      %v2894 = vadd.f32 %v2765, %v2893
      %v2895 = vpop.f32.mrb[0].mxu0
      %2896 = vmatprep.mubr.f32.mxu0 0.0
      %2897 = vmatmul.mubr.f32.gmra.mrb[0].mxu0 %v2801
      %v2898 = vpop.f32.mrb[0].mxu0
      %v2899 = vadd.f32 %v2770, %v2898
      %v2900 = vpop.f32.mrb[0].mxu0
      %2901 = vmatprep.mubr.f32.mxu0 0.0
      %2902 = vmatmul.mubr.f32.gmra.mrb[0].mxu0 %v2804
      %v2903 = vpop.f32.mrb[0].mxu0
      %v2904 = vadd.f32 %v2775, %v2903
      %v2905 = vpop.f32.mrb[0].mxu0
      %2906 = vmatprep.mubr.f32.mxu0 0.0
      %2907 = vmatmul.mubr.f32.gmra.mrb[0].mxu0 %v2807
      %v2908 = vpop.f32.mrb[0].mxu0
      %v2909 = vadd.f32 %v2780, %v2908
      %v2910 = vpop.f32.mrb[0].mxu0
      %2911 = vmatprep.mubr.f32.mxu0 0.0
      %2912 = vmatmul.mubr.f32.gmra.mrb[0].mxu0 %v2810
      %v2913 = vpop.f32.mrb[0].mxu0
      %v2914 = vadd.f32 %v2785, %v2913
      %v2915 = vpop.f32.mrb[0].mxu0
      %2916 = vdwg.mxu0
      %v2917 = vadd.f32 %v2879, %v407
      %v2918 = vadd.f32 %v2884, %v407
      %v2919 = vadd.f32 %v2889, %v407
      %v2920 = vadd.f32 %v2894, %v407
      %v2921 = vadd.f32 %v2899, %v407
      %v2922 = vadd.f32 %v2904, %v407
      %v2923 = vadd.f32 %v2909, %v407
      %v2924 = vadd.f32 %v2914, %v407
      %v2926 = vsel %vm775, %v2651, 0
      %v2929 = vsel %vm775, %v2652, 0
      %v2932 = vsel %vm775, %v2653, 0
      %v2935 = vsel %vm775, %v2654, 0
      %v2938 = vsel %vm775, %v2655, 0
      %v2941 = vsel %vm775, %v2656, 0
      %v2944 = vsel %vm775, %v2657, 0
      %v2947 = vsel %vm775, %v2658, 0
      %2949 = vmatprep.subr.mxu0 0.0
      %2950 = vmatpush1.msra.mxu0 %v1898
      %2951 = vmatprep.subr.mxu0 0.0
      %2952 = vmatpush1.msra.mxu0 %v1899
      %2953 = vmatprep.subr.mxu0 0.0
      %2954 = vmatpush1.msra.mxu0 %v1900
      %2955 = vmatprep.subr.mxu0 0.0
      %2956 = vmatpush1.msra.mxu0 %v1901
      %2957 = vmatprep.subr.mxu0 0.0
      %2958 = vmatpush1.msra.mxu0 %v2225
      %2959 = vmatprep.subr.mxu0 0.0
      %2960 = vmatpush1.msra.mxu0 0.0
      %2961 = vmatprep.subr.mxu0 0.0
      %2962 = vmatpush1.msra.mxu0 0.0
      %2963 = vmatprep.subr.mxu0 0.0
      %2964 = vmatpush1.msra.mxu0 0.0
      %2965 = vmatprep.subr.mxu0 0.0
      %2966 = vmatpush1.msra.mxu0 0.0
      %2967 = vmatprep.subr.mxu0 0.0
      %2968 = vmatpush1.msra.mxu0 0.0
      %2969 = vmatprep.subr.mxu0 0.0
      %2970 = vmatpush1.msra.mxu0 0.0
      %2971 = vmatprep.subr.mxu0 0.0
      %2972 = vmatpush1.msra.mxu0 0.0
      %2973 = vmatprep.subr.mxu0 0.0
      %2974 = vmatpush1.msra.mxu0 0.0
      %2975 = vmatprep.subr.mxu0 0.0
      %2976 = vmatpush1.msra.mxu0 0.0
      %2977 = vmatprep.subr.mxu0 0.0
      %2978 = vmatpush1.msra.mxu0 0.0
      %2979 = vmatprep.subr.mxu0 0.0
      %2980 = vmatpush1.msra.mxu0 0.0
      %2981 = vmatprep.subr.mxu0 0.0
      %2982 = vmatpush1.msra.mxu0 0.0
      %2983 = vmatprep.subr.mxu0 0.0
      %2984 = vmatpush1.msra.mxu0 0.0
      %2985 = vmatprep.subr.mxu0 0.0
      %2986 = vmatpush1.msra.mxu0 0.0
      %2987 = vmatprep.subr.mxu0 0.0
      %2988 = vmatpush1.msra.mxu0 0.0
      %2989 = vmatprep.subr.mxu0 0.0
      %2990 = vmatpush1.msra.mxu0 0.0
      %2991 = vmatprep.subr.mxu0 0.0
      %2992 = vmatpush1.msra.mxu0 0.0
      %2993 = vmatprep.subr.mxu0 0.0
      %2994 = vmatpush1.msra.mxu0 0.0
      %2995 = vmatprep.subr.mxu0 0.0
      %2996 = vmatpush1.msra.mxu0 0.0
      %2997 = vmatprep.subr.mxu0 0.0
      %2998 = vmatpush1.msra.mxu0 0.0
      %2999 = vmatprep.subr.mxu0 0.0
      %3000 = vmatpush1.msra.mxu0 0.0
      %3001 = vmatprep.subr.mxu0 0.0
      %3002 = vmatpush1.msra.mxu0 0.0
      %3003 = vmatprep.subr.mxu0 0.0
      %3004 = vmatpush1.msra.mxu0 0.0
      %3005 = vmatprep.subr.mxu0 0.0
      %3006 = vmatpush1.msra.mxu0 0.0
      %3007 = vmatprep.subr.mxu0 0.0
      %3008 = vmatpush1.msra.mxu0 0.0
      %3009 = vmatprep.subr.mxu0 0.0
      %3010 = vmatpush1.msra.mxu0 0.0
      %3011 = vmatprep.subr.mxu0 0.0
      %3012 = vmatpush1.msra.mxu0 0.0
      %3013 = vmatprep.mubr.f32.mxu0 0.0
      %3014 = vmatmul.mubr.f32.gmra.mrb[0].mxu0 %v2926
      %v3015 = vpop.f32.mrb[0].mxu0
      %v3016 = vadd.f32 0.0, %v3015
      %v3017 = vpop.f32.mrb[0].mxu0
      %3018 = vmatprep.mubr.f32.mxu0 0.0
      %3019 = vmatmul.mubr.f32.gmra.mrb[0].mxu0 %v2929
      %v3020 = vpop.f32.mrb[0].mxu0
      %v3021 = vadd.f32 0.0, %v3020
      %v3022 = vpop.f32.mrb[0].mxu0
      %3023 = vmatprep.mubr.f32.mxu0 0.0
      %3024 = vmatmul.mubr.f32.gmra.mrb[0].mxu0 %v2932
      %v3025 = vpop.f32.mrb[0].mxu0
      %v3026 = vadd.f32 0.0, %v3025
      %v3027 = vpop.f32.mrb[0].mxu0
      %3028 = vmatprep.mubr.f32.mxu0 0.0
      %3029 = vmatmul.mubr.f32.gmra.mrb[0].mxu0 %v2935
      %v3030 = vpop.f32.mrb[0].mxu0
      %v3031 = vadd.f32 0.0, %v3030
      %v3032 = vpop.f32.mrb[0].mxu0
      %3033 = vmatprep.mubr.f32.mxu0 0.0
      %3034 = vmatmul.mubr.f32.gmra.mrb[0].mxu0 %v2938
      %v3035 = vpop.f32.mrb[0].mxu0
      %v3036 = vadd.f32 0.0, %v3035
      %v3037 = vpop.f32.mrb[0].mxu0
      %3038 = vmatprep.mubr.f32.mxu0 0.0
      %3039 = vmatmul.mubr.f32.gmra.mrb[0].mxu0 %v2941
      %v3040 = vpop.f32.mrb[0].mxu0
      %v3041 = vadd.f32 0.0, %v3040
      %v3042 = vpop.f32.mrb[0].mxu0
      %3043 = vmatprep.mubr.f32.mxu0 0.0
      %3044 = vmatmul.mubr.f32.gmra.mrb[0].mxu0 %v2944
      %v3045 = vpop.f32.mrb[0].mxu0
      %v3046 = vadd.f32 0.0, %v3045
      %v3047 = vpop.f32.mrb[0].mxu0
      %3048 = vmatprep.mubr.f32.mxu0 0.0
      %3049 = vmatmul.mubr.f32.gmra.mrb[0].mxu0 %v2947
      %v3050 = vpop.f32.mrb[0].mxu0
      %v3051 = vadd.f32 0.0, %v3050
      %v3052 = vpop.f32.mrb[0].mxu0
      %3053 = vdwg.mxu0
      %3054 = vmatprep.subr.mxu0 0.0
      %3055 = vmatpush1.msra.mxu0 %v1892
      %3056 = vmatprep.subr.mxu0 0.0
      %3057 = vmatpush1.msra.mxu0 %v1893
      %3058 = vmatprep.subr.mxu0 0.0
      %3059 = vmatpush1.msra.mxu0 %v1894
      %3060 = vmatprep.subr.mxu0 0.0
      %3061 = vmatpush1.msra.mxu0 %v1895
      %3062 = vmatprep.subr.mxu0 0.0
      %3063 = vmatpush1.msra.mxu0 %v2333
      %3064 = vmatprep.subr.mxu0 0.0
      %3065 = vmatpush1.msra.mxu0 0.0
      %3066 = vmatprep.subr.mxu0 0.0
      %3067 = vmatpush1.msra.mxu0 0.0
      %3068 = vmatprep.subr.mxu0 0.0
      %3069 = vmatpush1.msra.mxu0 0.0
      %3070 = vmatprep.subr.mxu0 0.0
      %3071 = vmatpush1.msra.mxu0 0.0
      %3072 = vmatprep.subr.mxu0 0.0
      %3073 = vmatpush1.msra.mxu0 0.0
      %3074 = vmatprep.subr.mxu0 0.0
      %3075 = vmatpush1.msra.mxu0 0.0
      %3076 = vmatprep.subr.mxu0 0.0
      %3077 = vmatpush1.msra.mxu0 0.0
      %3078 = vmatprep.subr.mxu0 0.0
      %3079 = vmatpush1.msra.mxu0 0.0
      %3080 = vmatprep.subr.mxu0 0.0
      %3081 = vmatpush1.msra.mxu0 0.0
      %3082 = vmatprep.subr.mxu0 0.0
      %3083 = vmatpush1.msra.mxu0 0.0
      %3084 = vmatprep.subr.mxu0 0.0
      %3085 = vmatpush1.msra.mxu0 0.0
      %3086 = vmatprep.subr.mxu0 0.0
      %3087 = vmatpush1.msra.mxu0 0.0
      %3088 = vmatprep.subr.mxu0 0.0
      %3089 = vmatpush1.msra.mxu0 0.0
      %3090 = vmatprep.subr.mxu0 0.0
      %3091 = vmatpush1.msra.mxu0 0.0
      %3092 = vmatprep.subr.mxu0 0.0
      %3093 = vmatpush1.msra.mxu0 0.0
      %3094 = vmatprep.subr.mxu0 0.0
      %3095 = vmatpush1.msra.mxu0 0.0
      %3096 = vmatprep.subr.mxu0 0.0
      %3097 = vmatpush1.msra.mxu0 0.0
      %3098 = vmatprep.subr.mxu0 0.0
      %3099 = vmatpush1.msra.mxu0 0.0
      %3100 = vmatprep.subr.mxu0 0.0
      %3101 = vmatpush1.msra.mxu0 0.0
      %3102 = vmatprep.subr.mxu0 0.0
      %3103 = vmatpush1.msra.mxu0 0.0
      %3104 = vmatprep.subr.mxu0 0.0
      %3105 = vmatpush1.msra.mxu0 0.0
      %3106 = vmatprep.subr.mxu0 0.0
      %3107 = vmatpush1.msra.mxu0 0.0
      %3108 = vmatprep.subr.mxu0 0.0
      %3109 = vmatpush1.msra.mxu0 0.0
      %3110 = vmatprep.subr.mxu0 0.0
      %3111 = vmatpush1.msra.mxu0 0.0
      %3112 = vmatprep.subr.mxu0 0.0
      %3113 = vmatpush1.msra.mxu0 0.0
      %3114 = vmatprep.subr.mxu0 0.0
      %3115 = vmatpush1.msra.mxu0 0.0
      %3116 = vmatprep.subr.mxu0 0.0
      %3117 = vmatpush1.msra.mxu0 0.0
      %3118 = vmatprep.mubr.f32.mxu0 0.0
      %3119 = vmatmul.mubr.f32.gmra.mrb[0].mxu0 %v2660
      %v3120 = vpop.f32.mrb[0].mxu0
      %v3121 = vadd.f32 %v3016, %v3120
      %v3122 = vpop.f32.mrb[0].mxu0
      %3123 = vmatprep.mubr.f32.mxu0 0.0
      %3124 = vmatmul.mubr.f32.gmra.mrb[0].mxu0 %v2663
      %v3125 = vpop.f32.mrb[0].mxu0
      %v3126 = vadd.f32 %v3021, %v3125
      %v3127 = vpop.f32.mrb[0].mxu0
      %3128 = vmatprep.mubr.f32.mxu0 0.0
      %3129 = vmatmul.mubr.f32.gmra.mrb[0].mxu0 %v2666
      %v3130 = vpop.f32.mrb[0].mxu0
      %v3131 = vadd.f32 %v3026, %v3130
      %v3132 = vpop.f32.mrb[0].mxu0
      %3133 = vmatprep.mubr.f32.mxu0 0.0
      %3134 = vmatmul.mubr.f32.gmra.mrb[0].mxu0 %v2669
      %v3135 = vpop.f32.mrb[0].mxu0
      %v3136 = vadd.f32 %v3031, %v3135
      %v3137 = vpop.f32.mrb[0].mxu0
      %3138 = vmatprep.mubr.f32.mxu0 0.0
      %3139 = vmatmul.mubr.f32.gmra.mrb[0].mxu0 %v2672
      %v3140 = vpop.f32.mrb[0].mxu0
      %v3141 = vadd.f32 %v3036, %v3140
      %v3142 = vpop.f32.mrb[0].mxu0
      %3143 = vmatprep.mubr.f32.mxu0 0.0
      %3144 = vmatmul.mubr.f32.gmra.mrb[0].mxu0 %v2675
      %v3145 = vpop.f32.mrb[0].mxu0
      %v3146 = vadd.f32 %v3041, %v3145
      %v3147 = vpop.f32.mrb[0].mxu0
      %3148 = vmatprep.mubr.f32.mxu0 0.0
      %3149 = vmatmul.mubr.f32.gmra.mrb[0].mxu0 %v2678
      %v3150 = vpop.f32.mrb[0].mxu0
      %v3151 = vadd.f32 %v3046, %v3150
      %v3152 = vpop.f32.mrb[0].mxu0
      %3153 = vmatprep.mubr.f32.mxu0 0.0
      %3154 = vmatmul.mubr.f32.gmra.mrb[0].mxu0 %v2681
      %v3155 = vpop.f32.mrb[0].mxu0
      %v3156 = vadd.f32 %v3051, %v3155
      %v3157 = vpop.f32.mrb[0].mxu0
      %3158 = vdwg.mxu0
      %v3159 = vadd.f32 %v3121, %v407
      %v3160 = vadd.f32 %v3126, %v407
      %v3161 = vadd.f32 %v3131, %v407
      %v3162 = vadd.f32 %v3136, %v407
      %v3163 = vadd.f32 %v3141, %v407
      %v3164 = vadd.f32 %v3146, %v407
      %v3165 = vadd.f32 %v3151, %v407
      %v3166 = vadd.f32 %v3156, %v407
      %v3167 = vmul.f32 %v2448, %v2643
      %v3168 = vmul.f32 %v2448, %v2644
      %v3169 = vmul.f32 %v2448, %v2645
      %v3170 = vmul.f32 %v2448, %v2646
      %v3171 = vmul.f32 %v2448, %v2647
      %v3172 = vmul.f32 %v2448, %v2648
      %v3173 = vmul.f32 %v2448, %v2649
      %v3174 = vmul.f32 %v2448, %v2650
      %v3175 = vmul.f32 %v2457, %v2917
      %v3176 = vmul.f32 %v2457, %v2918
      %v3177 = vmul.f32 %v2457, %v2919
      %v3178 = vmul.f32 %v2457, %v2920
      %v3179 = vmul.f32 %v2457, %v2921
      %v3180 = vmul.f32 %v2457, %v2922
      %v3181 = vmul.f32 %v2457, %v2923
      %v3182 = vmul.f32 %v2457, %v2924
      %3191 = vrot.lane.b32.xlu0 %v3175, 16
      %v3192 = vpop.permute.xlu0 %3191
      %3193 = vrot.lane.b32.xlu0 %v3176, 16
      %v3194 = vpop.permute.xlu0 %3193
      %3195 = vrot.lane.b32.xlu0 %v3177, 16
      %v3196 = vpop.permute.xlu0 %3195
      %3197 = vrot.lane.b32.xlu0 %v3178, 16
      %v3198 = vpop.permute.xlu0 %3197
      %3199 = vrot.lane.b32.xlu0 %v3179, 16
      %v3200 = vpop.permute.xlu0 %3199
      %3201 = vrot.lane.b32.xlu0 %v3180, 16
      %v3202 = vpop.permute.xlu0 %3201
      %3203 = vrot.lane.b32.xlu0 %v3181, 16
      %v3204 = vpop.permute.xlu0 %3203
      %3205 = vrot.lane.b32.xlu0 %v3182, 16
      %v3206 = vpop.permute.xlu0 %3205
      %v3215 = vadd.f32 %v3167, %v3192
      %v3216 = vadd.f32 %v3168, %v3194
      %v3217 = vadd.f32 %v3169, %v3196
      %v3218 = vadd.f32 %v3170, %v3198
      %v3219 = vadd.f32 %v3171, %v3200
      %v3220 = vadd.f32 %v3172, %v3202
      %v3221 = vadd.f32 %v3173, %v3204
      %v3222 = vadd.f32 %v3174, %v3206
      %3231 = vrot.lane.b32.xlu0 %v3215, 112
      %v3232 = vpop.permute.xlu0 %3231
      %3233 = vrot.lane.b32.xlu0 %v3216, 112
      %v3234 = vpop.permute.xlu0 %3233
      %3235 = vrot.lane.b32.xlu0 %v3217, 112
      %v3236 = vpop.permute.xlu0 %3235
      %3237 = vrot.lane.b32.xlu0 %v3218, 112
      %v3238 = vpop.permute.xlu0 %3237
      %3239 = vrot.lane.b32.xlu0 %v3219, 112
      %v3240 = vpop.permute.xlu0 %3239
      %3241 = vrot.lane.b32.xlu0 %v3220, 112
      %v3242 = vpop.permute.xlu0 %3241
      %3243 = vrot.lane.b32.xlu0 %v3221, 112
      %v3244 = vpop.permute.xlu0 %3243
      %3245 = vrot.lane.b32.xlu0 %v3222, 112
      %v3246 = vpop.permute.xlu0 %3245
      %s3255 = scalar_lea.vmem %s398, 128
      %3256 = vst.msk [vmem:[%s3255] sm:$0xff] %vm703, %v3232
      %3257 = vst.msk [vmem:[%s3255 + $0x8] sm:$0xff] %vm703, %v3234
      %3258 = vst.msk [vmem:[%s3255 + $0x10] sm:$0xff] %vm703, %v3236
      %3259 = vst.msk [vmem:[%s3255 + $0x18] sm:$0xff] %vm703, %v3238
      %3260 = vst.msk [vmem:[%s3255 + $0x20] sm:$0xff] %vm703, %v3240
      %3261 = vst.msk [vmem:[%s3255 + $0x28] sm:$0xff] %vm703, %v3242
      %3262 = vst.msk [vmem:[%s3255 + $0x30] sm:$0xff] %vm703, %v3244
      %3263 = vst.msk [vmem:[%s3255 + $0x38] sm:$0xff] %vm703, %v3246
      %v3264 = vmul.f32 %v2457, %v3159
      %v3265 = vmul.f32 %v2457, %v3160
      %v3266 = vmul.f32 %v2457, %v3161
      %v3267 = vmul.f32 %v2457, %v3162
      %v3268 = vmul.f32 %v2457, %v3163
      %v3269 = vmul.f32 %v2457, %v3164
      %v3270 = vmul.f32 %v2457, %v3165
      %v3271 = vmul.f32 %v2457, %v3166
      %3280 = vrot.lane.b32.xlu0 %v3264, 16
      %v3281 = vpop.permute.xlu0 %3280
      %3282 = vrot.lane.b32.xlu0 %v3265, 16
      %v3283 = vpop.permute.xlu0 %3282
      %3284 = vrot.lane.b32.xlu0 %v3266, 16
      %v3285 = vpop.permute.xlu0 %3284
      %3286 = vrot.lane.b32.xlu0 %v3267, 16
      %v3287 = vpop.permute.xlu0 %3286
      %3288 = vrot.lane.b32.xlu0 %v3268, 16
      %v3289 = vpop.permute.xlu0 %3288
      %3290 = vrot.lane.b32.xlu0 %v3269, 16
      %v3291 = vpop.permute.xlu0 %3290
      %3292 = vrot.lane.b32.xlu0 %v3270, 16
      %v3293 = vpop.permute.xlu0 %3292
      %3294 = vrot.lane.b32.xlu0 %v3271, 16
      %v3295 = vpop.permute.xlu0 %3294
      %v3304 = vadd.f32 %v3167, %v3281
      %v3305 = vadd.f32 %v3168, %v3283
      %v3306 = vadd.f32 %v3169, %v3285
      %v3307 = vadd.f32 %v3170, %v3287
      %v3308 = vadd.f32 %v3171, %v3289
      %v3309 = vadd.f32 %v3172, %v3291
      %v3310 = vadd.f32 %v3173, %v3293
      %v3311 = vadd.f32 %v3174, %v3295
      %3320 = vrot.lane.b32.xlu0 %v3304, 112
      %v3321 = vpop.permute.xlu0 %3320
      %3322 = vrot.lane.b32.xlu0 %v3305, 112
      %v3323 = vpop.permute.xlu0 %3322
      %3324 = vrot.lane.b32.xlu0 %v3306, 112
      %v3325 = vpop.permute.xlu0 %3324
      %3326 = vrot.lane.b32.xlu0 %v3307, 112
      %v3327 = vpop.permute.xlu0 %3326
      %3328 = vrot.lane.b32.xlu0 %v3308, 112
      %v3329 = vpop.permute.xlu0 %3328
      %3330 = vrot.lane.b32.xlu0 %v3309, 112
      %v3331 = vpop.permute.xlu0 %3330
      %3332 = vrot.lane.b32.xlu0 %v3310, 112
      %v3333 = vpop.permute.xlu0 %3332
      %3334 = vrot.lane.b32.xlu0 %v3311, 112
      %v3335 = vpop.permute.xlu0 %3334
      %s3344 = scalar_lea.vmem %s398, 192
      %3345 = vst.msk [vmem:[%s3344] sm:$0xff] %vm703, %v3321
      %3346 = vst.msk [vmem:[%s3344 + $0x8] sm:$0xff] %vm703, %v3323
      %3347 = vst.msk [vmem:[%s3344 + $0x10] sm:$0xff] %vm703, %v3325
      %3348 = vst.msk [vmem:[%s3344 + $0x18] sm:$0xff] %vm703, %v3327
      %3349 = vst.msk [vmem:[%s3344 + $0x20] sm:$0xff] %vm703, %v3329
      %3350 = vst.msk [vmem:[%s3344 + $0x28] sm:$0xff] %vm703, %v3331
      %3351 = vst.msk [vmem:[%s3344 + $0x30] sm:$0xff] %vm703, %v3333
      %3352 = vst.msk [vmem:[%s3344 + $0x38] sm:$0xff] %vm703, %v3335
      %s3353 = smul.u32 4, %s23
      %p3354 = scmp.lt.s32.totalorder %s22, 1
      %s3355 = scalar_select %p3354, %s22, 1
      %p3356 = scmp.lt.s32.totalorder %s3353, 7
      %s3357 = scalar_select %p3356, %s3353, 7
      %s3358 = smul.addr %s3357, 8
      %s3359 = smul.addr %s3355, 64
      %s3360 = sadd.s32 %s3358, %s3359
      %s3361 = smul.addr %s3360, 8
      %s3362 = scalar_lea.vmem %s6, %s3361
      // Predicated region
      $region45: #{time_upsample_res2x.1} parent=43 // pred_check
        %p3363 = pneg %p207
      $region46: #{time_upsample_res2x.1} parent=43 // pred_check_branch
        %3365 = sbr.rel (%p3363) target = $region48
      $region47: #{time_upsample_res2x.1} parent=43 // pred_region
        %s3366 = smul.u32 4, %s23
      $region48: #{time_upsample_res2x.1} parent=43 // pred_fallthru
        _
    $region44: #{time_upsample_res2x.1} parent=5 // pred_fallthru
      _
    %p3367 = scmp.le.s32.totalorder 2, %s13
    // Predicated region
    $region49: #{time_upsample_res2x.1} parent=5 // pred_check
      %p3368 = pneg %p3367
    $region50: #{time_upsample_res2x.1} parent=5 // pred_check_branch
      %3370 = sbr.rel (%p3368) target = $region52
    $region51: #{time_upsample_res2x.1} parent=5 // pred_region
      %s3371 = ssub.s32 %s13, 2
      // Predicated region
      $region53: #{time_upsample_res2x.1} parent=51 // pred_check
        %p3372 = pneg %p213
      $region54: #{time_upsample_res2x.1} parent=51 // pred_check_branch
        %3374 = sbr.rel (%p3372) target = $region56
      $region55: #{time_upsample_res2x.1} parent=51 // pred_region
        %s3375 = smul.u32 4, %s25
        %p3376 = scmp.lt.s32.totalorder %s24, 1
        %s3377 = scalar_select %p3376, %s24, 1
        %p3378 = scmp.lt.s32.totalorder %s3375, 7
        %s3379 = scalar_select %p3378, %s3375, 7
        %s3380 = smul.addr %s3379, 8
        %s3381 = smul.addr %s3377, 64
        %s3382 = sadd.s32 %s3380, %s3381
        %s3383 = smul.addr %s3382, 8
        %s3384 = scalar_lea.vmem %s6, %s3383
      $region56: #{time_upsample_res2x.1} parent=51 // pred_fallthru
        _
    $region52: #{time_upsample_res2x.1} parent=5 // pred_fallthru
      _
  $region6: #{time_upsample_res2x.1} parent=0 // loop_footer
    %s17 = sadd.s32 1, %s13
  $region7: #{time_upsample_res2x.1} parent=0 // loop_footer_branch
    %12 = sbr.rel target = $region3
  $region8: #{time_upsample_res2x.1} parent=0 // loop_exit
    _

</llo_original>
